<compile_context>
chip_gen: v6e
topology: v6e:2x2x1
jax: 0.10.0
libtpu: 0.0.40
codegen_flags: <defaults>
</compile_context>

<pallas_src>
import math

import jax
import jax.numpy as jnp
from jax.experimental import pallas as pl
from jax.experimental.pallas import tpu as pltpu

D_MODEL = 32
D_K = 64
D_V = 64
N_HEADS = 8
LN_EPS = 1e-5
_SCALE = 1.0 / math.sqrt(D_K)


# ------------------------------ Pallas kernel -------------------------------

def _mha_kernel(xq_ref, xk_ref, xv_ref, wq_ref, wk_ref, wv_ref, wfc_ref,
                out_ref, attn_ref):
    # xq_ref: [1, Sq, D]   xk_ref/xv_ref: [1, Sk, D]
    # wq_ref/wk_ref: [H, D, d_k]   wv_ref: [H, D, d_v]   wfc_ref: [H, d_v, D]
    x_q = xq_ref[0]                                              # [Sq, D]
    x_k = xk_ref[0]                                              # [Sk, D]
    x_v = xv_ref[0]                                              # [Sk, D]

    # Broadcast activations over the head axis once per grid step so every
    # contraction below is a plain head-batched matmul (MXU) with no in-kernel
    # transposes / reshapes.
    xq_b = jnp.broadcast_to(x_q[None], (N_HEADS,) + x_q.shape)   # [H, Sq, D]
    xk_b = jnp.broadcast_to(x_k[None], (N_HEADS,) + x_k.shape)   # [H, Sk, D]
    xv_b = jnp.broadcast_to(x_v[None], (N_HEADS,) + x_v.shape)   # [H, Sk, D]

    q = jnp.einsum('hsd,hdk->hsk', xq_b, wq_ref[...],
                   preferred_element_type=jnp.float32)           # [H, Sq, d_k]
    k = jnp.einsum('hsd,hdk->hsk', xk_b, wk_ref[...],
                   preferred_element_type=jnp.float32)           # [H, Sk, d_k]
    v = jnp.einsum('hsd,hdk->hsk', xv_b, wv_ref[...],
                   preferred_element_type=jnp.float32)           # [H, Sk, d_v]

    scores = jnp.einsum('hqd,hkd->hqk', q, k,
                        preferred_element_type=jnp.float32) * _SCALE  # [H,Sq,Sk]

    # Numerically-stable softmax over the key axis (lane reduce -> EUP exp).
    m = jnp.max(scores, axis=-1, keepdims=True)
    e = jnp.exp(scores - m)
    attn = e / jnp.sum(e, axis=-1, keepdims=True)
    attn_ref[0] = attn.astype(attn_ref.dtype)

    ctx = jnp.einsum('hqk,hkd->hqd', attn, v,
                     preferred_element_type=jnp.float32)         # [H, Sq, d_v]

    # fc(context): per-head projection then sum over heads
    # (mathematically identical to the transpose+reshape+matmul in PyTorch).
    proj = jnp.sum(
        jnp.einsum('hqv,hvd->hqd', ctx, wfc_ref[...],
                   preferred_element_type=jnp.float32),
        axis=0)                                                  # [Sq, D]

    # Residual + LayerNorm(d_model) (freshly-constructed nn.LayerNorm:
    # gamma=1, beta=0, eps=1e-5, biased variance).
    y = proj + x_q
    mu = jnp.mean(y, axis=-1, keepdims=True)
    var = jnp.mean(jnp.square(y - mu), axis=-1, keepdims=True)
    out_ref[0] = ((y - mu) * jax.lax.rsqrt(var + LN_EPS)).astype(out_ref.dtype)


# -------------------------------- Wrapper ------------------------------------

def multi_head_attention(input_Q, input_K, input_V, attn_mask=None, *,
                         wq, wk, wv, wfc):
    """input_*: [B, S, d_model]; wq/wk/wv: [d_model, H*d_k]; wfc: [H*d_v, d_model].

    attn_mask is accepted for parity with the PyTorch signature but is unused,
    exactly as in the source module's ScaledDotProductAttention.forward.
    """
    del attn_mask
    B, Sq, D = input_Q.shape
    Sk = input_K.shape[1]
    assert D == D_MODEL

    # Host-side weight re-layout (free): [D, H*dk] -> [H, D, dk];
    # [H*dv, D] -> [H, dv, D].  Keeps every in-kernel contraction transpose-free.
    wq_r = wq.reshape(D, N_HEADS, D_K).transpose(1, 0, 2)
    wk_r = wk.reshape(D, N_HEADS, D_K).transpose(1, 0, 2)
    wv_r = wv.reshape(D, N_HEADS, D_V).transpose(1, 0, 2)
    wfc_r = wfc.reshape(N_HEADS, D_V, D)

    out, attn = pl.pallas_call(
        _mha_kernel,
        out_shape=(
            jax.ShapeDtypeStruct((B, Sq, D), input_Q.dtype),
            jax.ShapeDtypeStruct((B, N_HEADS, Sq, Sk), jnp.float32),
        ),
        grid_spec=pltpu.PrefetchScalarGridSpec(
            num_scalar_prefetch=0,
            grid=(B,),
            in_specs=[
                pl.BlockSpec((1, Sq, D), lambda b: (b, 0, 0)),
                pl.BlockSpec((1, Sk, D), lambda b: (b, 0, 0)),
                pl.BlockSpec((1, Sk, D), lambda b: (b, 0, 0)),
                # Weights: constant index_map -> stay VMEM-resident across grid.
                pl.BlockSpec((N_HEADS, D, D_K), lambda b: (0, 0, 0)),
                pl.BlockSpec((N_HEADS, D, D_K), lambda b: (0, 0, 0)),
                pl.BlockSpec((N_HEADS, D, D_V), lambda b: (0, 0, 0)),
                pl.BlockSpec((N_HEADS, D_V, D), lambda b: (0, 0, 0)),
            ],
            out_specs=[
                pl.BlockSpec((1, Sq, D), lambda b: (b, 0, 0)),
                pl.BlockSpec((1, N_HEADS, Sq, Sk), lambda b: (b, 0, 0, 0)),
            ],
        ),
        compiler_params=pltpu.CompilerParams(
            dimension_semantics=("parallel",)),
    )(input_Q, input_K, input_V, wq_r, wk_r, wv_r, wfc_r)
    return out, attn


# --------------------------- Pure-JAX reference -------------------------------

def _mha_ref(x_q, x_k, x_v, wq, wk, wv, wfc):
    hi = jax.lax.Precision.HIGHEST
    B, Sq, _ = x_q.shape
    Sk = x_k.shape[1]
    Q = jnp.einsum('bsd,dk->bsk', x_q, wq, precision=hi)
    K = jnp.einsum('bsd,dk->bsk', x_k, wk, precision=hi)
    V = jnp.einsum('bsd,dk->bsk', x_v, wv, precision=hi)
    Q = Q.reshape(B, Sq, N_HEADS, D_K).transpose(0, 2, 1, 3)
    K = K.reshape(B, Sk, N_HEADS, D_K).transpose(0, 2, 1, 3)
    V = V.reshape(B, Sk, N_HEADS, D_V).transpose(0, 2, 1, 3)
    scores = jnp.einsum('bhqd,bhkd->bhqk', Q, K, precision=hi) / math.sqrt(D_K)
    attn = jax.nn.softmax(scores, axis=-1)
    ctx = jnp.einsum('bhqk,bhkd->bhqd', attn, V, precision=hi)
    ctx = ctx.transpose(0, 2, 1, 3).reshape(B, Sq, N_HEADS * D_V)
    out = jnp.einsum('bsv,vd->bsd', ctx, wfc, precision=hi) + x_q
    mu = out.mean(-1, keepdims=True)
    var = ((out - mu) ** 2).mean(-1, keepdims=True)
    return (out - mu) / jnp.sqrt(var + LN_EPS), attn


# ---------------------------------- Main --------------------------------------

if __name__ == "__main__":
    key = jax.random.PRNGKey(0)
    k1, k2, k3, k4, k5 = jax.random.split(key, 5)

    B, S = 2, 8
    x = jax.random.normal(k1, (B, S, D_MODEL), dtype=jnp.float32)
    wq = jax.random.normal(k2, (D_MODEL, N_HEADS * D_K), jnp.float32) * 0.18
    wk = jax.random.normal(k3, (D_MODEL, N_HEADS * D_K), jnp.float32) * 0.18
    wv = jax.random.normal(k4, (D_MODEL, N_HEADS * D_V), jnp.float32) * 0.18
    wfc = jax.random.normal(k5, (N_HEADS * D_V, D_MODEL), jnp.float32) * 0.044
    attn_mask = jnp.zeros((B, S, S), jnp.bool_)   # signature parity; unused

    out, attn = multi_head_attention(x, x, x, attn_mask,
                                     wq=wq, wk=wk, wv=wv, wfc=wfc)
    out = jax.block_until_ready(out)
    attn = jax.block_until_ready(attn)

    ref_out, ref_attn = _mha_ref(x, x, x, wq, wk, wv, wfc)

    assert out.shape == (B, S, D_MODEL)
    assert attn.shape == (B, N_HEADS, S, S)
    assert jnp.allclose(attn.sum(-1), 1.0, atol=1e-3), "attn rows must sum to 1"
    assert jnp.allclose(attn, ref_attn, atol=2e-2, rtol=2e-2), "attn mismatch"
    assert jnp.allclose(out, ref_out, atol=2e-2, rtol=2e-2), "output mismatch"

    print("KERNEL_OK")
</pallas_src>

<mosaic_0001>
module attributes {stable_mosaic.version = 11 : i64} {
  func.func @_mha_kernel(%arg0: i32, %arg1: memref<1x8x32xf32, #tpu.memory_space<vmem>>, %arg2: memref<1x8x32xf32, #tpu.memory_space<vmem>>, %arg3: memref<1x8x32xf32, #tpu.memory_space<vmem>>, %arg4: memref<8x32x64xf32, #tpu.memory_space<vmem>>, %arg5: memref<8x32x64xf32, #tpu.memory_space<vmem>>, %arg6: memref<8x32x64xf32, #tpu.memory_space<vmem>>, %arg7: memref<8x64x32xf32, #tpu.memory_space<vmem>>, %arg8: memref<1x8x32xf32, #tpu.memory_space<vmem>>, %arg9: memref<1x8x8x8xf32, #tpu.memory_space<vmem>>) attributes {dimension_semantics = [#tpu.dimension_semantics<parallel>], iteration_bounds = array<i64: 2>, scalar_prefetch = 0 : i64, scratch_operands = 0 : i64, tpu.core_type = #tpu.core_type<tc>, window_params = [{transform_indices = @transform_0, window_bounds = array<i64: 1, 8, 32>}, {transform_indices = @transform_1, window_bounds = array<i64: 1, 8, 32>}, {transform_indices = @transform_2, window_bounds = array<i64: 1, 8, 32>}, {pipeline_mode = #tpu.pipeline_mode<synchronous>, transform_indices = @transform_3, window_bounds = array<i64: 8, 32, 64>}, {pipeline_mode = #tpu.pipeline_mode<synchronous>, transform_indices = @transform_4, window_bounds = array<i64: 8, 32, 64>}, {pipeline_mode = #tpu.pipeline_mode<synchronous>, transform_indices = @transform_5, window_bounds = array<i64: 8, 32, 64>}, {pipeline_mode = #tpu.pipeline_mode<synchronous>, transform_indices = @transform_6, window_bounds = array<i64: 8, 64, 32>}, {transform_indices = @transform_7, window_bounds = array<i64: 1, 8, 32>}, {transform_indices = @transform_8, window_bounds = array<i64: 1, 8, 8, 8>}]} {
    %c0 = arith.constant 0 : index
    %c0_0 = arith.constant 0 : index
    %c0_1 = arith.constant 0 : index
    %0 = vector.load %arg1[%c0, %c0_0, %c0_1] : memref<1x8x32xf32, #tpu.memory_space<vmem>>, vector<1x8x32xf32>
    %1 = vector.shape_cast %0 : vector<1x8x32xf32> to vector<8x32xf32>
    %c0_2 = arith.constant 0 : index
    %c0_3 = arith.constant 0 : index
    %c0_4 = arith.constant 0 : index
    %2 = vector.load %arg2[%c0_2, %c0_3, %c0_4] : memref<1x8x32xf32, #tpu.memory_space<vmem>>, vector<1x8x32xf32>
    %3 = vector.shape_cast %2 : vector<1x8x32xf32> to vector<8x32xf32>
    %c0_5 = arith.constant 0 : index
    %c0_6 = arith.constant 0 : index
    %c0_7 = arith.constant 0 : index
    %4 = vector.load %arg3[%c0_5, %c0_6, %c0_7] : memref<1x8x32xf32, #tpu.memory_space<vmem>>, vector<1x8x32xf32>
    %5 = vector.shape_cast %4 : vector<1x8x32xf32> to vector<8x32xf32>
    %6 = vector.shape_cast %1 : vector<8x32xf32> to vector<1x8x32xf32>
    %7 = vector.shape_cast %6 : vector<1x8x32xf32> to vector<1x8x32xf32>
    %8 = vector.broadcast %7 : vector<1x8x32xf32> to vector<8x8x32xf32>
    %9 = vector.shape_cast %3 : vector<8x32xf32> to vector<1x8x32xf32>
    %10 = vector.shape_cast %9 : vector<1x8x32xf32> to vector<1x8x32xf32>
    %11 = vector.broadcast %10 : vector<1x8x32xf32> to vector<8x8x32xf32>
    %12 = vector.shape_cast %5 : vector<8x32xf32> to vector<1x8x32xf32>
    %13 = vector.shape_cast %12 : vector<1x8x32xf32> to vector<1x8x32xf32>
    %14 = vector.broadcast %13 : vector<1x8x32xf32> to vector<8x8x32xf32>
    %c0_8 = arith.constant 0 : index
    %c0_9 = arith.constant 0 : index
    %c0_10 = arith.constant 0 : index
    %15 = vector.load %arg4[%c0_8, %c0_9, %c0_10] : memref<8x32x64xf32, #tpu.memory_space<vmem>>, vector<8x32x64xf32>
    "tpu.trace_start"() <{level = 10 : i32, message = "hsd,hdk->hsk"}> : () -> ()
    %cst = arith.constant dense<0.000000e+00> : vector<8x8x64xf32>
    %16 = tpu.matmul %8, %15, %cst {dimension_numbers = #tpu.dot_dimension_numbers<[2], [1], [1], [2], [0, 0, 0, 1, 1, 2], [0], [0]>} : vector<8x8x32xf32>, vector<8x32x64xf32>, vector<8x8x64xf32> -> vector<8x8x64xf32>
    "tpu.trace_stop"() : () -> ()
    %c0_11 = arith.constant 0 : index
    %c0_12 = arith.constant 0 : index
    %c0_13 = arith.constant 0 : index
    %17 = vector.load %arg5[%c0_11, %c0_12, %c0_13] : memref<8x32x64xf32, #tpu.memory_space<vmem>>, vector<8x32x64xf32>
    "tpu.trace_start"() <{level = 10 : i32, message = "hsd,hdk->hsk"}> : () -> ()
    %cst_14 = arith.constant dense<0.000000e+00> : vector<8x8x64xf32>
    %18 = tpu.matmul %11, %17, %cst_14 {dimension_numbers = #tpu.dot_dimension_numbers<[2], [1], [1], [2], [0, 0, 0, 1, 1, 2], [0], [0]>} : vector<8x8x32xf32>, vector<8x32x64xf32>, vector<8x8x64xf32> -> vector<8x8x64xf32>
    "tpu.trace_stop"() : () -> ()
    %c0_15 = arith.constant 0 : index
    %c0_16 = arith.constant 0 : index
    %c0_17 = arith.constant 0 : index
    %19 = vector.load %arg6[%c0_15, %c0_16, %c0_17] : memref<8x32x64xf32, #tpu.memory_space<vmem>>, vector<8x32x64xf32>
    "tpu.trace_start"() <{level = 10 : i32, message = "hsd,hdk->hsk"}> : () -> ()
    %cst_18 = arith.constant dense<0.000000e+00> : vector<8x8x64xf32>
    %20 = tpu.matmul %14, %19, %cst_18 {dimension_numbers = #tpu.dot_dimension_numbers<[2], [1], [1], [2], [0, 0, 0, 1, 1, 2], [0], [0]>} : vector<8x8x32xf32>, vector<8x32x64xf32>, vector<8x8x64xf32> -> vector<8x8x64xf32>
    "tpu.trace_stop"() : () -> ()
    "tpu.trace_start"() <{level = 10 : i32, message = "hqd,hkd->hqk"}> : () -> ()
    %cst_19 = arith.constant dense<0.000000e+00> : vector<8x8x8xf32>
    %21 = tpu.matmul %16, %18, %cst_19 {dimension_numbers = #tpu.dot_dimension_numbers<[2], [2], [1], [1], [0, 0, 0, 1, 1, 1], [0], [0]>} : vector<8x8x64xf32>, vector<8x8x64xf32>, vector<8x8x8xf32> -> vector<8x8x8xf32>
    "tpu.trace_stop"() : () -> ()
    %cst_20 = arith.constant 1.250000e-01 : f32
    %22 = vector.broadcast %cst_20 : f32 to vector<8x8x8xf32>
    %23 = arith.mulf %21, %22 : vector<8x8x8xf32>
    %cst_21 = arith.constant dense<0xFF800000> : vector<8x8xf32>
    %24 = vector.multi_reduction <maximumf>, %23, %cst_21 [2] : vector<8x8x8xf32> to vector<8x8xf32>
    %25 = vector.shape_cast %24 : vector<8x8xf32> to vector<8x8x1xf32>
    %26 = vector.broadcast %25 : vector<8x8x1xf32> to vector<8x8x8xf32>
    %27 = arith.subf %23, %26 : vector<8x8x8xf32>
    %28 = math.exp %27 : vector<8x8x8xf32>
    %cst_22 = arith.constant dense<0.000000e+00> : vector<8x8xf32>
    %29 = vector.multi_reduction <add>, %28, %cst_22 [2] : vector<8x8x8xf32> to vector<8x8xf32>
    %30 = vector.shape_cast %29 : vector<8x8xf32> to vector<8x8x1xf32>
    %31 = vector.broadcast %30 : vector<8x8x1xf32> to vector<8x8x8xf32>
    %32 = arith.divf %28, %31 : vector<8x8x8xf32>
    %c0_23 = arith.constant 0 : index
    %c0_24 = arith.constant 0 : index
    %c0_25 = arith.constant 0 : index
    %c0_26 = arith.constant 0 : index
    %33 = vector.load %arg9[%c0_23, %c0_24, %c0_25, %c0_26] : memref<1x8x8x8xf32, #tpu.memory_space<vmem>>, vector<1x8x8x8xf32>
    %34 = vector.shape_cast %33 : vector<1x8x8x8xf32> to vector<8x8x8xf32>
    %35 = vector.shape_cast %32 : vector<8x8x8xf32> to vector<1x8x8x8xf32>
    tpu.vector_store %arg9[%c0_23, %c0_24, %c0_25, %c0_26], %35 {strides = array<i32>} : memref<1x8x8x8xf32, #tpu.memory_space<vmem>>, vector<1x8x8x8xf32>,
    "tpu.trace_start"() <{level = 10 : i32, message = "hqk,hkd->hqd"}> : () -> ()
    %cst_27 = arith.constant dense<0.000000e+00> : vector<8x8x64xf32>
    %36 = tpu.matmul %32, %20, %cst_27 {dimension_numbers = #tpu.dot_dimension_numbers<[2], [1], [1], [2], [0, 0, 0, 1, 1, 2], [0], [0]>} : vector<8x8x8xf32>, vector<8x8x64xf32>, vector<8x8x64xf32> -> vector<8x8x64xf32>
    "tpu.trace_stop"() : () -> ()
    %c0_28 = arith.constant 0 : index
    %c0_29 = arith.constant 0 : index
    %c0_30 = arith.constant 0 : index
    %37 = vector.load %arg7[%c0_28, %c0_29, %c0_30] : memref<8x64x32xf32, #tpu.memory_space<vmem>>, vector<8x64x32xf32>
    "tpu.trace_start"() <{level = 10 : i32, message = "hqv,hvd->hqd"}> : () -> ()
    %cst_31 = arith.constant dense<0.000000e+00> : vector<8x8x32xf32>
    %38 = tpu.matmul %36, %37, %cst_31 {dimension_numbers = #tpu.dot_dimension_numbers<[2], [1], [1], [2], [0, 0, 0, 1, 1, 2], [0], [0]>} : vector<8x8x64xf32>, vector<8x64x32xf32>, vector<8x8x32xf32> -> vector<8x8x32xf32>
    "tpu.trace_stop"() : () -> ()
    %cst_32 = arith.constant dense<0.000000e+00> : vector<8x32xf32>
    %39 = vector.multi_reduction <add>, %38, %cst_32 [0] : vector<8x8x32xf32> to vector<8x32xf32>
    %40 = arith.addf %39, %1 : vector<8x32xf32>
    %cst_33 = arith.constant dense<0.000000e+00> : vector<8xf32>
    %41 = vector.multi_reduction <add>, %40, %cst_33 [1] : vector<8x32xf32> to vector<8xf32>
    %42 = vector.shape_cast %41 : vector<8xf32> to vector<8x1xf32>
    %cst_34 = arith.constant 3.200000e+01 : f32
    %43 = vector.broadcast %cst_34 : f32 to vector<8x1xf32>
    %44 = arith.divf %42, %43 : vector<8x1xf32>
    %45 = vector.broadcast %44 : vector<8x1xf32> to vector<8x32xf32>
    %46 = arith.subf %40, %45 : vector<8x32xf32>
    %47 = arith.mulf %46, %46 : vector<8x32xf32>
    %cst_35 = arith.constant dense<0.000000e+00> : vector<8xf32>
    %48 = vector.multi_reduction <add>, %47, %cst_35 [1] : vector<8x32xf32> to vector<8xf32>
    %49 = vector.shape_cast %48 : vector<8xf32> to vector<8x1xf32>
    %cst_36 = arith.constant 3.200000e+01 : f32
    %50 = vector.broadcast %cst_36 : f32 to vector<8x1xf32>
    %51 = arith.divf %49, %50 : vector<8x1xf32>
    %52 = vector.broadcast %44 : vector<8x1xf32> to vector<8x32xf32>
    %53 = arith.subf %40, %52 : vector<8x32xf32>
    %cst_37 = arith.constant 9.99999974E-6 : f32
    %54 = vector.broadcast %cst_37 : f32 to vector<8x1xf32>
    %55 = arith.addf %51, %54 : vector<8x1xf32>
    %56 = math.rsqrt %55 : vector<8x1xf32>
    %57 = vector.broadcast %56 : vector<8x1xf32> to vector<8x32xf32>
    %58 = arith.mulf %53, %57 : vector<8x32xf32>
    %c0_38 = arith.constant 0 : index
    %c0_39 = arith.constant 0 : index
    %c0_40 = arith.constant 0 : index
    %59 = vector.load %arg8[%c0_38, %c0_39, %c0_40] : memref<1x8x32xf32, #tpu.memory_space<vmem>>, vector<1x8x32xf32>
    %60 = vector.shape_cast %59 : vector<1x8x32xf32> to vector<8x32xf32>
    %61 = vector.shape_cast %58 : vector<8x32xf32> to vector<1x8x32xf32>
    tpu.vector_store %arg8[%c0_38, %c0_39, %c0_40], %61 {strides = array<i32>} : memref<1x8x32xf32, #tpu.memory_space<vmem>>, vector<1x8x32xf32>,
    return
  }
  func.func @transform_0(%arg0: i32) -> (i32, i32, i32) {
    %c0_i32 = arith.constant 0 : i32
    %c0_i32_0 = arith.constant 0 : i32
    %c0_i32_1 = arith.constant 0 : i32
    return %arg0, %c0_i32, %c0_i32_0 : i32, i32, i32
  }
  func.func @transform_1(%arg0: i32) -> (i32, i32, i32) {
    %c0_i32 = arith.constant 0 : i32
    %c0_i32_0 = arith.constant 0 : i32
    %c0_i32_1 = arith.constant 0 : i32
    return %arg0, %c0_i32, %c0_i32_0 : i32, i32, i32
  }
  func.func @transform_2(%arg0: i32) -> (i32, i32, i32) {
    %c0_i32 = arith.constant 0 : i32
    %c0_i32_0 = arith.constant 0 : i32
    %c0_i32_1 = arith.constant 0 : i32
    return %arg0, %c0_i32, %c0_i32_0 : i32, i32, i32
  }
  func.func @transform_3(%arg0: i32) -> (i32, i32, i32) {
    %c0_i32 = arith.constant 0 : i32
    %c0_i32_0 = arith.constant 0 : i32
    %c0_i32_1 = arith.constant 0 : i32
    %c0_i32_2 = arith.constant 0 : i32
    return %c0_i32, %c0_i32_0, %c0_i32_1 : i32, i32, i32
  }
  func.func @transform_4(%arg0: i32) -> (i32, i32, i32) {
    %c0_i32 = arith.constant 0 : i32
    %c0_i32_0 = arith.constant 0 : i32
    %c0_i32_1 = arith.constant 0 : i32
    %c0_i32_2 = arith.constant 0 : i32
    return %c0_i32, %c0_i32_0, %c0_i32_1 : i32, i32, i32
  }
  func.func @transform_5(%arg0: i32) -> (i32, i32, i32) {
    %c0_i32 = arith.constant 0 : i32
    %c0_i32_0 = arith.constant 0 : i32
    %c0_i32_1 = arith.constant 0 : i32
    %c0_i32_2 = arith.constant 0 : i32
    return %c0_i32, %c0_i32_0, %c0_i32_1 : i32, i32, i32
  }
  func.func @transform_6(%arg0: i32) -> (i32, i32, i32) {
    %c0_i32 = arith.constant 0 : i32
    %c0_i32_0 = arith.constant 0 : i32
    %c0_i32_1 = arith.constant 0 : i32
    %c0_i32_2 = arith.constant 0 : i32
    return %c0_i32, %c0_i32_0, %c0_i32_1 : i32, i32, i32
  }
  func.func @transform_7(%arg0: i32) -> (i32, i32, i32) {
    %c0_i32 = arith.constant 0 : i32
    %c0_i32_0 = arith.constant 0 : i32
    %c0_i32_1 = arith.constant 0 : i32
    return %arg0, %c0_i32, %c0_i32_0 : i32, i32, i32
  }
  func.func @transform_8(%arg0: i32) -> (i32, i32, i32, i32) {
    %c0_i32 = arith.constant 0 : i32
    %c0_i32_0 = arith.constant 0 : i32
    %c0_i32_1 = arith.constant 0 : i32
    %c0_i32_2 = arith.constant 0 : i32
    return %arg0, %c0_i32, %c0_i32_0, %c0_i32_1 : i32, i32, i32, i32
  }
}

</mosaic_0001>

<llo_original>
// kernel: tpu_custom_call.1
$region0: #{tpu_custom_call.1}
  #allocation0 [shape = 'u32[]', space=smem, size = 0x4, offset = 0x4, fixed_abs, tag = 'smem constant byte address 0x4 - core index']
  #allocation1 [shape = 'u32[144,128]{1,0:T(1,128)}', space=vmem, size = 0x12000, scoped, tag = 'internal scratch']
  %s0 = inlined_call_operand.hbm [shape: f32[2,8,32], index: 0, kind: input, shape index: {}]
  %s1 = inlined_call_operand.hbm [shape: f32[2,8,32], index: 1, kind: input, shape index: {}]
  %s2 = inlined_call_operand.hbm [shape: f32[2,8,32], index: 2, kind: input, shape index: {}]
  %s3 = inlined_call_operand.vmem [shape: f32[8,32,64], index: 3, kind: input, shape index: {}]
  %s4 = inlined_call_operand.vmem [shape: f32[8,32,64], index: 4, kind: input, shape index: {}]
  %s5 = inlined_call_operand.vmem [shape: f32[8,32,64], index: 5, kind: input, shape index: {}]
  %s6 = inlined_call_operand.vmem [shape: f32[8,64,32], index: 6, kind: input, shape index: {}]
  %s7 = inlined_call_operand.hbm [shape: f32[2,8,32], index: 7, kind: output, shape index: {0}]
  %s8 = inlined_call_operand.hbm [shape: f32[2,8,8,8], index: 8, kind: output, shape index: {1}]
  %9 = xla_tuple %s7, %s8
  %s10 = sld [smem:[#allocation0]]
  $region81: #{tpu_custom_call.1} parent=0
    _
  %s12 = ssub.s32 1, %s10
  %s13 = scalar_select 0, %s12, %s10
  $region1: #{tpu_custom_call.1} parent=0
    #allocation2 [shape = 'u8[8192]{0}', space=vmem, size = 0x2000, scoped, tag = 'input window, operand 0']
    #allocation3 [shape = 's32[2]{0}', space=sflag, size = 0x8, scoped, tag = 'scoped memory for tpu_custom_call.1']
    #allocation4 [shape = 's32[2]{0}', space=sflag, size = 0x8, scoped, tag = 'scoped memory for tpu_custom_call.1']
    #allocation5 [shape = 'u8[8192]{0}', space=vmem, size = 0x2000, scoped, tag = 'input window, operand 1']
    #allocation6 [shape = 's32[2]{0}', space=sflag, size = 0x8, scoped, tag = 'scoped memory for tpu_custom_call.1']
    #allocation7 [shape = 'u8[8192]{0}', space=vmem, size = 0x2000, scoped, tag = 'input window, operand 2']
    #allocation8 [shape = 'u8[8192]{0}', space=vmem, size = 0x2000, scoped, tag = 'output window, operand 0']
    #allocation9 [shape = 'u8[65536]{0}', space=vmem, size = 0x10000, scoped, tag = 'output window, operand 1']
    #allocation10 [shape = 's32[2]{0}', space=sflag, size = 0x8, scoped, tag = 'scoped memory for tpu_custom_call.1']
    %14 = vsyncpa [#allocation3], 0
    %s15 = scalar_lea.sflag [#allocation3], 1
    %16 = vsyncpa %s15, 0
    %17 = vsyncpa [#allocation6], 0
    %s18 = scalar_lea.sflag [#allocation6], 1
    %19 = vsyncpa %s18, 0
    %20 = vsyncpa [#allocation4], 0
    %s21 = scalar_lea.sflag [#allocation4], 1
    %22 = vsyncpa %s21, 0
    %23 = vsyncpa [#allocation10], 0
    %s24 = scalar_lea.sflag [#allocation10], 1
    %25 = vsyncpa %s24, 0
    loop: start=0, step=1, limit=4
    $region2: #{tpu_custom_call.1} parent=1 // loop_pre_header
      _
    $region3: #{tpu_custom_call.1} parent=1 // loop_header
      %s27 = sphi 0, %s31
      %p28 = scmp.ge.s32.totalorder %s27, 4
      %s37 = sphi 0, %s39
      %s40 = sphi 0, %s37
      %s41 = sphi 0, %s40
      %s57 = sphi 0, %s41
      %s63 = sphi 0, %s65
      %s66 = sphi 0, %s63
      %s67 = sphi 0, %s66
      %s83 = sphi 0, %s67
      %s89 = sphi 0, %s91
      %s92 = sphi 0, %s89
      %s93 = sphi 0, %s92
      %s109 = sphi 0, %s93
      %s113 = sphi 0, %s113
      %s115 = sphi 0, %s113
      %s116 = sphi 0, %s115
      %s130 = sphi 0, %s116
      %s134 = sphi 0, %s134
      %s136 = sphi 0, %s134
      %s137 = sphi 0, %s136
      %s151 = sphi 0, %s137
      %s155 = sphi 0, %s155
      %s157 = sphi 0, %s155
      %s158 = sphi 0, %s157
      %s172 = sphi 0, %s158
      %s176 = sphi 0, %s176
      %s178 = sphi 0, %s176
      %s179 = sphi 0, %s178
      %s193 = sphi 0, %s179
      %s199 = sphi 0, %s201
      %s202 = sphi 0, %s199
      %s203 = sphi 0, %s202
      %s219 = sphi 0, %s203
      %s225 = sphi 0, %s227
      %s228 = sphi 0, %s225
      %s229 = sphi 0, %s228
      %s245 = sphi 0, %s229
    $region4: #{tpu_custom_call.1} parent=1 // loop_header_branch
      %30 = sbr.rel (%p28) target = $region8
    $region5: #{tpu_custom_call.1} parent=1 // loop_body
      %s32 = ssub.s32 %s27, 1
      %s33 = ssub.s32 %s27, 2
      %s34 = sadd.s32 %s27, 1
      %s35 = ssub.s32 %s27, %s34
      %p36 = scmp.eq.s32.totalorder %s35, 0
      %s38 = sadd.s32 %s37, 1
      %s39 = scalar_select %p36, %s37, %s38
      %p42 = pneg %p36
      %p43 = scmp.eq.s32.totalorder %s27, 1
      %p44 = por %p42, %p43
      %p45 = scmp.ne.s32.totalorder %s37, %s40
      %p46 = scmp.eq.s32.totalorder %s27, 0
      %p47 = por %p45, %p46
      %p48 = scmp.ne.s32.totalorder %s37, %s40
      %p49 = scmp.eq.s32.totalorder %s32, 1
      %p50 = por %p48, %p49
      %p51 = scmp.ne.s32.totalorder %s40, %s41
      %p52 = scmp.eq.s32.totalorder %s32, 0
      %p53 = por %p51, %p52
      %p54 = scmp.ne.s32.totalorder %s40, %s41
      %p55 = scmp.eq.s32.totalorder %s33, 1
      %p56 = por %p54, %p55
      %p58 = scmp.ne.s32.totalorder %s41, %s57
      %p59 = scmp.eq.s32.totalorder %s33, 0
      %p60 = por %p58, %p59
      %s61 = ssub.s32 %s27, %s34
      %p62 = scmp.eq.s32.totalorder %s61, 0
      %s64 = sadd.s32 %s63, 1
      %s65 = scalar_select %p62, %s63, %s64
      %p68 = pneg %p62
      %p69 = scmp.eq.s32.totalorder %s27, 1
      %p70 = por %p68, %p69
      %p71 = scmp.ne.s32.totalorder %s63, %s66
      %p72 = scmp.eq.s32.totalorder %s27, 0
      %p73 = por %p71, %p72
      %p74 = scmp.ne.s32.totalorder %s63, %s66
      %p75 = scmp.eq.s32.totalorder %s32, 1
      %p76 = por %p74, %p75
      %p77 = scmp.ne.s32.totalorder %s66, %s67
      %p78 = scmp.eq.s32.totalorder %s32, 0
      %p79 = por %p77, %p78
      %p80 = scmp.ne.s32.totalorder %s66, %s67
      %p81 = scmp.eq.s32.totalorder %s33, 1
      %p82 = por %p80, %p81
      %p84 = scmp.ne.s32.totalorder %s67, %s83
      %p85 = scmp.eq.s32.totalorder %s33, 0
      %p86 = por %p84, %p85
      %s87 = ssub.s32 %s27, %s34
      %p88 = scmp.eq.s32.totalorder %s87, 0
      %s90 = sadd.s32 %s89, 1
      %s91 = scalar_select %p88, %s89, %s90
      %p94 = pneg %p88
      %p95 = scmp.eq.s32.totalorder %s27, 1
      %p96 = por %p94, %p95
      %p97 = scmp.ne.s32.totalorder %s89, %s92
      %p98 = scmp.eq.s32.totalorder %s27, 0
      %p99 = por %p97, %p98
      %p100 = scmp.ne.s32.totalorder %s89, %s92
      %p101 = scmp.eq.s32.totalorder %s32, 1
      %p102 = por %p100, %p101
      %p103 = scmp.ne.s32.totalorder %s92, %s93
      %p104 = scmp.eq.s32.totalorder %s32, 0
      %p105 = por %p103, %p104
      %p106 = scmp.ne.s32.totalorder %s92, %s93
      %p107 = scmp.eq.s32.totalorder %s33, 1
      %p108 = por %p106, %p107
      %p110 = scmp.ne.s32.totalorder %s93, %s109
      %p111 = scmp.eq.s32.totalorder %s33, 0
      %p112 = por %p110, %p111
      %s114 = sadd.s32 %s113, 1
      %p117 = scmp.eq.s32.totalorder %s27, 1
      %p118 = scmp.ne.s32.totalorder %s113, %s115
      %p119 = scmp.eq.s32.totalorder %s27, 0
      %p120 = por %p118, %p119
      %p121 = scmp.ne.s32.totalorder %s113, %s115
      %p122 = scmp.eq.s32.totalorder %s32, 1
      %p123 = por %p121, %p122
      %p124 = scmp.ne.s32.totalorder %s115, %s116
      %p125 = scmp.eq.s32.totalorder %s32, 0
      %p126 = por %p124, %p125
      %p127 = scmp.ne.s32.totalorder %s115, %s116
      %p128 = scmp.eq.s32.totalorder %s33, 1
      %p129 = por %p127, %p128
      %p131 = scmp.ne.s32.totalorder %s116, %s130
      %p132 = scmp.eq.s32.totalorder %s33, 0
      %p133 = por %p131, %p132
      %s135 = sadd.s32 %s134, 1
      %p138 = scmp.eq.s32.totalorder %s27, 1
      %p139 = scmp.ne.s32.totalorder %s134, %s136
      %p140 = scmp.eq.s32.totalorder %s27, 0
      %p141 = por %p139, %p140
      %p142 = scmp.ne.s32.totalorder %s134, %s136
      %p143 = scmp.eq.s32.totalorder %s32, 1
      %p144 = por %p142, %p143
      %p145 = scmp.ne.s32.totalorder %s136, %s137
      %p146 = scmp.eq.s32.totalorder %s32, 0
      %p147 = por %p145, %p146
      %p148 = scmp.ne.s32.totalorder %s136, %s137
      %p149 = scmp.eq.s32.totalorder %s33, 1
      %p150 = por %p148, %p149
      %p152 = scmp.ne.s32.totalorder %s137, %s151
      %p153 = scmp.eq.s32.totalorder %s33, 0
      %p154 = por %p152, %p153
      %s156 = sadd.s32 %s155, 1
      %p159 = scmp.eq.s32.totalorder %s27, 1
      %p160 = scmp.ne.s32.totalorder %s155, %s157
      %p161 = scmp.eq.s32.totalorder %s27, 0
      %p162 = por %p160, %p161
      %p163 = scmp.ne.s32.totalorder %s155, %s157
      %p164 = scmp.eq.s32.totalorder %s32, 1
      %p165 = por %p163, %p164
      %p166 = scmp.ne.s32.totalorder %s157, %s158
      %p167 = scmp.eq.s32.totalorder %s32, 0
      %p168 = por %p166, %p167
      %p169 = scmp.ne.s32.totalorder %s157, %s158
      %p170 = scmp.eq.s32.totalorder %s33, 1
      %p171 = por %p169, %p170
      %p173 = scmp.ne.s32.totalorder %s158, %s172
      %p174 = scmp.eq.s32.totalorder %s33, 0
      %p175 = por %p173, %p174
      %s177 = sadd.s32 %s176, 1
      %p180 = scmp.eq.s32.totalorder %s27, 1
      %p181 = scmp.ne.s32.totalorder %s176, %s178
      %p182 = scmp.eq.s32.totalorder %s27, 0
      %p183 = por %p181, %p182
      %p184 = scmp.ne.s32.totalorder %s176, %s178
      %p185 = scmp.eq.s32.totalorder %s32, 1
      %p186 = por %p184, %p185
      %p187 = scmp.ne.s32.totalorder %s178, %s179
      %p188 = scmp.eq.s32.totalorder %s32, 0
      %p189 = por %p187, %p188
      %p190 = scmp.ne.s32.totalorder %s178, %s179
      %p191 = scmp.eq.s32.totalorder %s33, 1
      %p192 = por %p190, %p191
      %p194 = scmp.ne.s32.totalorder %s179, %s193
      %p195 = scmp.eq.s32.totalorder %s33, 0
      %p196 = por %p194, %p195
      %s197 = ssub.s32 %s27, %s34
      %p198 = scmp.eq.s32.totalorder %s197, 0
      %s200 = sadd.s32 %s199, 1
      %s201 = scalar_select %p198, %s199, %s200
      %p204 = pneg %p198
      %p205 = scmp.eq.s32.totalorder %s27, 1
      %p206 = por %p204, %p205
      %p207 = scmp.ne.s32.totalorder %s199, %s202
      %p208 = scmp.eq.s32.totalorder %s27, 0
      %p209 = por %p207, %p208
      %p210 = scmp.ne.s32.totalorder %s199, %s202
      %p211 = scmp.eq.s32.totalorder %s32, 1
      %p212 = por %p210, %p211
      %p213 = scmp.ne.s32.totalorder %s202, %s203
      %p214 = scmp.eq.s32.totalorder %s32, 0
      %p215 = por %p213, %p214
      %p216 = scmp.ne.s32.totalorder %s202, %s203
      %p217 = scmp.eq.s32.totalorder %s33, 1
      %p218 = por %p216, %p217
      %p220 = scmp.ne.s32.totalorder %s203, %s219
      %p221 = scmp.eq.s32.totalorder %s33, 0
      %p222 = por %p220, %p221
      %s223 = ssub.s32 %s27, %s34
      %p224 = scmp.eq.s32.totalorder %s223, 0
      %s226 = sadd.s32 %s225, 1
      %s227 = scalar_select %p224, %s225, %s226
      %p230 = pneg %p224
      %p231 = scmp.eq.s32.totalorder %s27, 1
      %p232 = por %p230, %p231
      %p233 = scmp.ne.s32.totalorder %s225, %s228
      %p234 = scmp.eq.s32.totalorder %s27, 0
      %p235 = por %p233, %p234
      %p236 = scmp.ne.s32.totalorder %s225, %s228
      %p237 = scmp.eq.s32.totalorder %s32, 1
      %p238 = por %p236, %p237
      %p239 = scmp.ne.s32.totalorder %s228, %s229
      %p240 = scmp.eq.s32.totalorder %s32, 0
      %p241 = por %p239, %p240
      %p242 = scmp.ne.s32.totalorder %s228, %s229
      %p243 = scmp.eq.s32.totalorder %s33, 1
      %p244 = por %p242, %p243
      %p246 = scmp.ne.s32.totalorder %s229, %s245
      %p247 = scmp.eq.s32.totalorder %s33, 0
      %p248 = por %p246, %p247
      %p249 = scmp.le.s32.totalorder 1, %s27
      %p250 = scmp.lt.s32.totalorder %s27, 3
      %p251 = pnand %p249, %p250
      %p252 = pneg %p251
      // Predicated region
      $region9: #{tpu_custom_call.1} parent=5 // pred_check
        _
      $region10: #{tpu_custom_call.1} parent=5 // pred_check_branch
        %254 = sbr.rel (%p251) target = $region12
      $region11: #{tpu_custom_call.1} parent=5 // pred_region
        %s255 = ssub.s32 %s27, 1
        // Predicated region
        $region13: #{tpu_custom_call.1} parent=11 // pred_check
          %p256 = pneg %p126
        $region14: #{tpu_custom_call.1} parent=11 // pred_check_branch
          %258 = sbr.rel (%p256) target = $region16
        $region15: #{tpu_custom_call.1} parent=11 // pred_region
          _
        $region16: #{tpu_custom_call.1} parent=11 // pred_fallthru
          _
        // Predicated region
        $region17: #{tpu_custom_call.1} parent=11 // pred_check
          %p259 = pneg %p147
        $region18: #{tpu_custom_call.1} parent=11 // pred_check_branch
          %261 = sbr.rel (%p259) target = $region20
        $region19: #{tpu_custom_call.1} parent=11 // pred_region
          _
        $region20: #{tpu_custom_call.1} parent=11 // pred_fallthru
          _
        // Predicated region
        $region21: #{tpu_custom_call.1} parent=11 // pred_check
          %p262 = pneg %p168
        $region22: #{tpu_custom_call.1} parent=11 // pred_check_branch
          %264 = sbr.rel (%p262) target = $region24
        $region23: #{tpu_custom_call.1} parent=11 // pred_region
          _
        $region24: #{tpu_custom_call.1} parent=11 // pred_fallthru
          _
        // Predicated region
        $region25: #{tpu_custom_call.1} parent=11 // pred_check
          %p265 = pneg %p189
        $region26: #{tpu_custom_call.1} parent=11 // pred_check_branch
          %267 = sbr.rel (%p265) target = $region28
        $region27: #{tpu_custom_call.1} parent=11 // pred_region
          _
        $region28: #{tpu_custom_call.1} parent=11 // pred_fallthru
          _
      $region12: #{tpu_custom_call.1} parent=5 // pred_fallthru
        _
      %p268 = scmp.lt.s32.totalorder %s27, 2
      // Predicated region
      $region29: #{tpu_custom_call.1} parent=5 // pred_check
        %p269 = pneg %p268
      $region30: #{tpu_custom_call.1} parent=5 // pred_check_branch
        %271 = sbr.rel (%p269) target = $region32
      $region31: #{tpu_custom_call.1} parent=5 // pred_region
        // Predicated region
        $region33: #{tpu_custom_call.1} parent=31 // pred_check
          %p272 = pneg %p47
        $region34: #{tpu_custom_call.1} parent=31 // pred_check_branch
          %274 = sbr.rel (%p272) target = $region36
        $region35: #{tpu_custom_call.1} parent=31 // pred_region
          %s275 = sand.u32 %s37, 1
          %s276 = scalar_lea.sflag [#allocation3], %s275
          %s277 = sand.u32 %s37, 1
          %s278 = smul.addr %s277, 8
          %s279 = scalar_lea.vmem [#allocation2], %s278
          %s281 = ssub.s32 128, 128
          %282 = vsyncadd %s276, %s281
          %s283 = smul.addr %s27, 128
          %s284 = scalar_lea.hbm %s0, %s283
          %s286 = sshll.u32 %s279, 4
          %s287 = int_to_ptr.vmem [resolvable:$true] %s286
          %289 = dma.hbm_to_vmem [thread:$0]  %s284, 128, %s287, %s276
        $region36: #{tpu_custom_call.1} parent=31 // pred_fallthru
          _
        // Predicated region
        $region37: #{tpu_custom_call.1} parent=31 // pred_check
          %p290 = pneg %p73
        $region38: #{tpu_custom_call.1} parent=31 // pred_check_branch
          %292 = sbr.rel (%p290) target = $region40
        $region39: #{tpu_custom_call.1} parent=31 // pred_region
          %s293 = sand.u32 %s27, 1
          %s294 = scalar_lea.sflag [#allocation6], %s293
          %s295 = sand.u32 %s63, 1
          %s296 = smul.addr %s295, 8
          %s297 = scalar_lea.vmem [#allocation5], %s296
          %s299 = ssub.s32 128, 128
          %300 = vsyncadd %s294, %s299
          %s301 = smul.addr %s27, 128
          %s302 = scalar_lea.hbm %s1, %s301
          %s304 = sshll.u32 %s297, 4
          %s305 = int_to_ptr.vmem [resolvable:$true] %s304
          %307 = dma.hbm_to_vmem [thread:$0]  %s302, 128, %s305, %s294
        $region40: #{tpu_custom_call.1} parent=31 // pred_fallthru
          _
        // Predicated region
        $region41: #{tpu_custom_call.1} parent=31 // pred_check
          %p308 = pneg %p99
        $region42: #{tpu_custom_call.1} parent=31 // pred_check_branch
          %310 = sbr.rel (%p308) target = $region44
        $region43: #{tpu_custom_call.1} parent=31 // pred_region
          %s311 = sand.u32 %s27, 1
          %s312 = scalar_lea.sflag [#allocation6], %s311
          %s313 = sand.u32 %s89, 1
          %s314 = smul.addr %s313, 8
          %s315 = scalar_lea.vmem [#allocation7], %s314
          %s317 = ssub.s32 128, 128
          %318 = vsyncadd %s312, %s317
          %s319 = smul.addr %s27, 128
          %s320 = scalar_lea.hbm %s2, %s319
          %s322 = sshll.u32 %s315, 4
          %s323 = int_to_ptr.vmem [resolvable:$true] %s322
          %325 = dma.hbm_to_vmem [thread:$0]  %s320, 128, %s323, %s312
        $region44: #{tpu_custom_call.1} parent=31 // pred_fallthru
          _
      $region32: #{tpu_custom_call.1} parent=5 // pred_fallthru
        _
      %p326 = scmp.le.s32.totalorder 1, %s27
      %p327 = scmp.lt.s32.totalorder %s27, 3
      %p328 = pnand %p326, %p327
      %p329 = pneg %p328
      // Predicated region
      $region45: #{tpu_custom_call.1} parent=5 // pred_check
        _
      $region46: #{tpu_custom_call.1} parent=5 // pred_check_branch
        %331 = sbr.rel (%p328) target = $region48
      $region47: #{tpu_custom_call.1} parent=5 // pred_region
        %s332 = ssub.s32 %s27, 1
        %s333 = sand.u32 %s40, 1
        %s334 = scalar_lea.sflag [#allocation3], %s333
        %s335 = sand.u32 %s40, 1
        %s336 = smul.addr %s335, 8
        %s337 = scalar_lea.vmem [#allocation2], %s336
        // Predicated region
        $region49: #{tpu_custom_call.1} parent=47 // pred_check
          %p338 = pneg %p53
        $region50: #{tpu_custom_call.1} parent=47 // pred_check_branch
          %340 = sbr.rel (%p338) target = $region52
        $region51: #{tpu_custom_call.1} parent=47 // pred_region
          %341 = dma.done %s334, 128
        $region52: #{tpu_custom_call.1} parent=47 // pred_fallthru
          _
        %s342 = sand.u32 %s32, 1
        %s343 = scalar_lea.sflag [#allocation6], %s342
        %s344 = sand.u32 %s66, 1
        %s345 = smul.addr %s344, 8
        %s346 = scalar_lea.vmem [#allocation5], %s345
        // Predicated region
        $region53: #{tpu_custom_call.1} parent=47 // pred_check
          %p347 = pneg %p79
        $region54: #{tpu_custom_call.1} parent=47 // pred_check_branch
          %349 = sbr.rel (%p347) target = $region56
        $region55: #{tpu_custom_call.1} parent=47 // pred_region
          %350 = dma.done %s343, 128
        $region56: #{tpu_custom_call.1} parent=47 // pred_fallthru
          _
        %s351 = sand.u32 %s32, 1
        %s352 = scalar_lea.sflag [#allocation6], %s351
        %s353 = sand.u32 %s92, 1
        %s354 = smul.addr %s353, 8
        %s355 = scalar_lea.vmem [#allocation7], %s354
        // Predicated region
        $region57: #{tpu_custom_call.1} parent=47 // pred_check
          %p356 = pneg %p105
        $region58: #{tpu_custom_call.1} parent=47 // pred_check_branch
          %358 = sbr.rel (%p356) target = $region60
        $region59: #{tpu_custom_call.1} parent=47 // pred_region
          %359 = dma.done %s352, 128
        $region60: #{tpu_custom_call.1} parent=47 // pred_fallthru
          _
        %s360 = sand.u32 %s40, 1
        %s361 = scalar_lea.sflag [#allocation3], %s360
        %s362 = sand.u32 %s40, 1
        %s363 = smul.addr %s362, 8
        %s364 = scalar_lea.vmem [#allocation2], %s363
        %p365 = pneg %p53
        %p366 = pneg %p50
        %s367 = sand.u32 %s32, 1
        %s368 = scalar_lea.sflag [#allocation6], %s367
        %s369 = sand.u32 %s66, 1
        %s370 = smul.addr %s369, 8
        %s371 = scalar_lea.vmem [#allocation5], %s370
        %p372 = pneg %p79
        %p373 = pneg %p76
        %s374 = sand.u32 %s32, 1
        %s375 = scalar_lea.sflag [#allocation6], %s374
        %s376 = sand.u32 %s92, 1
        %s377 = smul.addr %s376, 8
        %s378 = scalar_lea.vmem [#allocation7], %s377
        %p379 = pneg %p105
        %p380 = pneg %p102
        %p381 = pneg %p126
        %p382 = pneg %p123
        %p383 = pneg %p147
        %p384 = pneg %p144
        %p385 = pneg %p168
        %p386 = pneg %p165
        %p387 = pneg %p189
        %p388 = pneg %p186
        %p389 = pneg %p215
        %p390 = pneg %p212
        %s391 = sand.u32 %s202, 1
        %s392 = scalar_lea.sflag [#allocation4], %s391
        %s393 = sand.u32 %s202, 1
        %s394 = smul.addr %s393, 8
        %s395 = scalar_lea.vmem [#allocation8], %s394
        %p396 = pneg %p241
        %p397 = pneg %p238
        %s398 = sand.u32 %s228, 1
        %s399 = scalar_lea.sflag [#allocation10], %s398
        %s400 = sand.u32 %s228, 1
        %s401 = smul.addr %s400, 64
        %s402 = scalar_lea.vmem [#allocation9], %s401
        %v403 = vld [vmem:[%s337] sm:$0xff]
        %v404 = vld [vmem:[%s346] sm:$0xff]
        %v405 = vld [vmem:[%s355] sm:$0xff]
        %v406 = vld [vmem:[%s3] sm:$0xff]
        %v407 = vld [vmem:[%s3 + $0x8] sm:$0xff]
        %v408 = vld [vmem:[%s3 + $0x10] sm:$0xff]
        %v409 = vld [vmem:[%s3 + $0x18] sm:$0xff]
        %v410 = vld [vmem:[%s3 + $0x20] sm:$0xff]
        %v411 = vld [vmem:[%s3 + $0x28] sm:$0xff]
        %v412 = vld [vmem:[%s3 + $0x30] sm:$0xff]
        %v413 = vld [vmem:[%s3 + $0x38] sm:$0xff]
        %v414 = vld [vmem:[%s3 + $0x40] sm:$0xff]
        %v415 = vld [vmem:[%s3 + $0x48] sm:$0xff]
        %v416 = vld [vmem:[%s3 + $0x50] sm:$0xff]
        %v417 = vld [vmem:[%s3 + $0x58] sm:$0xff]
        %v418 = vld [vmem:[%s3 + $0x60] sm:$0xff]
        %v419 = vld [vmem:[%s3 + $0x68] sm:$0xff]
        %v420 = vld [vmem:[%s3 + $0x70] sm:$0xff]
        %v421 = vld [vmem:[%s3 + $0x78] sm:$0xff]
        %v422 = vld [vmem:[%s3 + $0x80] sm:$0xff]
        %v423 = vld [vmem:[%s3 + $0x88] sm:$0xff]
        %v424 = vld [vmem:[%s3 + $0x90] sm:$0xff]
        %v425 = vld [vmem:[%s3 + $0x98] sm:$0xff]
        %v426 = vld [vmem:[%s3 + $0xa0] sm:$0xff]
        %v427 = vld [vmem:[%s3 + $0xa8] sm:$0xff]
        %v428 = vld [vmem:[%s3 + $0xb0] sm:$0xff]
        %v429 = vld [vmem:[%s3 + $0xb8] sm:$0xff]
        %v430 = vld [vmem:[%s3 + $0xc0] sm:$0xff]
        %v431 = vld [vmem:[%s3 + $0xc8] sm:$0xff]
        %v432 = vld [vmem:[%s3 + $0xd0] sm:$0xff]
        %v433 = vld [vmem:[%s3 + $0xd8] sm:$0xff]
        %v434 = vld [vmem:[%s3 + $0xe0] sm:$0xff]
        %v435 = vld [vmem:[%s3 + $0xe8] sm:$0xff]
        %v436 = vld [vmem:[%s3 + $0xf0] sm:$0xff]
        %v437 = vld [vmem:[%s3 + $0xf8] sm:$0xff]
        %vm438 = vcmask 261120
        %v440 = vsel %vm438, %v403, 0
        %442 = vmatprep.subr.mxu0 0.0
        %443 = vmatpush1.msra.mxu0 0.0
        %444 = vmatprep.subr.mxu0 0.0
        %445 = vmatpush1.msra.mxu0 0.0
        %446 = vmatprep.subr.mxu0 0.0
        %447 = vmatpush1.msra.mxu0 0.0
        %448 = vmatprep.subr.mxu0 0.0
        %449 = vmatpush1.msra.mxu0 0.0
        %450 = vmatprep.subr.mxu0 0.0
        %451 = vmatpush1.msra.mxu0 0.0
        %452 = vmatprep.subr.mxu0 0.0
        %453 = vmatpush1.msra.mxu0 0.0
        %454 = vmatprep.subr.mxu0 0.0
        %455 = vmatpush1.msra.mxu0 0.0
        %456 = vmatprep.subr.mxu0 0.0
        %457 = vmatpush1.msra.mxu0 0.0
        %458 = vmatprep.subr.mxu0 0.0
        %459 = vmatpush1.msra.mxu0 0.0
        %460 = vmatprep.subr.mxu0 0.0
        %461 = vmatpush1.msra.mxu0 0.0
        %462 = vmatprep.subr.mxu0 0.0
        %463 = vmatpush1.msra.mxu0 0.0
        %464 = vmatprep.subr.mxu0 0.0
        %465 = vmatpush1.msra.mxu0 0.0
        %466 = vmatprep.subr.mxu0 0.0
        %467 = vmatpush1.msra.mxu0 %v409
        %468 = vmatprep.subr.mxu0 0.0
        %469 = vmatpush1.msra.mxu0 %v408
        %470 = vmatprep.subr.mxu0 0.0
        %471 = vmatpush1.msra.mxu0 %v407
        %472 = vmatprep.subr.mxu0 0.0
        %473 = vmatpush1.msra.mxu0 %v406
        %474 = vmatprep.subr.mxu0 0.0
        %475 = vmatpush2.msra.mxu0 0.0
        %476 = vmatprep.subr.mxu0 0.0
        %477 = vmatpush2.msra.mxu0 0.0
        %478 = vmatprep.subr.mxu0 0.0
        %479 = vmatpush2.msra.mxu0 0.0
        %480 = vmatprep.subr.mxu0 0.0
        %481 = vmatpush2.msra.mxu0 0.0
        %482 = vmatprep.subr.mxu0 0.0
        %483 = vmatpush2.msra.mxu0 0.0
        %484 = vmatprep.subr.mxu0 0.0
        %485 = vmatpush2.msra.mxu0 0.0
        %486 = vmatprep.subr.mxu0 0.0
        %487 = vmatpush2.msra.mxu0 0.0
        %488 = vmatprep.subr.mxu0 0.0
        %489 = vmatpush2.msra.mxu0 0.0
        %490 = vmatprep.subr.mxu0 0.0
        %491 = vmatpush2.msra.mxu0 0.0
        %492 = vmatprep.subr.mxu0 0.0
        %493 = vmatpush2.msra.mxu0 0.0
        %494 = vmatprep.subr.mxu0 0.0
        %495 = vmatpush2.msra.mxu0 0.0
        %496 = vmatprep.subr.mxu0 0.0
        %497 = vmatpush2.msra.mxu0 0.0
        %498 = vmatprep.subr.mxu0 0.0
        %499 = vmatpush2.msra.mxu0 0.0
        %500 = vmatprep.subr.mxu0 0.0
        %501 = vmatpush2.msra.mxu0 0.0
        %502 = vmatprep.subr.mxu0 0.0
        %503 = vmatpush2.msra.mxu0 0.0
        %504 = vmatprep.subr.mxu0 0.0
        %505 = vmatpush2.msra.mxu0 0.0
        %506 = vmatprep.mubr.f32.mxu0 0.0
        %507 = vmatmul.mubr.f32.gmra.mxu0 %v440
        %v508 = vpop.f32.mrf.mxu0
        %v509 = vadd.f32 0.0, %v508
        %v510 = vpop.f32.mrf.mxu0
        %511 = vdwg.mxu0
        %512 = vmatprep.subr.mxu0 0.0
        %513 = vmatpush1.msra.mxu0 0.0
        %514 = vmatprep.subr.mxu0 0.0
        %515 = vmatpush1.msra.mxu0 0.0
        %516 = vmatprep.subr.mxu0 0.0
        %517 = vmatpush1.msra.mxu0 0.0
        %518 = vmatprep.subr.mxu0 0.0
        %519 = vmatpush1.msra.mxu0 0.0
        %520 = vmatprep.subr.mxu0 0.0
        %521 = vmatpush1.msra.mxu0 0.0
        %522 = vmatprep.subr.mxu0 0.0
        %523 = vmatpush1.msra.mxu0 0.0
        %524 = vmatprep.subr.mxu0 0.0
        %525 = vmatpush1.msra.mxu0 0.0
        %526 = vmatprep.subr.mxu0 0.0
        %527 = vmatpush1.msra.mxu0 0.0
        %528 = vmatprep.subr.mxu0 0.0
        %529 = vmatpush1.msra.mxu0 0.0
        %530 = vmatprep.subr.mxu0 0.0
        %531 = vmatpush1.msra.mxu0 0.0
        %532 = vmatprep.subr.mxu0 0.0
        %533 = vmatpush1.msra.mxu0 0.0
        %534 = vmatprep.subr.mxu0 0.0
        %535 = vmatpush1.msra.mxu0 0.0
        %536 = vmatprep.subr.mxu0 0.0
        %537 = vmatpush1.msra.mxu0 %v413
        %538 = vmatprep.subr.mxu0 0.0
        %539 = vmatpush1.msra.mxu0 %v412
        %540 = vmatprep.subr.mxu0 0.0
        %541 = vmatpush1.msra.mxu0 %v411
        %542 = vmatprep.subr.mxu0 0.0
        %543 = vmatpush1.msra.mxu0 %v410
        %544 = vmatprep.subr.mxu0 0.0
        %545 = vmatpush2.msra.mxu0 0.0
        %546 = vmatprep.subr.mxu0 0.0
        %547 = vmatpush2.msra.mxu0 0.0
        %548 = vmatprep.subr.mxu0 0.0
        %549 = vmatpush2.msra.mxu0 0.0
        %550 = vmatprep.subr.mxu0 0.0
        %551 = vmatpush2.msra.mxu0 0.0
        %552 = vmatprep.subr.mxu0 0.0
        %553 = vmatpush2.msra.mxu0 0.0
        %554 = vmatprep.subr.mxu0 0.0
        %555 = vmatpush2.msra.mxu0 0.0
        %556 = vmatprep.subr.mxu0 0.0
        %557 = vmatpush2.msra.mxu0 0.0
        %558 = vmatprep.subr.mxu0 0.0
        %559 = vmatpush2.msra.mxu0 0.0
        %560 = vmatprep.subr.mxu0 0.0
        %561 = vmatpush2.msra.mxu0 0.0
        %562 = vmatprep.subr.mxu0 0.0
        %563 = vmatpush2.msra.mxu0 0.0
        %564 = vmatprep.subr.mxu0 0.0
        %565 = vmatpush2.msra.mxu0 0.0
        %566 = vmatprep.subr.mxu0 0.0
        %567 = vmatpush2.msra.mxu0 0.0
        %568 = vmatprep.subr.mxu0 0.0
        %569 = vmatpush2.msra.mxu0 0.0
        %570 = vmatprep.subr.mxu0 0.0
        %571 = vmatpush2.msra.mxu0 0.0
        %572 = vmatprep.subr.mxu0 0.0
        %573 = vmatpush2.msra.mxu0 0.0
        %574 = vmatprep.subr.mxu0 0.0
        %575 = vmatpush2.msra.mxu0 0.0
        %576 = vmatprep.mubr.f32.mxu0 0.0
        %577 = vmatmul.mubr.f32.gmra.mxu0 %v440
        %v578 = vpop.f32.mrf.mxu0
        %v579 = vadd.f32 0.0, %v578
        %v580 = vpop.f32.mrf.mxu0
        %581 = vdwg.mxu0
        %582 = vmatprep.subr.mxu0 0.0
        %583 = vmatpush1.msra.mxu0 0.0
        %584 = vmatprep.subr.mxu0 0.0
        %585 = vmatpush1.msra.mxu0 0.0
        %586 = vmatprep.subr.mxu0 0.0
        %587 = vmatpush1.msra.mxu0 0.0
        %588 = vmatprep.subr.mxu0 0.0
        %589 = vmatpush1.msra.mxu0 0.0
        %590 = vmatprep.subr.mxu0 0.0
        %591 = vmatpush1.msra.mxu0 0.0
        %592 = vmatprep.subr.mxu0 0.0
        %593 = vmatpush1.msra.mxu0 0.0
        %594 = vmatprep.subr.mxu0 0.0
        %595 = vmatpush1.msra.mxu0 0.0
        %596 = vmatprep.subr.mxu0 0.0
        %597 = vmatpush1.msra.mxu0 0.0
        %598 = vmatprep.subr.mxu0 0.0
        %599 = vmatpush1.msra.mxu0 0.0
        %600 = vmatprep.subr.mxu0 0.0
        %601 = vmatpush1.msra.mxu0 0.0
        %602 = vmatprep.subr.mxu0 0.0
        %603 = vmatpush1.msra.mxu0 0.0
        %604 = vmatprep.subr.mxu0 0.0
        %605 = vmatpush1.msra.mxu0 0.0
        %606 = vmatprep.subr.mxu0 0.0
        %607 = vmatpush1.msra.mxu0 %v417
        %608 = vmatprep.subr.mxu0 0.0
        %609 = vmatpush1.msra.mxu0 %v416
        %610 = vmatprep.subr.mxu0 0.0
        %611 = vmatpush1.msra.mxu0 %v415
        %612 = vmatprep.subr.mxu0 0.0
        %613 = vmatpush1.msra.mxu0 %v414
        %614 = vmatprep.subr.mxu0 0.0
        %615 = vmatpush2.msra.mxu0 0.0
        %616 = vmatprep.subr.mxu0 0.0
        %617 = vmatpush2.msra.mxu0 0.0
        %618 = vmatprep.subr.mxu0 0.0
        %619 = vmatpush2.msra.mxu0 0.0
        %620 = vmatprep.subr.mxu0 0.0
        %621 = vmatpush2.msra.mxu0 0.0
        %622 = vmatprep.subr.mxu0 0.0
        %623 = vmatpush2.msra.mxu0 0.0
        %624 = vmatprep.subr.mxu0 0.0
        %625 = vmatpush2.msra.mxu0 0.0
        %626 = vmatprep.subr.mxu0 0.0
        %627 = vmatpush2.msra.mxu0 0.0
        %628 = vmatprep.subr.mxu0 0.0
        %629 = vmatpush2.msra.mxu0 0.0
        %630 = vmatprep.subr.mxu0 0.0
        %631 = vmatpush2.msra.mxu0 0.0
        %632 = vmatprep.subr.mxu0 0.0
        %633 = vmatpush2.msra.mxu0 0.0
        %634 = vmatprep.subr.mxu0 0.0
        %635 = vmatpush2.msra.mxu0 0.0
        %636 = vmatprep.subr.mxu0 0.0
        %637 = vmatpush2.msra.mxu0 0.0
        %638 = vmatprep.subr.mxu0 0.0
        %639 = vmatpush2.msra.mxu0 0.0
        %640 = vmatprep.subr.mxu0 0.0
        %641 = vmatpush2.msra.mxu0 0.0
        %642 = vmatprep.subr.mxu0 0.0
        %643 = vmatpush2.msra.mxu0 0.0
        %644 = vmatprep.subr.mxu0 0.0
        %645 = vmatpush2.msra.mxu0 0.0
        %646 = vmatprep.mubr.f32.mxu0 0.0
        %647 = vmatmul.mubr.f32.gmra.mxu0 %v440
        %v648 = vpop.f32.mrf.mxu0
        %v649 = vadd.f32 0.0, %v648
        %v650 = vpop.f32.mrf.mxu0
        %651 = vdwg.mxu0
        %652 = vmatprep.subr.mxu0 0.0
        %653 = vmatpush1.msra.mxu0 0.0
        %654 = vmatprep.subr.mxu0 0.0
        %655 = vmatpush1.msra.mxu0 0.0
        %656 = vmatprep.subr.mxu0 0.0
        %657 = vmatpush1.msra.mxu0 0.0
        %658 = vmatprep.subr.mxu0 0.0
        %659 = vmatpush1.msra.mxu0 0.0
        %660 = vmatprep.subr.mxu0 0.0
        %661 = vmatpush1.msra.mxu0 0.0
        %662 = vmatprep.subr.mxu0 0.0
        %663 = vmatpush1.msra.mxu0 0.0
        %664 = vmatprep.subr.mxu0 0.0
        %665 = vmatpush1.msra.mxu0 0.0
        %666 = vmatprep.subr.mxu0 0.0
        %667 = vmatpush1.msra.mxu0 0.0
        %668 = vmatprep.subr.mxu0 0.0
        %669 = vmatpush1.msra.mxu0 0.0
        %670 = vmatprep.subr.mxu0 0.0
        %671 = vmatpush1.msra.mxu0 0.0
        %672 = vmatprep.subr.mxu0 0.0
        %673 = vmatpush1.msra.mxu0 0.0
        %674 = vmatprep.subr.mxu0 0.0
        %675 = vmatpush1.msra.mxu0 0.0
        %676 = vmatprep.subr.mxu0 0.0
        %677 = vmatpush1.msra.mxu0 %v421
        %678 = vmatprep.subr.mxu0 0.0
        %679 = vmatpush1.msra.mxu0 %v420
        %680 = vmatprep.subr.mxu0 0.0
        %681 = vmatpush1.msra.mxu0 %v419
        %682 = vmatprep.subr.mxu0 0.0
        %683 = vmatpush1.msra.mxu0 %v418
        %684 = vmatprep.subr.mxu0 0.0
        %685 = vmatpush2.msra.mxu0 0.0
        %686 = vmatprep.subr.mxu0 0.0
        %687 = vmatpush2.msra.mxu0 0.0
        %688 = vmatprep.subr.mxu0 0.0
        %689 = vmatpush2.msra.mxu0 0.0
        %690 = vmatprep.subr.mxu0 0.0
        %691 = vmatpush2.msra.mxu0 0.0
        %692 = vmatprep.subr.mxu0 0.0
        %693 = vmatpush2.msra.mxu0 0.0
        %694 = vmatprep.subr.mxu0 0.0
        %695 = vmatpush2.msra.mxu0 0.0
        %696 = vmatprep.subr.mxu0 0.0
        %697 = vmatpush2.msra.mxu0 0.0
        %698 = vmatprep.subr.mxu0 0.0
        %699 = vmatpush2.msra.mxu0 0.0
        %700 = vmatprep.subr.mxu0 0.0
        %701 = vmatpush2.msra.mxu0 0.0
        %702 = vmatprep.subr.mxu0 0.0
        %703 = vmatpush2.msra.mxu0 0.0
        %704 = vmatprep.subr.mxu0 0.0
        %705 = vmatpush2.msra.mxu0 0.0
        %706 = vmatprep.subr.mxu0 0.0
        %707 = vmatpush2.msra.mxu0 0.0
        %708 = vmatprep.subr.mxu0 0.0
        %709 = vmatpush2.msra.mxu0 0.0
        %710 = vmatprep.subr.mxu0 0.0
        %711 = vmatpush2.msra.mxu0 0.0
        %712 = vmatprep.subr.mxu0 0.0
        %713 = vmatpush2.msra.mxu0 0.0
        %714 = vmatprep.subr.mxu0 0.0
        %715 = vmatpush2.msra.mxu0 0.0
        %716 = vmatprep.mubr.f32.mxu0 0.0
        %717 = vmatmul.mubr.f32.gmra.mxu0 %v440
        %v718 = vpop.f32.mrf.mxu0
        %v719 = vadd.f32 0.0, %v718
        %v720 = vpop.f32.mrf.mxu0
        %721 = vdwg.mxu0
        %722 = vmatprep.subr.mxu0 0.0
        %723 = vmatpush1.msra.mxu0 0.0
        %724 = vmatprep.subr.mxu0 0.0
        %725 = vmatpush1.msra.mxu0 0.0
        %726 = vmatprep.subr.mxu0 0.0
        %727 = vmatpush1.msra.mxu0 0.0
        %728 = vmatprep.subr.mxu0 0.0
        %729 = vmatpush1.msra.mxu0 0.0
        %730 = vmatprep.subr.mxu0 0.0
        %731 = vmatpush1.msra.mxu0 0.0
        %732 = vmatprep.subr.mxu0 0.0
        %733 = vmatpush1.msra.mxu0 0.0
        %734 = vmatprep.subr.mxu0 0.0
        %735 = vmatpush1.msra.mxu0 0.0
        %736 = vmatprep.subr.mxu0 0.0
        %737 = vmatpush1.msra.mxu0 0.0
        %738 = vmatprep.subr.mxu0 0.0
        %739 = vmatpush1.msra.mxu0 0.0
        %740 = vmatprep.subr.mxu0 0.0
        %741 = vmatpush1.msra.mxu0 0.0
        %742 = vmatprep.subr.mxu0 0.0
        %743 = vmatpush1.msra.mxu0 0.0
        %744 = vmatprep.subr.mxu0 0.0
        %745 = vmatpush1.msra.mxu0 0.0
        %746 = vmatprep.subr.mxu0 0.0
        %747 = vmatpush1.msra.mxu0 %v425
        %748 = vmatprep.subr.mxu0 0.0
        %749 = vmatpush1.msra.mxu0 %v424
        %750 = vmatprep.subr.mxu0 0.0
        %751 = vmatpush1.msra.mxu0 %v423
        %752 = vmatprep.subr.mxu0 0.0
        %753 = vmatpush1.msra.mxu0 %v422
        %754 = vmatprep.subr.mxu0 0.0
        %755 = vmatpush2.msra.mxu0 0.0
        %756 = vmatprep.subr.mxu0 0.0
        %757 = vmatpush2.msra.mxu0 0.0
        %758 = vmatprep.subr.mxu0 0.0
        %759 = vmatpush2.msra.mxu0 0.0
        %760 = vmatprep.subr.mxu0 0.0
        %761 = vmatpush2.msra.mxu0 0.0
        %762 = vmatprep.subr.mxu0 0.0
        %763 = vmatpush2.msra.mxu0 0.0
        %764 = vmatprep.subr.mxu0 0.0
        %765 = vmatpush2.msra.mxu0 0.0
        %766 = vmatprep.subr.mxu0 0.0
        %767 = vmatpush2.msra.mxu0 0.0
        %768 = vmatprep.subr.mxu0 0.0
        %769 = vmatpush2.msra.mxu0 0.0
        %770 = vmatprep.subr.mxu0 0.0
        %771 = vmatpush2.msra.mxu0 0.0
        %772 = vmatprep.subr.mxu0 0.0
        %773 = vmatpush2.msra.mxu0 0.0
        %774 = vmatprep.subr.mxu0 0.0
        %775 = vmatpush2.msra.mxu0 0.0
        %776 = vmatprep.subr.mxu0 0.0
        %777 = vmatpush2.msra.mxu0 0.0
        %778 = vmatprep.subr.mxu0 0.0
        %779 = vmatpush2.msra.mxu0 0.0
        %780 = vmatprep.subr.mxu0 0.0
        %781 = vmatpush2.msra.mxu0 0.0
        %782 = vmatprep.subr.mxu0 0.0
        %783 = vmatpush2.msra.mxu0 0.0
        %784 = vmatprep.subr.mxu0 0.0
        %785 = vmatpush2.msra.mxu0 0.0
        %786 = vmatprep.mubr.f32.mxu0 0.0
        %787 = vmatmul.mubr.f32.gmra.mxu0 %v440
        %v788 = vpop.f32.mrf.mxu0
        %v789 = vadd.f32 0.0, %v788
        %v790 = vpop.f32.mrf.mxu0
        %791 = vdwg.mxu0
        %792 = vmatprep.subr.mxu0 0.0
        %793 = vmatpush1.msra.mxu0 0.0
        %794 = vmatprep.subr.mxu0 0.0
        %795 = vmatpush1.msra.mxu0 0.0
        %796 = vmatprep.subr.mxu0 0.0
        %797 = vmatpush1.msra.mxu0 0.0
        %798 = vmatprep.subr.mxu0 0.0
        %799 = vmatpush1.msra.mxu0 0.0
        %800 = vmatprep.subr.mxu0 0.0
        %801 = vmatpush1.msra.mxu0 0.0
        %802 = vmatprep.subr.mxu0 0.0
        %803 = vmatpush1.msra.mxu0 0.0
        %804 = vmatprep.subr.mxu0 0.0
        %805 = vmatpush1.msra.mxu0 0.0
        %806 = vmatprep.subr.mxu0 0.0
        %807 = vmatpush1.msra.mxu0 0.0
        %808 = vmatprep.subr.mxu0 0.0
        %809 = vmatpush1.msra.mxu0 0.0
        %810 = vmatprep.subr.mxu0 0.0
        %811 = vmatpush1.msra.mxu0 0.0
        %812 = vmatprep.subr.mxu0 0.0
        %813 = vmatpush1.msra.mxu0 0.0
        %814 = vmatprep.subr.mxu0 0.0
        %815 = vmatpush1.msra.mxu0 0.0
        %816 = vmatprep.subr.mxu0 0.0
        %817 = vmatpush1.msra.mxu0 %v429
        %818 = vmatprep.subr.mxu0 0.0
        %819 = vmatpush1.msra.mxu0 %v428
        %820 = vmatprep.subr.mxu0 0.0
        %821 = vmatpush1.msra.mxu0 %v427
        %822 = vmatprep.subr.mxu0 0.0
        %823 = vmatpush1.msra.mxu0 %v426
        %824 = vmatprep.subr.mxu0 0.0
        %825 = vmatpush2.msra.mxu0 0.0
        %826 = vmatprep.subr.mxu0 0.0
        %827 = vmatpush2.msra.mxu0 0.0
        %828 = vmatprep.subr.mxu0 0.0
        %829 = vmatpush2.msra.mxu0 0.0
        %830 = vmatprep.subr.mxu0 0.0
        %831 = vmatpush2.msra.mxu0 0.0
        %832 = vmatprep.subr.mxu0 0.0
        %833 = vmatpush2.msra.mxu0 0.0
        %834 = vmatprep.subr.mxu0 0.0
        %835 = vmatpush2.msra.mxu0 0.0
        %836 = vmatprep.subr.mxu0 0.0
        %837 = vmatpush2.msra.mxu0 0.0
        %838 = vmatprep.subr.mxu0 0.0
        %839 = vmatpush2.msra.mxu0 0.0
        %840 = vmatprep.subr.mxu0 0.0
        %841 = vmatpush2.msra.mxu0 0.0
        %842 = vmatprep.subr.mxu0 0.0
        %843 = vmatpush2.msra.mxu0 0.0
        %844 = vmatprep.subr.mxu0 0.0
        %845 = vmatpush2.msra.mxu0 0.0
        %846 = vmatprep.subr.mxu0 0.0
        %847 = vmatpush2.msra.mxu0 0.0
        %848 = vmatprep.subr.mxu0 0.0
        %849 = vmatpush2.msra.mxu0 0.0
        %850 = vmatprep.subr.mxu0 0.0
        %851 = vmatpush2.msra.mxu0 0.0
        %852 = vmatprep.subr.mxu0 0.0
        %853 = vmatpush2.msra.mxu0 0.0
        %854 = vmatprep.subr.mxu0 0.0
        %855 = vmatpush2.msra.mxu0 0.0
        %856 = vmatprep.mubr.f32.mxu0 0.0
        %857 = vmatmul.mubr.f32.gmra.mxu0 %v440
        %v858 = vpop.f32.mrf.mxu0
        %v859 = vadd.f32 0.0, %v858
        %v860 = vpop.f32.mrf.mxu0
        %861 = vdwg.mxu0
        %862 = vmatprep.subr.mxu0 0.0
        %863 = vmatpush1.msra.mxu0 0.0
        %864 = vmatprep.subr.mxu0 0.0
        %865 = vmatpush1.msra.mxu0 0.0
        %866 = vmatprep.subr.mxu0 0.0
        %867 = vmatpush1.msra.mxu0 0.0
        %868 = vmatprep.subr.mxu0 0.0
        %869 = vmatpush1.msra.mxu0 0.0
        %870 = vmatprep.subr.mxu0 0.0
        %871 = vmatpush1.msra.mxu0 0.0
        %872 = vmatprep.subr.mxu0 0.0
        %873 = vmatpush1.msra.mxu0 0.0
        %874 = vmatprep.subr.mxu0 0.0
        %875 = vmatpush1.msra.mxu0 0.0
        %876 = vmatprep.subr.mxu0 0.0
        %877 = vmatpush1.msra.mxu0 0.0
        %878 = vmatprep.subr.mxu0 0.0
        %879 = vmatpush1.msra.mxu0 0.0
        %880 = vmatprep.subr.mxu0 0.0
        %881 = vmatpush1.msra.mxu0 0.0
        %882 = vmatprep.subr.mxu0 0.0
        %883 = vmatpush1.msra.mxu0 0.0
        %884 = vmatprep.subr.mxu0 0.0
        %885 = vmatpush1.msra.mxu0 0.0
        %886 = vmatprep.subr.mxu0 0.0
        %887 = vmatpush1.msra.mxu0 %v433
        %888 = vmatprep.subr.mxu0 0.0
        %889 = vmatpush1.msra.mxu0 %v432
        %890 = vmatprep.subr.mxu0 0.0
        %891 = vmatpush1.msra.mxu0 %v431
        %892 = vmatprep.subr.mxu0 0.0
        %893 = vmatpush1.msra.mxu0 %v430
        %894 = vmatprep.subr.mxu0 0.0
        %895 = vmatpush2.msra.mxu0 0.0
        %896 = vmatprep.subr.mxu0 0.0
        %897 = vmatpush2.msra.mxu0 0.0
        %898 = vmatprep.subr.mxu0 0.0
        %899 = vmatpush2.msra.mxu0 0.0
        %900 = vmatprep.subr.mxu0 0.0
        %901 = vmatpush2.msra.mxu0 0.0
        %902 = vmatprep.subr.mxu0 0.0
        %903 = vmatpush2.msra.mxu0 0.0
        %904 = vmatprep.subr.mxu0 0.0
        %905 = vmatpush2.msra.mxu0 0.0
        %906 = vmatprep.subr.mxu0 0.0
        %907 = vmatpush2.msra.mxu0 0.0
        %908 = vmatprep.subr.mxu0 0.0
        %909 = vmatpush2.msra.mxu0 0.0
        %910 = vmatprep.subr.mxu0 0.0
        %911 = vmatpush2.msra.mxu0 0.0
        %912 = vmatprep.subr.mxu0 0.0
        %913 = vmatpush2.msra.mxu0 0.0
        %914 = vmatprep.subr.mxu0 0.0
        %915 = vmatpush2.msra.mxu0 0.0
        %916 = vmatprep.subr.mxu0 0.0
        %917 = vmatpush2.msra.mxu0 0.0
        %918 = vmatprep.subr.mxu0 0.0
        %919 = vmatpush2.msra.mxu0 0.0
        %920 = vmatprep.subr.mxu0 0.0
        %921 = vmatpush2.msra.mxu0 0.0
        %922 = vmatprep.subr.mxu0 0.0
        %923 = vmatpush2.msra.mxu0 0.0
        %924 = vmatprep.subr.mxu0 0.0
        %925 = vmatpush2.msra.mxu0 0.0
        %926 = vmatprep.mubr.f32.mxu0 0.0
        %927 = vmatmul.mubr.f32.gmra.mxu0 %v440
        %v928 = vpop.f32.mrf.mxu0
        %v929 = vadd.f32 0.0, %v928
        %v930 = vpop.f32.mrf.mxu0
        %931 = vdwg.mxu0
        %932 = vmatprep.subr.mxu0 0.0
        %933 = vmatpush1.msra.mxu0 0.0
        %934 = vmatprep.subr.mxu0 0.0
        %935 = vmatpush1.msra.mxu0 0.0
        %936 = vmatprep.subr.mxu0 0.0
        %937 = vmatpush1.msra.mxu0 0.0
        %938 = vmatprep.subr.mxu0 0.0
        %939 = vmatpush1.msra.mxu0 0.0
        %940 = vmatprep.subr.mxu0 0.0
        %941 = vmatpush1.msra.mxu0 0.0
        %942 = vmatprep.subr.mxu0 0.0
        %943 = vmatpush1.msra.mxu0 0.0
        %944 = vmatprep.subr.mxu0 0.0
        %945 = vmatpush1.msra.mxu0 0.0
        %946 = vmatprep.subr.mxu0 0.0
        %947 = vmatpush1.msra.mxu0 0.0
        %948 = vmatprep.subr.mxu0 0.0
        %949 = vmatpush1.msra.mxu0 0.0
        %950 = vmatprep.subr.mxu0 0.0
        %951 = vmatpush1.msra.mxu0 0.0
        %952 = vmatprep.subr.mxu0 0.0
        %953 = vmatpush1.msra.mxu0 0.0
        %954 = vmatprep.subr.mxu0 0.0
        %955 = vmatpush1.msra.mxu0 0.0
        %956 = vmatprep.subr.mxu0 0.0
        %957 = vmatpush1.msra.mxu0 %v437
        %958 = vmatprep.subr.mxu0 0.0
        %959 = vmatpush1.msra.mxu0 %v436
        %960 = vmatprep.subr.mxu0 0.0
        %961 = vmatpush1.msra.mxu0 %v435
        %962 = vmatprep.subr.mxu0 0.0
        %963 = vmatpush1.msra.mxu0 %v434
        %964 = vmatprep.subr.mxu0 0.0
        %965 = vmatpush2.msra.mxu0 0.0
        %966 = vmatprep.subr.mxu0 0.0
        %967 = vmatpush2.msra.mxu0 0.0
        %968 = vmatprep.subr.mxu0 0.0
        %969 = vmatpush2.msra.mxu0 0.0
        %970 = vmatprep.subr.mxu0 0.0
        %971 = vmatpush2.msra.mxu0 0.0
        %972 = vmatprep.subr.mxu0 0.0
        %973 = vmatpush2.msra.mxu0 0.0
        %974 = vmatprep.subr.mxu0 0.0
        %975 = vmatpush2.msra.mxu0 0.0
        %976 = vmatprep.subr.mxu0 0.0
        %977 = vmatpush2.msra.mxu0 0.0
        %978 = vmatprep.subr.mxu0 0.0
        %979 = vmatpush2.msra.mxu0 0.0
        %980 = vmatprep.subr.mxu0 0.0
        %981 = vmatpush2.msra.mxu0 0.0
        %982 = vmatprep.subr.mxu0 0.0
        %983 = vmatpush2.msra.mxu0 0.0
        %984 = vmatprep.subr.mxu0 0.0
        %985 = vmatpush2.msra.mxu0 0.0
        %986 = vmatprep.subr.mxu0 0.0
        %987 = vmatpush2.msra.mxu0 0.0
        %988 = vmatprep.subr.mxu0 0.0
        %989 = vmatpush2.msra.mxu0 0.0
        %990 = vmatprep.subr.mxu0 0.0
        %991 = vmatpush2.msra.mxu0 0.0
        %992 = vmatprep.subr.mxu0 0.0
        %993 = vmatpush2.msra.mxu0 0.0
        %994 = vmatprep.subr.mxu0 0.0
        %995 = vmatpush2.msra.mxu0 0.0
        %996 = vmatprep.mubr.f32.mxu0 0.0
        %997 = vmatmul.mubr.f32.gmra.mxu0 %v440
        %v998 = vpop.f32.mrf.mxu0
        %v999 = vadd.f32 0.0, %v998
        %v1000 = vpop.f32.mrf.mxu0
        %1001 = vdwg.mxu0
        %v1002 = vld [vmem:[%s4] sm:$0xff]
        %v1003 = vld [vmem:[%s4 + $0x8] sm:$0xff]
        %v1004 = vld [vmem:[%s4 + $0x10] sm:$0xff]
        %v1005 = vld [vmem:[%s4 + $0x18] sm:$0xff]
        %v1006 = vld [vmem:[%s4 + $0x20] sm:$0xff]
        %v1007 = vld [vmem:[%s4 + $0x28] sm:$0xff]
        %v1008 = vld [vmem:[%s4 + $0x30] sm:$0xff]
        %v1009 = vld [vmem:[%s4 + $0x38] sm:$0xff]
        %v1010 = vld [vmem:[%s4 + $0x40] sm:$0xff]
        %v1011 = vld [vmem:[%s4 + $0x48] sm:$0xff]
        %v1012 = vld [vmem:[%s4 + $0x50] sm:$0xff]
        %v1013 = vld [vmem:[%s4 + $0x58] sm:$0xff]
        %v1014 = vld [vmem:[%s4 + $0x60] sm:$0xff]
        %v1015 = vld [vmem:[%s4 + $0x68] sm:$0xff]
        %v1016 = vld [vmem:[%s4 + $0x70] sm:$0xff]
        %v1017 = vld [vmem:[%s4 + $0x78] sm:$0xff]
        %v1018 = vld [vmem:[%s4 + $0x80] sm:$0xff]
        %v1019 = vld [vmem:[%s4 + $0x88] sm:$0xff]
        %v1020 = vld [vmem:[%s4 + $0x90] sm:$0xff]
        %v1021 = vld [vmem:[%s4 + $0x98] sm:$0xff]
        %v1022 = vld [vmem:[%s4 + $0xa0] sm:$0xff]
        %v1023 = vld [vmem:[%s4 + $0xa8] sm:$0xff]
        %v1024 = vld [vmem:[%s4 + $0xb0] sm:$0xff]
        %v1025 = vld [vmem:[%s4 + $0xb8] sm:$0xff]
        %v1026 = vld [vmem:[%s4 + $0xc0] sm:$0xff]
        %v1027 = vld [vmem:[%s4 + $0xc8] sm:$0xff]
        %v1028 = vld [vmem:[%s4 + $0xd0] sm:$0xff]
        %v1029 = vld [vmem:[%s4 + $0xd8] sm:$0xff]
        %v1030 = vld [vmem:[%s4 + $0xe0] sm:$0xff]
        %v1031 = vld [vmem:[%s4 + $0xe8] sm:$0xff]
        %v1032 = vld [vmem:[%s4 + $0xf0] sm:$0xff]
        %v1033 = vld [vmem:[%s4 + $0xf8] sm:$0xff]
        %v1035 = vsel %vm438, %v404, 0
        %1037 = vmatprep.subr.mxu0 0.0
        %1038 = vmatpush1.msra.mxu0 0.0
        %1039 = vmatprep.subr.mxu0 0.0
        %1040 = vmatpush1.msra.mxu0 0.0
        %1041 = vmatprep.subr.mxu0 0.0
        %1042 = vmatpush1.msra.mxu0 0.0
        %1043 = vmatprep.subr.mxu0 0.0
        %1044 = vmatpush1.msra.mxu0 0.0
        %1045 = vmatprep.subr.mxu0 0.0
        %1046 = vmatpush1.msra.mxu0 0.0
        %1047 = vmatprep.subr.mxu0 0.0
        %1048 = vmatpush1.msra.mxu0 0.0
        %1049 = vmatprep.subr.mxu0 0.0
        %1050 = vmatpush1.msra.mxu0 0.0
        %1051 = vmatprep.subr.mxu0 0.0
        %1052 = vmatpush1.msra.mxu0 0.0
        %1053 = vmatprep.subr.mxu0 0.0
        %1054 = vmatpush1.msra.mxu0 0.0
        %1055 = vmatprep.subr.mxu0 0.0
        %1056 = vmatpush1.msra.mxu0 0.0
        %1057 = vmatprep.subr.mxu0 0.0
        %1058 = vmatpush1.msra.mxu0 0.0
        %1059 = vmatprep.subr.mxu0 0.0
        %1060 = vmatpush1.msra.mxu0 0.0
        %1061 = vmatprep.subr.mxu0 0.0
        %1062 = vmatpush1.msra.mxu0 %v1005
        %1063 = vmatprep.subr.mxu0 0.0
        %1064 = vmatpush1.msra.mxu0 %v1004
        %1065 = vmatprep.subr.mxu0 0.0
        %1066 = vmatpush1.msra.mxu0 %v1003
        %1067 = vmatprep.subr.mxu0 0.0
        %1068 = vmatpush1.msra.mxu0 %v1002
        %1069 = vmatprep.subr.mxu0 0.0
        %1070 = vmatpush2.msra.mxu0 0.0
        %1071 = vmatprep.subr.mxu0 0.0
        %1072 = vmatpush2.msra.mxu0 0.0
        %1073 = vmatprep.subr.mxu0 0.0
        %1074 = vmatpush2.msra.mxu0 0.0
        %1075 = vmatprep.subr.mxu0 0.0
        %1076 = vmatpush2.msra.mxu0 0.0
        %1077 = vmatprep.subr.mxu0 0.0
        %1078 = vmatpush2.msra.mxu0 0.0
        %1079 = vmatprep.subr.mxu0 0.0
        %1080 = vmatpush2.msra.mxu0 0.0
        %1081 = vmatprep.subr.mxu0 0.0
        %1082 = vmatpush2.msra.mxu0 0.0
        %1083 = vmatprep.subr.mxu0 0.0
        %1084 = vmatpush2.msra.mxu0 0.0
        %1085 = vmatprep.subr.mxu0 0.0
        %1086 = vmatpush2.msra.mxu0 0.0
        %1087 = vmatprep.subr.mxu0 0.0
        %1088 = vmatpush2.msra.mxu0 0.0
        %1089 = vmatprep.subr.mxu0 0.0
        %1090 = vmatpush2.msra.mxu0 0.0
        %1091 = vmatprep.subr.mxu0 0.0
        %1092 = vmatpush2.msra.mxu0 0.0
        %1093 = vmatprep.subr.mxu0 0.0
        %1094 = vmatpush2.msra.mxu0 0.0
        %1095 = vmatprep.subr.mxu0 0.0
        %1096 = vmatpush2.msra.mxu0 0.0
        %1097 = vmatprep.subr.mxu0 0.0
        %1098 = vmatpush2.msra.mxu0 0.0
        %1099 = vmatprep.subr.mxu0 0.0
        %1100 = vmatpush2.msra.mxu0 0.0
        %1101 = vmatprep.mubr.f32.mxu0 0.0
        %1102 = vmatmul.mubr.f32.gmra.mxu0 %v1035
        %v1103 = vpop.f32.mrf.mxu0
        %v1104 = vadd.f32 0.0, %v1103
        %v1105 = vpop.f32.mrf.mxu0
        %1106 = vdwg.mxu0
        %1107 = vmatprep.subr.mxu0 0.0
        %1108 = vmatpush1.msra.mxu0 0.0
        %1109 = vmatprep.subr.mxu0 0.0
        %1110 = vmatpush1.msra.mxu0 0.0
        %1111 = vmatprep.subr.mxu0 0.0
        %1112 = vmatpush1.msra.mxu0 0.0
        %1113 = vmatprep.subr.mxu0 0.0
        %1114 = vmatpush1.msra.mxu0 0.0
        %1115 = vmatprep.subr.mxu0 0.0
        %1116 = vmatpush1.msra.mxu0 0.0
        %1117 = vmatprep.subr.mxu0 0.0
        %1118 = vmatpush1.msra.mxu0 0.0
        %1119 = vmatprep.subr.mxu0 0.0
        %1120 = vmatpush1.msra.mxu0 0.0
        %1121 = vmatprep.subr.mxu0 0.0
        %1122 = vmatpush1.msra.mxu0 0.0
        %1123 = vmatprep.subr.mxu0 0.0
        %1124 = vmatpush1.msra.mxu0 0.0
        %1125 = vmatprep.subr.mxu0 0.0
        %1126 = vmatpush1.msra.mxu0 0.0
        %1127 = vmatprep.subr.mxu0 0.0
        %1128 = vmatpush1.msra.mxu0 0.0
        %1129 = vmatprep.subr.mxu0 0.0
        %1130 = vmatpush1.msra.mxu0 0.0
        %1131 = vmatprep.subr.mxu0 0.0
        %1132 = vmatpush1.msra.mxu0 %v1009
        %1133 = vmatprep.subr.mxu0 0.0
        %1134 = vmatpush1.msra.mxu0 %v1008
        %1135 = vmatprep.subr.mxu0 0.0
        %1136 = vmatpush1.msra.mxu0 %v1007
        %1137 = vmatprep.subr.mxu0 0.0
        %1138 = vmatpush1.msra.mxu0 %v1006
        %1139 = vmatprep.subr.mxu0 0.0
        %1140 = vmatpush2.msra.mxu0 0.0
        %1141 = vmatprep.subr.mxu0 0.0
        %1142 = vmatpush2.msra.mxu0 0.0
        %1143 = vmatprep.subr.mxu0 0.0
        %1144 = vmatpush2.msra.mxu0 0.0
        %1145 = vmatprep.subr.mxu0 0.0
        %1146 = vmatpush2.msra.mxu0 0.0
        %1147 = vmatprep.subr.mxu0 0.0
        %1148 = vmatpush2.msra.mxu0 0.0
        %1149 = vmatprep.subr.mxu0 0.0
        %1150 = vmatpush2.msra.mxu0 0.0
        %1151 = vmatprep.subr.mxu0 0.0
        %1152 = vmatpush2.msra.mxu0 0.0
        %1153 = vmatprep.subr.mxu0 0.0
        %1154 = vmatpush2.msra.mxu0 0.0
        %1155 = vmatprep.subr.mxu0 0.0
        %1156 = vmatpush2.msra.mxu0 0.0
        %1157 = vmatprep.subr.mxu0 0.0
        %1158 = vmatpush2.msra.mxu0 0.0
        %1159 = vmatprep.subr.mxu0 0.0
        %1160 = vmatpush2.msra.mxu0 0.0
        %1161 = vmatprep.subr.mxu0 0.0
        %1162 = vmatpush2.msra.mxu0 0.0
        %1163 = vmatprep.subr.mxu0 0.0
        %1164 = vmatpush2.msra.mxu0 0.0
        %1165 = vmatprep.subr.mxu0 0.0
        %1166 = vmatpush2.msra.mxu0 0.0
        %1167 = vmatprep.subr.mxu0 0.0
        %1168 = vmatpush2.msra.mxu0 0.0
        %1169 = vmatprep.subr.mxu0 0.0
        %1170 = vmatpush2.msra.mxu0 0.0
        %1171 = vmatprep.mubr.f32.mxu0 0.0
        %1172 = vmatmul.mubr.f32.gmra.mxu0 %v1035
        %v1173 = vpop.f32.mrf.mxu0
        %v1174 = vadd.f32 0.0, %v1173
        %v1175 = vpop.f32.mrf.mxu0
        %1176 = vdwg.mxu0
        %1177 = vmatprep.subr.mxu0 0.0
        %1178 = vmatpush1.msra.mxu0 0.0
        %1179 = vmatprep.subr.mxu0 0.0
        %1180 = vmatpush1.msra.mxu0 0.0
        %1181 = vmatprep.subr.mxu0 0.0
        %1182 = vmatpush1.msra.mxu0 0.0
        %1183 = vmatprep.subr.mxu0 0.0
        %1184 = vmatpush1.msra.mxu0 0.0
        %1185 = vmatprep.subr.mxu0 0.0
        %1186 = vmatpush1.msra.mxu0 0.0
        %1187 = vmatprep.subr.mxu0 0.0
        %1188 = vmatpush1.msra.mxu0 0.0
        %1189 = vmatprep.subr.mxu0 0.0
        %1190 = vmatpush1.msra.mxu0 0.0
        %1191 = vmatprep.subr.mxu0 0.0
        %1192 = vmatpush1.msra.mxu0 0.0
        %1193 = vmatprep.subr.mxu0 0.0
        %1194 = vmatpush1.msra.mxu0 0.0
        %1195 = vmatprep.subr.mxu0 0.0
        %1196 = vmatpush1.msra.mxu0 0.0
        %1197 = vmatprep.subr.mxu0 0.0
        %1198 = vmatpush1.msra.mxu0 0.0
        %1199 = vmatprep.subr.mxu0 0.0
        %1200 = vmatpush1.msra.mxu0 0.0
        %1201 = vmatprep.subr.mxu0 0.0
        %1202 = vmatpush1.msra.mxu0 %v1013
        %1203 = vmatprep.subr.mxu0 0.0
        %1204 = vmatpush1.msra.mxu0 %v1012
        %1205 = vmatprep.subr.mxu0 0.0
        %1206 = vmatpush1.msra.mxu0 %v1011
        %1207 = vmatprep.subr.mxu0 0.0
        %1208 = vmatpush1.msra.mxu0 %v1010
        %1209 = vmatprep.subr.mxu0 0.0
        %1210 = vmatpush2.msra.mxu0 0.0
        %1211 = vmatprep.subr.mxu0 0.0
        %1212 = vmatpush2.msra.mxu0 0.0
        %1213 = vmatprep.subr.mxu0 0.0
        %1214 = vmatpush2.msra.mxu0 0.0
        %1215 = vmatprep.subr.mxu0 0.0
        %1216 = vmatpush2.msra.mxu0 0.0
        %1217 = vmatprep.subr.mxu0 0.0
        %1218 = vmatpush2.msra.mxu0 0.0
        %1219 = vmatprep.subr.mxu0 0.0
        %1220 = vmatpush2.msra.mxu0 0.0
        %1221 = vmatprep.subr.mxu0 0.0
        %1222 = vmatpush2.msra.mxu0 0.0
        %1223 = vmatprep.subr.mxu0 0.0
        %1224 = vmatpush2.msra.mxu0 0.0
        %1225 = vmatprep.subr.mxu0 0.0
        %1226 = vmatpush2.msra.mxu0 0.0
        %1227 = vmatprep.subr.mxu0 0.0
        %1228 = vmatpush2.msra.mxu0 0.0
        %1229 = vmatprep.subr.mxu0 0.0
        %1230 = vmatpush2.msra.mxu0 0.0
        %1231 = vmatprep.subr.mxu0 0.0
        %1232 = vmatpush2.msra.mxu0 0.0
        %1233 = vmatprep.subr.mxu0 0.0
        %1234 = vmatpush2.msra.mxu0 0.0
        %1235 = vmatprep.subr.mxu0 0.0
        %1236 = vmatpush2.msra.mxu0 0.0
        %1237 = vmatprep.subr.mxu0 0.0
        %1238 = vmatpush2.msra.mxu0 0.0
        %1239 = vmatprep.subr.mxu0 0.0
        %1240 = vmatpush2.msra.mxu0 0.0
        %1241 = vmatprep.mubr.f32.mxu0 0.0
        %1242 = vmatmul.mubr.f32.gmra.mxu0 %v1035
        %v1243 = vpop.f32.mrf.mxu0
        %v1244 = vadd.f32 0.0, %v1243
        %v1245 = vpop.f32.mrf.mxu0
        %1246 = vdwg.mxu0
        %1247 = vmatprep.subr.mxu0 0.0
        %1248 = vmatpush1.msra.mxu0 0.0
        %1249 = vmatprep.subr.mxu0 0.0
        %1250 = vmatpush1.msra.mxu0 0.0
        %1251 = vmatprep.subr.mxu0 0.0
        %1252 = vmatpush1.msra.mxu0 0.0
        %1253 = vmatprep.subr.mxu0 0.0
        %1254 = vmatpush1.msra.mxu0 0.0
        %1255 = vmatprep.subr.mxu0 0.0
        %1256 = vmatpush1.msra.mxu0 0.0
        %1257 = vmatprep.subr.mxu0 0.0
        %1258 = vmatpush1.msra.mxu0 0.0
        %1259 = vmatprep.subr.mxu0 0.0
        %1260 = vmatpush1.msra.mxu0 0.0
        %1261 = vmatprep.subr.mxu0 0.0
        %1262 = vmatpush1.msra.mxu0 0.0
        %1263 = vmatprep.subr.mxu0 0.0
        %1264 = vmatpush1.msra.mxu0 0.0
        %1265 = vmatprep.subr.mxu0 0.0
        %1266 = vmatpush1.msra.mxu0 0.0
        %1267 = vmatprep.subr.mxu0 0.0
        %1268 = vmatpush1.msra.mxu0 0.0
        %1269 = vmatprep.subr.mxu0 0.0
        %1270 = vmatpush1.msra.mxu0 0.0
        %1271 = vmatprep.subr.mxu0 0.0
        %1272 = vmatpush1.msra.mxu0 %v1017
        %1273 = vmatprep.subr.mxu0 0.0
        %1274 = vmatpush1.msra.mxu0 %v1016
        %1275 = vmatprep.subr.mxu0 0.0
        %1276 = vmatpush1.msra.mxu0 %v1015
        %1277 = vmatprep.subr.mxu0 0.0
        %1278 = vmatpush1.msra.mxu0 %v1014
        %1279 = vmatprep.subr.mxu0 0.0
        %1280 = vmatpush2.msra.mxu0 0.0
        %1281 = vmatprep.subr.mxu0 0.0
        %1282 = vmatpush2.msra.mxu0 0.0
        %1283 = vmatprep.subr.mxu0 0.0
        %1284 = vmatpush2.msra.mxu0 0.0
        %1285 = vmatprep.subr.mxu0 0.0
        %1286 = vmatpush2.msra.mxu0 0.0
        %1287 = vmatprep.subr.mxu0 0.0
        %1288 = vmatpush2.msra.mxu0 0.0
        %1289 = vmatprep.subr.mxu0 0.0
        %1290 = vmatpush2.msra.mxu0 0.0
        %1291 = vmatprep.subr.mxu0 0.0
        %1292 = vmatpush2.msra.mxu0 0.0
        %1293 = vmatprep.subr.mxu0 0.0
        %1294 = vmatpush2.msra.mxu0 0.0
        %1295 = vmatprep.subr.mxu0 0.0
        %1296 = vmatpush2.msra.mxu0 0.0
        %1297 = vmatprep.subr.mxu0 0.0
        %1298 = vmatpush2.msra.mxu0 0.0
        %1299 = vmatprep.subr.mxu0 0.0
        %1300 = vmatpush2.msra.mxu0 0.0
        %1301 = vmatprep.subr.mxu0 0.0
        %1302 = vmatpush2.msra.mxu0 0.0
        %1303 = vmatprep.subr.mxu0 0.0
        %1304 = vmatpush2.msra.mxu0 0.0
        %1305 = vmatprep.subr.mxu0 0.0
        %1306 = vmatpush2.msra.mxu0 0.0
        %1307 = vmatprep.subr.mxu0 0.0
        %1308 = vmatpush2.msra.mxu0 0.0
        %1309 = vmatprep.subr.mxu0 0.0
        %1310 = vmatpush2.msra.mxu0 0.0
        %1311 = vmatprep.mubr.f32.mxu0 0.0
        %1312 = vmatmul.mubr.f32.gmra.mxu0 %v1035
        %v1313 = vpop.f32.mrf.mxu0
        %v1314 = vadd.f32 0.0, %v1313
        %v1315 = vpop.f32.mrf.mxu0
        %1316 = vdwg.mxu0
        %1317 = vmatprep.subr.mxu0 0.0
        %1318 = vmatpush1.msra.mxu0 0.0
        %1319 = vmatprep.subr.mxu0 0.0
        %1320 = vmatpush1.msra.mxu0 0.0
        %1321 = vmatprep.subr.mxu0 0.0
        %1322 = vmatpush1.msra.mxu0 0.0
        %1323 = vmatprep.subr.mxu0 0.0
        %1324 = vmatpush1.msra.mxu0 0.0
        %1325 = vmatprep.subr.mxu0 0.0
        %1326 = vmatpush1.msra.mxu0 0.0
        %1327 = vmatprep.subr.mxu0 0.0
        %1328 = vmatpush1.msra.mxu0 0.0
        %1329 = vmatprep.subr.mxu0 0.0
        %1330 = vmatpush1.msra.mxu0 0.0
        %1331 = vmatprep.subr.mxu0 0.0
        %1332 = vmatpush1.msra.mxu0 0.0
        %1333 = vmatprep.subr.mxu0 0.0
        %1334 = vmatpush1.msra.mxu0 0.0
        %1335 = vmatprep.subr.mxu0 0.0
        %1336 = vmatpush1.msra.mxu0 0.0
        %1337 = vmatprep.subr.mxu0 0.0
        %1338 = vmatpush1.msra.mxu0 0.0
        %1339 = vmatprep.subr.mxu0 0.0
        %1340 = vmatpush1.msra.mxu0 0.0
        %1341 = vmatprep.subr.mxu0 0.0
        %1342 = vmatpush1.msra.mxu0 %v1021
        %1343 = vmatprep.subr.mxu0 0.0
        %1344 = vmatpush1.msra.mxu0 %v1020
        %1345 = vmatprep.subr.mxu0 0.0
        %1346 = vmatpush1.msra.mxu0 %v1019
        %1347 = vmatprep.subr.mxu0 0.0
        %1348 = vmatpush1.msra.mxu0 %v1018
        %1349 = vmatprep.subr.mxu0 0.0
        %1350 = vmatpush2.msra.mxu0 0.0
        %1351 = vmatprep.subr.mxu0 0.0
        %1352 = vmatpush2.msra.mxu0 0.0
        %1353 = vmatprep.subr.mxu0 0.0
        %1354 = vmatpush2.msra.mxu0 0.0
        %1355 = vmatprep.subr.mxu0 0.0
        %1356 = vmatpush2.msra.mxu0 0.0
        %1357 = vmatprep.subr.mxu0 0.0
        %1358 = vmatpush2.msra.mxu0 0.0
        %1359 = vmatprep.subr.mxu0 0.0
        %1360 = vmatpush2.msra.mxu0 0.0
        %1361 = vmatprep.subr.mxu0 0.0
        %1362 = vmatpush2.msra.mxu0 0.0
        %1363 = vmatprep.subr.mxu0 0.0
        %1364 = vmatpush2.msra.mxu0 0.0
        %1365 = vmatprep.subr.mxu0 0.0
        %1366 = vmatpush2.msra.mxu0 0.0
        %1367 = vmatprep.subr.mxu0 0.0
        %1368 = vmatpush2.msra.mxu0 0.0
        %1369 = vmatprep.subr.mxu0 0.0
        %1370 = vmatpush2.msra.mxu0 0.0
        %1371 = vmatprep.subr.mxu0 0.0
        %1372 = vmatpush2.msra.mxu0 0.0
        %1373 = vmatprep.subr.mxu0 0.0
        %1374 = vmatpush2.msra.mxu0 0.0
        %1375 = vmatprep.subr.mxu0 0.0
        %1376 = vmatpush2.msra.mxu0 0.0
        %1377 = vmatprep.subr.mxu0 0.0
        %1378 = vmatpush2.msra.mxu0 0.0
        %1379 = vmatprep.subr.mxu0 0.0
        %1380 = vmatpush2.msra.mxu0 0.0
        %1381 = vmatprep.mubr.f32.mxu0 0.0
        %1382 = vmatmul.mubr.f32.gmra.mxu0 %v1035
        %v1383 = vpop.f32.mrf.mxu0
        %v1384 = vadd.f32 0.0, %v1383
        %v1385 = vpop.f32.mrf.mxu0
        %1386 = vdwg.mxu0
        %1387 = vmatprep.subr.mxu0 0.0
        %1388 = vmatpush1.msra.mxu0 0.0
        %1389 = vmatprep.subr.mxu0 0.0
        %1390 = vmatpush1.msra.mxu0 0.0
        %1391 = vmatprep.subr.mxu0 0.0
        %1392 = vmatpush1.msra.mxu0 0.0
        %1393 = vmatprep.subr.mxu0 0.0
        %1394 = vmatpush1.msra.mxu0 0.0
        %1395 = vmatprep.subr.mxu0 0.0
        %1396 = vmatpush1.msra.mxu0 0.0
        %1397 = vmatprep.subr.mxu0 0.0
        %1398 = vmatpush1.msra.mxu0 0.0
        %1399 = vmatprep.subr.mxu0 0.0
        %1400 = vmatpush1.msra.mxu0 0.0
        %1401 = vmatprep.subr.mxu0 0.0
        %1402 = vmatpush1.msra.mxu0 0.0
        %1403 = vmatprep.subr.mxu0 0.0
        %1404 = vmatpush1.msra.mxu0 0.0
        %1405 = vmatprep.subr.mxu0 0.0
        %1406 = vmatpush1.msra.mxu0 0.0
        %1407 = vmatprep.subr.mxu0 0.0
        %1408 = vmatpush1.msra.mxu0 0.0
        %1409 = vmatprep.subr.mxu0 0.0
        %1410 = vmatpush1.msra.mxu0 0.0
        %1411 = vmatprep.subr.mxu0 0.0
        %1412 = vmatpush1.msra.mxu0 %v1025
        %1413 = vmatprep.subr.mxu0 0.0
        %1414 = vmatpush1.msra.mxu0 %v1024
        %1415 = vmatprep.subr.mxu0 0.0
        %1416 = vmatpush1.msra.mxu0 %v1023
        %1417 = vmatprep.subr.mxu0 0.0
        %1418 = vmatpush1.msra.mxu0 %v1022
        %1419 = vmatprep.subr.mxu0 0.0
        %1420 = vmatpush2.msra.mxu0 0.0
        %1421 = vmatprep.subr.mxu0 0.0
        %1422 = vmatpush2.msra.mxu0 0.0
        %1423 = vmatprep.subr.mxu0 0.0
        %1424 = vmatpush2.msra.mxu0 0.0
        %1425 = vmatprep.subr.mxu0 0.0
        %1426 = vmatpush2.msra.mxu0 0.0
        %1427 = vmatprep.subr.mxu0 0.0
        %1428 = vmatpush2.msra.mxu0 0.0
        %1429 = vmatprep.subr.mxu0 0.0
        %1430 = vmatpush2.msra.mxu0 0.0
        %1431 = vmatprep.subr.mxu0 0.0
        %1432 = vmatpush2.msra.mxu0 0.0
        %1433 = vmatprep.subr.mxu0 0.0
        %1434 = vmatpush2.msra.mxu0 0.0
        %1435 = vmatprep.subr.mxu0 0.0
        %1436 = vmatpush2.msra.mxu0 0.0
        %1437 = vmatprep.subr.mxu0 0.0
        %1438 = vmatpush2.msra.mxu0 0.0
        %1439 = vmatprep.subr.mxu0 0.0
        %1440 = vmatpush2.msra.mxu0 0.0
        %1441 = vmatprep.subr.mxu0 0.0
        %1442 = vmatpush2.msra.mxu0 0.0
        %1443 = vmatprep.subr.mxu0 0.0
        %1444 = vmatpush2.msra.mxu0 0.0
        %1445 = vmatprep.subr.mxu0 0.0
        %1446 = vmatpush2.msra.mxu0 0.0
        %1447 = vmatprep.subr.mxu0 0.0
        %1448 = vmatpush2.msra.mxu0 0.0
        %1449 = vmatprep.subr.mxu0 0.0
        %1450 = vmatpush2.msra.mxu0 0.0
        %1451 = vmatprep.mubr.f32.mxu0 0.0
        %1452 = vmatmul.mubr.f32.gmra.mxu0 %v1035
        %v1453 = vpop.f32.mrf.mxu0
        %v1454 = vadd.f32 0.0, %v1453
        %v1455 = vpop.f32.mrf.mxu0
        %1456 = vdwg.mxu0
        %1457 = vmatprep.subr.mxu0 0.0
        %1458 = vmatpush1.msra.mxu0 0.0
        %1459 = vmatprep.subr.mxu0 0.0
        %1460 = vmatpush1.msra.mxu0 0.0
        %1461 = vmatprep.subr.mxu0 0.0
        %1462 = vmatpush1.msra.mxu0 0.0
        %1463 = vmatprep.subr.mxu0 0.0
        %1464 = vmatpush1.msra.mxu0 0.0
        %1465 = vmatprep.subr.mxu0 0.0
        %1466 = vmatpush1.msra.mxu0 0.0
        %1467 = vmatprep.subr.mxu0 0.0
        %1468 = vmatpush1.msra.mxu0 0.0
        %1469 = vmatprep.subr.mxu0 0.0
        %1470 = vmatpush1.msra.mxu0 0.0
        %1471 = vmatprep.subr.mxu0 0.0
        %1472 = vmatpush1.msra.mxu0 0.0
        %1473 = vmatprep.subr.mxu0 0.0
        %1474 = vmatpush1.msra.mxu0 0.0
        %1475 = vmatprep.subr.mxu0 0.0
        %1476 = vmatpush1.msra.mxu0 0.0
        %1477 = vmatprep.subr.mxu0 0.0
        %1478 = vmatpush1.msra.mxu0 0.0
        %1479 = vmatprep.subr.mxu0 0.0
        %1480 = vmatpush1.msra.mxu0 0.0
        %1481 = vmatprep.subr.mxu0 0.0
        %1482 = vmatpush1.msra.mxu0 %v1029
        %1483 = vmatprep.subr.mxu0 0.0
        %1484 = vmatpush1.msra.mxu0 %v1028
        %1485 = vmatprep.subr.mxu0 0.0
        %1486 = vmatpush1.msra.mxu0 %v1027
        %1487 = vmatprep.subr.mxu0 0.0
        %1488 = vmatpush1.msra.mxu0 %v1026
        %1489 = vmatprep.subr.mxu0 0.0
        %1490 = vmatpush2.msra.mxu0 0.0
        %1491 = vmatprep.subr.mxu0 0.0
        %1492 = vmatpush2.msra.mxu0 0.0
        %1493 = vmatprep.subr.mxu0 0.0
        %1494 = vmatpush2.msra.mxu0 0.0
        %1495 = vmatprep.subr.mxu0 0.0
        %1496 = vmatpush2.msra.mxu0 0.0
        %1497 = vmatprep.subr.mxu0 0.0
        %1498 = vmatpush2.msra.mxu0 0.0
        %1499 = vmatprep.subr.mxu0 0.0
        %1500 = vmatpush2.msra.mxu0 0.0
        %1501 = vmatprep.subr.mxu0 0.0
        %1502 = vmatpush2.msra.mxu0 0.0
        %1503 = vmatprep.subr.mxu0 0.0
        %1504 = vmatpush2.msra.mxu0 0.0
        %1505 = vmatprep.subr.mxu0 0.0
        %1506 = vmatpush2.msra.mxu0 0.0
        %1507 = vmatprep.subr.mxu0 0.0
        %1508 = vmatpush2.msra.mxu0 0.0
        %1509 = vmatprep.subr.mxu0 0.0
        %1510 = vmatpush2.msra.mxu0 0.0
        %1511 = vmatprep.subr.mxu0 0.0
        %1512 = vmatpush2.msra.mxu0 0.0
        %1513 = vmatprep.subr.mxu0 0.0
        %1514 = vmatpush2.msra.mxu0 0.0
        %1515 = vmatprep.subr.mxu0 0.0
        %1516 = vmatpush2.msra.mxu0 0.0
        %1517 = vmatprep.subr.mxu0 0.0
        %1518 = vmatpush2.msra.mxu0 0.0
        %1519 = vmatprep.subr.mxu0 0.0
        %1520 = vmatpush2.msra.mxu0 0.0
        %1521 = vmatprep.mubr.f32.mxu0 0.0
        %1522 = vmatmul.mubr.f32.gmra.mxu0 %v1035
        %v1523 = vpop.f32.mrf.mxu0
        %v1524 = vadd.f32 0.0, %v1523
        %v1525 = vpop.f32.mrf.mxu0
        %1526 = vdwg.mxu0
        %1527 = vmatprep.subr.mxu0 0.0
        %1528 = vmatpush1.msra.mxu0 0.0
        %1529 = vmatprep.subr.mxu0 0.0
        %1530 = vmatpush1.msra.mxu0 0.0
        %1531 = vmatprep.subr.mxu0 0.0
        %1532 = vmatpush1.msra.mxu0 0.0
        %1533 = vmatprep.subr.mxu0 0.0
        %1534 = vmatpush1.msra.mxu0 0.0
        %1535 = vmatprep.subr.mxu0 0.0
        %1536 = vmatpush1.msra.mxu0 0.0
        %1537 = vmatprep.subr.mxu0 0.0
        %1538 = vmatpush1.msra.mxu0 0.0
        %1539 = vmatprep.subr.mxu0 0.0
        %1540 = vmatpush1.msra.mxu0 0.0
        %1541 = vmatprep.subr.mxu0 0.0
        %1542 = vmatpush1.msra.mxu0 0.0
        %1543 = vmatprep.subr.mxu0 0.0
        %1544 = vmatpush1.msra.mxu0 0.0
        %1545 = vmatprep.subr.mxu0 0.0
        %1546 = vmatpush1.msra.mxu0 0.0
        %1547 = vmatprep.subr.mxu0 0.0
        %1548 = vmatpush1.msra.mxu0 0.0
        %1549 = vmatprep.subr.mxu0 0.0
        %1550 = vmatpush1.msra.mxu0 0.0
        %1551 = vmatprep.subr.mxu0 0.0
        %1552 = vmatpush1.msra.mxu0 %v1033
        %1553 = vmatprep.subr.mxu0 0.0
        %1554 = vmatpush1.msra.mxu0 %v1032
        %1555 = vmatprep.subr.mxu0 0.0
        %1556 = vmatpush1.msra.mxu0 %v1031
        %1557 = vmatprep.subr.mxu0 0.0
        %1558 = vmatpush1.msra.mxu0 %v1030
        %1559 = vmatprep.subr.mxu0 0.0
        %1560 = vmatpush2.msra.mxu0 0.0
        %1561 = vmatprep.subr.mxu0 0.0
        %1562 = vmatpush2.msra.mxu0 0.0
        %1563 = vmatprep.subr.mxu0 0.0
        %1564 = vmatpush2.msra.mxu0 0.0
        %1565 = vmatprep.subr.mxu0 0.0
        %1566 = vmatpush2.msra.mxu0 0.0
        %1567 = vmatprep.subr.mxu0 0.0
        %1568 = vmatpush2.msra.mxu0 0.0
        %1569 = vmatprep.subr.mxu0 0.0
        %1570 = vmatpush2.msra.mxu0 0.0
        %1571 = vmatprep.subr.mxu0 0.0
        %1572 = vmatpush2.msra.mxu0 0.0
        %1573 = vmatprep.subr.mxu0 0.0
        %1574 = vmatpush2.msra.mxu0 0.0
        %1575 = vmatprep.subr.mxu0 0.0
        %1576 = vmatpush2.msra.mxu0 0.0
        %1577 = vmatprep.subr.mxu0 0.0
        %1578 = vmatpush2.msra.mxu0 0.0
        %1579 = vmatprep.subr.mxu0 0.0
        %1580 = vmatpush2.msra.mxu0 0.0
        %1581 = vmatprep.subr.mxu0 0.0
        %1582 = vmatpush2.msra.mxu0 0.0
        %1583 = vmatprep.subr.mxu0 0.0
        %1584 = vmatpush2.msra.mxu0 0.0
        %1585 = vmatprep.subr.mxu0 0.0
        %1586 = vmatpush2.msra.mxu0 0.0
        %1587 = vmatprep.subr.mxu0 0.0
        %1588 = vmatpush2.msra.mxu0 0.0
        %1589 = vmatprep.subr.mxu0 0.0
        %1590 = vmatpush2.msra.mxu0 0.0
        %1591 = vmatprep.mubr.f32.mxu0 0.0
        %1592 = vmatmul.mubr.f32.gmra.mxu0 %v1035
        %v1593 = vpop.f32.mrf.mxu0
        %v1594 = vadd.f32 0.0, %v1593
        %v1595 = vpop.f32.mrf.mxu0
        %1596 = vdwg.mxu0
        %v1597 = vld [vmem:[%s5] sm:$0xff]
        %v1598 = vld [vmem:[%s5 + $0x8] sm:$0xff]
        %v1599 = vld [vmem:[%s5 + $0x10] sm:$0xff]
        %v1600 = vld [vmem:[%s5 + $0x18] sm:$0xff]
        %v1601 = vld [vmem:[%s5 + $0x20] sm:$0xff]
        %v1602 = vld [vmem:[%s5 + $0x28] sm:$0xff]
        %v1603 = vld [vmem:[%s5 + $0x30] sm:$0xff]
        %v1604 = vld [vmem:[%s5 + $0x38] sm:$0xff]
        %v1605 = vld [vmem:[%s5 + $0x40] sm:$0xff]
        %v1606 = vld [vmem:[%s5 + $0x48] sm:$0xff]
        %v1607 = vld [vmem:[%s5 + $0x50] sm:$0xff]
        %v1608 = vld [vmem:[%s5 + $0x58] sm:$0xff]
        %v1609 = vld [vmem:[%s5 + $0x60] sm:$0xff]
        %v1610 = vld [vmem:[%s5 + $0x68] sm:$0xff]
        %v1611 = vld [vmem:[%s5 + $0x70] sm:$0xff]
        %v1612 = vld [vmem:[%s5 + $0x78] sm:$0xff]
        %v1613 = vld [vmem:[%s5 + $0x80] sm:$0xff]
        %v1614 = vld [vmem:[%s5 + $0x88] sm:$0xff]
        %v1615 = vld [vmem:[%s5 + $0x90] sm:$0xff]
        %v1616 = vld [vmem:[%s5 + $0x98] sm:$0xff]
        %v1617 = vld [vmem:[%s5 + $0xa0] sm:$0xff]
        %v1618 = vld [vmem:[%s5 + $0xa8] sm:$0xff]
        %v1619 = vld [vmem:[%s5 + $0xb0] sm:$0xff]
        %v1620 = vld [vmem:[%s5 + $0xb8] sm:$0xff]
        %v1621 = vld [vmem:[%s5 + $0xc0] sm:$0xff]
        %v1622 = vld [vmem:[%s5 + $0xc8] sm:$0xff]
        %v1623 = vld [vmem:[%s5 + $0xd0] sm:$0xff]
        %v1624 = vld [vmem:[%s5 + $0xd8] sm:$0xff]
        %v1625 = vld [vmem:[%s5 + $0xe0] sm:$0xff]
        %v1626 = vld [vmem:[%s5 + $0xe8] sm:$0xff]
        %v1627 = vld [vmem:[%s5 + $0xf0] sm:$0xff]
        %v1628 = vld [vmem:[%s5 + $0xf8] sm:$0xff]
        %v1630 = vsel %vm438, %v405, 0
        %1632 = vmatprep.subr.mxu0 0.0
        %1633 = vmatpush1.msra.mxu0 0.0
        %1634 = vmatprep.subr.mxu0 0.0
        %1635 = vmatpush1.msra.mxu0 0.0
        %1636 = vmatprep.subr.mxu0 0.0
        %1637 = vmatpush1.msra.mxu0 0.0
        %1638 = vmatprep.subr.mxu0 0.0
        %1639 = vmatpush1.msra.mxu0 0.0
        %1640 = vmatprep.subr.mxu0 0.0
        %1641 = vmatpush1.msra.mxu0 0.0
        %1642 = vmatprep.subr.mxu0 0.0
        %1643 = vmatpush1.msra.mxu0 0.0
        %1644 = vmatprep.subr.mxu0 0.0
        %1645 = vmatpush1.msra.mxu0 0.0
        %1646 = vmatprep.subr.mxu0 0.0
        %1647 = vmatpush1.msra.mxu0 0.0
        %1648 = vmatprep.subr.mxu0 0.0
        %1649 = vmatpush1.msra.mxu0 0.0
        %1650 = vmatprep.subr.mxu0 0.0
        %1651 = vmatpush1.msra.mxu0 0.0
        %1652 = vmatprep.subr.mxu0 0.0
        %1653 = vmatpush1.msra.mxu0 0.0
        %1654 = vmatprep.subr.mxu0 0.0
        %1655 = vmatpush1.msra.mxu0 0.0
        %1656 = vmatprep.subr.mxu0 0.0
        %1657 = vmatpush1.msra.mxu0 %v1600
        %1658 = vmatprep.subr.mxu0 0.0
        %1659 = vmatpush1.msra.mxu0 %v1599
        %1660 = vmatprep.subr.mxu0 0.0
        %1661 = vmatpush1.msra.mxu0 %v1598
        %1662 = vmatprep.subr.mxu0 0.0
        %1663 = vmatpush1.msra.mxu0 %v1597
        %1664 = vmatprep.subr.mxu0 0.0
        %1665 = vmatpush2.msra.mxu0 0.0
        %1666 = vmatprep.subr.mxu0 0.0
        %1667 = vmatpush2.msra.mxu0 0.0
        %1668 = vmatprep.subr.mxu0 0.0
        %1669 = vmatpush2.msra.mxu0 0.0
        %1670 = vmatprep.subr.mxu0 0.0
        %1671 = vmatpush2.msra.mxu0 0.0
        %1672 = vmatprep.subr.mxu0 0.0
        %1673 = vmatpush2.msra.mxu0 0.0
        %1674 = vmatprep.subr.mxu0 0.0
        %1675 = vmatpush2.msra.mxu0 0.0
        %1676 = vmatprep.subr.mxu0 0.0
        %1677 = vmatpush2.msra.mxu0 0.0
        %1678 = vmatprep.subr.mxu0 0.0
        %1679 = vmatpush2.msra.mxu0 0.0
        %1680 = vmatprep.subr.mxu0 0.0
        %1681 = vmatpush2.msra.mxu0 0.0
        %1682 = vmatprep.subr.mxu0 0.0
        %1683 = vmatpush2.msra.mxu0 0.0
        %1684 = vmatprep.subr.mxu0 0.0
        %1685 = vmatpush2.msra.mxu0 0.0
        %1686 = vmatprep.subr.mxu0 0.0
        %1687 = vmatpush2.msra.mxu0 0.0
        %1688 = vmatprep.subr.mxu0 0.0
        %1689 = vmatpush2.msra.mxu0 0.0
        %1690 = vmatprep.subr.mxu0 0.0
        %1691 = vmatpush2.msra.mxu0 0.0
        %1692 = vmatprep.subr.mxu0 0.0
        %1693 = vmatpush2.msra.mxu0 0.0
        %1694 = vmatprep.subr.mxu0 0.0
        %1695 = vmatpush2.msra.mxu0 0.0
        %1696 = vmatprep.mubr.f32.mxu0 0.0
        %1697 = vmatmul.mubr.f32.gmra.mxu0 %v1630
        %v1698 = vpop.f32.mrf.mxu0
        %v1699 = vadd.f32 0.0, %v1698
        %v1700 = vpop.f32.mrf.mxu0
        %1701 = vdwg.mxu0
        %1702 = vmatprep.subr.mxu0 0.0
        %1703 = vmatpush1.msra.mxu0 0.0
        %1704 = vmatprep.subr.mxu0 0.0
        %1705 = vmatpush1.msra.mxu0 0.0
        %1706 = vmatprep.subr.mxu0 0.0
        %1707 = vmatpush1.msra.mxu0 0.0
        %1708 = vmatprep.subr.mxu0 0.0
        %1709 = vmatpush1.msra.mxu0 0.0
        %1710 = vmatprep.subr.mxu0 0.0
        %1711 = vmatpush1.msra.mxu0 0.0
        %1712 = vmatprep.subr.mxu0 0.0
        %1713 = vmatpush1.msra.mxu0 0.0
        %1714 = vmatprep.subr.mxu0 0.0
        %1715 = vmatpush1.msra.mxu0 0.0
        %1716 = vmatprep.subr.mxu0 0.0
        %1717 = vmatpush1.msra.mxu0 0.0
        %1718 = vmatprep.subr.mxu0 0.0
        %1719 = vmatpush1.msra.mxu0 0.0
        %1720 = vmatprep.subr.mxu0 0.0
        %1721 = vmatpush1.msra.mxu0 0.0
        %1722 = vmatprep.subr.mxu0 0.0
        %1723 = vmatpush1.msra.mxu0 0.0
        %1724 = vmatprep.subr.mxu0 0.0
        %1725 = vmatpush1.msra.mxu0 0.0
        %1726 = vmatprep.subr.mxu0 0.0
        %1727 = vmatpush1.msra.mxu0 %v1604
        %1728 = vmatprep.subr.mxu0 0.0
        %1729 = vmatpush1.msra.mxu0 %v1603
        %1730 = vmatprep.subr.mxu0 0.0
        %1731 = vmatpush1.msra.mxu0 %v1602
        %1732 = vmatprep.subr.mxu0 0.0
        %1733 = vmatpush1.msra.mxu0 %v1601
        %1734 = vmatprep.subr.mxu0 0.0
        %1735 = vmatpush2.msra.mxu0 0.0
        %1736 = vmatprep.subr.mxu0 0.0
        %1737 = vmatpush2.msra.mxu0 0.0
        %1738 = vmatprep.subr.mxu0 0.0
        %1739 = vmatpush2.msra.mxu0 0.0
        %1740 = vmatprep.subr.mxu0 0.0
        %1741 = vmatpush2.msra.mxu0 0.0
        %1742 = vmatprep.subr.mxu0 0.0
        %1743 = vmatpush2.msra.mxu0 0.0
        %1744 = vmatprep.subr.mxu0 0.0
        %1745 = vmatpush2.msra.mxu0 0.0
        %1746 = vmatprep.subr.mxu0 0.0
        %1747 = vmatpush2.msra.mxu0 0.0
        %1748 = vmatprep.subr.mxu0 0.0
        %1749 = vmatpush2.msra.mxu0 0.0
        %1750 = vmatprep.subr.mxu0 0.0
        %1751 = vmatpush2.msra.mxu0 0.0
        %1752 = vmatprep.subr.mxu0 0.0
        %1753 = vmatpush2.msra.mxu0 0.0
        %1754 = vmatprep.subr.mxu0 0.0
        %1755 = vmatpush2.msra.mxu0 0.0
        %1756 = vmatprep.subr.mxu0 0.0
        %1757 = vmatpush2.msra.mxu0 0.0
        %1758 = vmatprep.subr.mxu0 0.0
        %1759 = vmatpush2.msra.mxu0 0.0
        %1760 = vmatprep.subr.mxu0 0.0
        %1761 = vmatpush2.msra.mxu0 0.0
        %1762 = vmatprep.subr.mxu0 0.0
        %1763 = vmatpush2.msra.mxu0 0.0
        %1764 = vmatprep.subr.mxu0 0.0
        %1765 = vmatpush2.msra.mxu0 0.0
        %1766 = vmatprep.mubr.f32.mxu0 0.0
        %1767 = vmatmul.mubr.f32.gmra.mxu0 %v1630
        %v1768 = vpop.f32.mrf.mxu0
        %v1769 = vadd.f32 0.0, %v1768
        %v1770 = vpop.f32.mrf.mxu0
        %1771 = vdwg.mxu0
        %1772 = vmatprep.subr.mxu0 0.0
        %1773 = vmatpush1.msra.mxu0 0.0
        %1774 = vmatprep.subr.mxu0 0.0
        %1775 = vmatpush1.msra.mxu0 0.0
        %1776 = vmatprep.subr.mxu0 0.0
        %1777 = vmatpush1.msra.mxu0 0.0
        %1778 = vmatprep.subr.mxu0 0.0
        %1779 = vmatpush1.msra.mxu0 0.0
        %1780 = vmatprep.subr.mxu0 0.0
        %1781 = vmatpush1.msra.mxu0 0.0
        %1782 = vmatprep.subr.mxu0 0.0
        %1783 = vmatpush1.msra.mxu0 0.0
        %1784 = vmatprep.subr.mxu0 0.0
        %1785 = vmatpush1.msra.mxu0 0.0
        %1786 = vmatprep.subr.mxu0 0.0
        %1787 = vmatpush1.msra.mxu0 0.0
        %1788 = vmatprep.subr.mxu0 0.0
        %1789 = vmatpush1.msra.mxu0 0.0
        %1790 = vmatprep.subr.mxu0 0.0
        %1791 = vmatpush1.msra.mxu0 0.0
        %1792 = vmatprep.subr.mxu0 0.0
        %1793 = vmatpush1.msra.mxu0 0.0
        %1794 = vmatprep.subr.mxu0 0.0
        %1795 = vmatpush1.msra.mxu0 0.0
        %1796 = vmatprep.subr.mxu0 0.0
        %1797 = vmatpush1.msra.mxu0 %v1608
        %1798 = vmatprep.subr.mxu0 0.0
        %1799 = vmatpush1.msra.mxu0 %v1607
        %1800 = vmatprep.subr.mxu0 0.0
        %1801 = vmatpush1.msra.mxu0 %v1606
        %1802 = vmatprep.subr.mxu0 0.0
        %1803 = vmatpush1.msra.mxu0 %v1605
        %1804 = vmatprep.subr.mxu0 0.0
        %1805 = vmatpush2.msra.mxu0 0.0
        %1806 = vmatprep.subr.mxu0 0.0
        %1807 = vmatpush2.msra.mxu0 0.0
        %1808 = vmatprep.subr.mxu0 0.0
        %1809 = vmatpush2.msra.mxu0 0.0
        %1810 = vmatprep.subr.mxu0 0.0
        %1811 = vmatpush2.msra.mxu0 0.0
        %1812 = vmatprep.subr.mxu0 0.0
        %1813 = vmatpush2.msra.mxu0 0.0
        %1814 = vmatprep.subr.mxu0 0.0
        %1815 = vmatpush2.msra.mxu0 0.0
        %1816 = vmatprep.subr.mxu0 0.0
        %1817 = vmatpush2.msra.mxu0 0.0
        %1818 = vmatprep.subr.mxu0 0.0
        %1819 = vmatpush2.msra.mxu0 0.0
        %1820 = vmatprep.subr.mxu0 0.0
        %1821 = vmatpush2.msra.mxu0 0.0
        %1822 = vmatprep.subr.mxu0 0.0
        %1823 = vmatpush2.msra.mxu0 0.0
        %1824 = vmatprep.subr.mxu0 0.0
        %1825 = vmatpush2.msra.mxu0 0.0
        %1826 = vmatprep.subr.mxu0 0.0
        %1827 = vmatpush2.msra.mxu0 0.0
        %1828 = vmatprep.subr.mxu0 0.0
        %1829 = vmatpush2.msra.mxu0 0.0
        %1830 = vmatprep.subr.mxu0 0.0
        %1831 = vmatpush2.msra.mxu0 0.0
        %1832 = vmatprep.subr.mxu0 0.0
        %1833 = vmatpush2.msra.mxu0 0.0
        %1834 = vmatprep.subr.mxu0 0.0
        %1835 = vmatpush2.msra.mxu0 0.0
        %1836 = vmatprep.mubr.f32.mxu0 0.0
        %1837 = vmatmul.mubr.f32.gmra.mxu0 %v1630
        %v1838 = vpop.f32.mrf.mxu0
        %v1839 = vadd.f32 0.0, %v1838
        %v1840 = vpop.f32.mrf.mxu0
        %1841 = vdwg.mxu0
        %1842 = vmatprep.subr.mxu0 0.0
        %1843 = vmatpush1.msra.mxu0 0.0
        %1844 = vmatprep.subr.mxu0 0.0
        %1845 = vmatpush1.msra.mxu0 0.0
        %1846 = vmatprep.subr.mxu0 0.0
        %1847 = vmatpush1.msra.mxu0 0.0
        %1848 = vmatprep.subr.mxu0 0.0
        %1849 = vmatpush1.msra.mxu0 0.0
        %1850 = vmatprep.subr.mxu0 0.0
        %1851 = vmatpush1.msra.mxu0 0.0
        %1852 = vmatprep.subr.mxu0 0.0
        %1853 = vmatpush1.msra.mxu0 0.0
        %1854 = vmatprep.subr.mxu0 0.0
        %1855 = vmatpush1.msra.mxu0 0.0
        %1856 = vmatprep.subr.mxu0 0.0
        %1857 = vmatpush1.msra.mxu0 0.0
        %1858 = vmatprep.subr.mxu0 0.0
        %1859 = vmatpush1.msra.mxu0 0.0
        %1860 = vmatprep.subr.mxu0 0.0
        %1861 = vmatpush1.msra.mxu0 0.0
        %1862 = vmatprep.subr.mxu0 0.0
        %1863 = vmatpush1.msra.mxu0 0.0
        %1864 = vmatprep.subr.mxu0 0.0
        %1865 = vmatpush1.msra.mxu0 0.0
        %1866 = vmatprep.subr.mxu0 0.0
        %1867 = vmatpush1.msra.mxu0 %v1612
        %1868 = vmatprep.subr.mxu0 0.0
        %1869 = vmatpush1.msra.mxu0 %v1611
        %1870 = vmatprep.subr.mxu0 0.0
        %1871 = vmatpush1.msra.mxu0 %v1610
        %1872 = vmatprep.subr.mxu0 0.0
        %1873 = vmatpush1.msra.mxu0 %v1609
        %1874 = vmatprep.subr.mxu0 0.0
        %1875 = vmatpush2.msra.mxu0 0.0
        %1876 = vmatprep.subr.mxu0 0.0
        %1877 = vmatpush2.msra.mxu0 0.0
        %1878 = vmatprep.subr.mxu0 0.0
        %1879 = vmatpush2.msra.mxu0 0.0
        %1880 = vmatprep.subr.mxu0 0.0
        %1881 = vmatpush2.msra.mxu0 0.0
        %1882 = vmatprep.subr.mxu0 0.0
        %1883 = vmatpush2.msra.mxu0 0.0
        %1884 = vmatprep.subr.mxu0 0.0
        %1885 = vmatpush2.msra.mxu0 0.0
        %1886 = vmatprep.subr.mxu0 0.0
        %1887 = vmatpush2.msra.mxu0 0.0
        %1888 = vmatprep.subr.mxu0 0.0
        %1889 = vmatpush2.msra.mxu0 0.0
        %1890 = vmatprep.subr.mxu0 0.0
        %1891 = vmatpush2.msra.mxu0 0.0
        %1892 = vmatprep.subr.mxu0 0.0
        %1893 = vmatpush2.msra.mxu0 0.0
        %1894 = vmatprep.subr.mxu0 0.0
        %1895 = vmatpush2.msra.mxu0 0.0
        %1896 = vmatprep.subr.mxu0 0.0
        %1897 = vmatpush2.msra.mxu0 0.0
        %1898 = vmatprep.subr.mxu0 0.0
        %1899 = vmatpush2.msra.mxu0 0.0
        %1900 = vmatprep.subr.mxu0 0.0
        %1901 = vmatpush2.msra.mxu0 0.0
        %1902 = vmatprep.subr.mxu0 0.0
        %1903 = vmatpush2.msra.mxu0 0.0
        %1904 = vmatprep.subr.mxu0 0.0
        %1905 = vmatpush2.msra.mxu0 0.0
        %1906 = vmatprep.mubr.f32.mxu0 0.0
        %1907 = vmatmul.mubr.f32.gmra.mxu0 %v1630
        %v1908 = vpop.f32.mrf.mxu0
        %v1909 = vadd.f32 0.0, %v1908
        %v1910 = vpop.f32.mrf.mxu0
        %1911 = vdwg.mxu0
        %1912 = vmatprep.subr.mxu0 0.0
        %1913 = vmatpush1.msra.mxu0 0.0
        %1914 = vmatprep.subr.mxu0 0.0
        %1915 = vmatpush1.msra.mxu0 0.0
        %1916 = vmatprep.subr.mxu0 0.0
        %1917 = vmatpush1.msra.mxu0 0.0
        %1918 = vmatprep.subr.mxu0 0.0
        %1919 = vmatpush1.msra.mxu0 0.0
        %1920 = vmatprep.subr.mxu0 0.0
        %1921 = vmatpush1.msra.mxu0 0.0
        %1922 = vmatprep.subr.mxu0 0.0
        %1923 = vmatpush1.msra.mxu0 0.0
        %1924 = vmatprep.subr.mxu0 0.0
        %1925 = vmatpush1.msra.mxu0 0.0
        %1926 = vmatprep.subr.mxu0 0.0
        %1927 = vmatpush1.msra.mxu0 0.0
        %1928 = vmatprep.subr.mxu0 0.0
        %1929 = vmatpush1.msra.mxu0 0.0
        %1930 = vmatprep.subr.mxu0 0.0
        %1931 = vmatpush1.msra.mxu0 0.0
        %1932 = vmatprep.subr.mxu0 0.0
        %1933 = vmatpush1.msra.mxu0 0.0
        %1934 = vmatprep.subr.mxu0 0.0
        %1935 = vmatpush1.msra.mxu0 0.0
        %1936 = vmatprep.subr.mxu0 0.0
        %1937 = vmatpush1.msra.mxu0 %v1616
        %1938 = vmatprep.subr.mxu0 0.0
        %1939 = vmatpush1.msra.mxu0 %v1615
        %1940 = vmatprep.subr.mxu0 0.0
        %1941 = vmatpush1.msra.mxu0 %v1614
        %1942 = vmatprep.subr.mxu0 0.0
        %1943 = vmatpush1.msra.mxu0 %v1613
        %1944 = vmatprep.subr.mxu0 0.0
        %1945 = vmatpush2.msra.mxu0 0.0
        %1946 = vmatprep.subr.mxu0 0.0
        %1947 = vmatpush2.msra.mxu0 0.0
        %1948 = vmatprep.subr.mxu0 0.0
        %1949 = vmatpush2.msra.mxu0 0.0
        %1950 = vmatprep.subr.mxu0 0.0
        %1951 = vmatpush2.msra.mxu0 0.0
        %1952 = vmatprep.subr.mxu0 0.0
        %1953 = vmatpush2.msra.mxu0 0.0
        %1954 = vmatprep.subr.mxu0 0.0
        %1955 = vmatpush2.msra.mxu0 0.0
        %1956 = vmatprep.subr.mxu0 0.0
        %1957 = vmatpush2.msra.mxu0 0.0
        %1958 = vmatprep.subr.mxu0 0.0
        %1959 = vmatpush2.msra.mxu0 0.0
        %1960 = vmatprep.subr.mxu0 0.0
        %1961 = vmatpush2.msra.mxu0 0.0
        %1962 = vmatprep.subr.mxu0 0.0
        %1963 = vmatpush2.msra.mxu0 0.0
        %1964 = vmatprep.subr.mxu0 0.0
        %1965 = vmatpush2.msra.mxu0 0.0
        %1966 = vmatprep.subr.mxu0 0.0
        %1967 = vmatpush2.msra.mxu0 0.0
        %1968 = vmatprep.subr.mxu0 0.0
        %1969 = vmatpush2.msra.mxu0 0.0
        %1970 = vmatprep.subr.mxu0 0.0
        %1971 = vmatpush2.msra.mxu0 0.0
        %1972 = vmatprep.subr.mxu0 0.0
        %1973 = vmatpush2.msra.mxu0 0.0
        %1974 = vmatprep.subr.mxu0 0.0
        %1975 = vmatpush2.msra.mxu0 0.0
        %1976 = vmatprep.mubr.f32.mxu0 0.0
        %1977 = vmatmul.mubr.f32.gmra.mxu0 %v1630
        %v1978 = vpop.f32.mrf.mxu0
        %v1979 = vadd.f32 0.0, %v1978
        %v1980 = vpop.f32.mrf.mxu0
        %1981 = vdwg.mxu0
        %1982 = vmatprep.subr.mxu0 0.0
        %1983 = vmatpush1.msra.mxu0 0.0
        %1984 = vmatprep.subr.mxu0 0.0
        %1985 = vmatpush1.msra.mxu0 0.0
        %1986 = vmatprep.subr.mxu0 0.0
        %1987 = vmatpush1.msra.mxu0 0.0
        %1988 = vmatprep.subr.mxu0 0.0
        %1989 = vmatpush1.msra.mxu0 0.0
        %1990 = vmatprep.subr.mxu0 0.0
        %1991 = vmatpush1.msra.mxu0 0.0
        %1992 = vmatprep.subr.mxu0 0.0
        %1993 = vmatpush1.msra.mxu0 0.0
        %1994 = vmatprep.subr.mxu0 0.0
        %1995 = vmatpush1.msra.mxu0 0.0
        %1996 = vmatprep.subr.mxu0 0.0
        %1997 = vmatpush1.msra.mxu0 0.0
        %1998 = vmatprep.subr.mxu0 0.0
        %1999 = vmatpush1.msra.mxu0 0.0
        %2000 = vmatprep.subr.mxu0 0.0
        %2001 = vmatpush1.msra.mxu0 0.0
        %2002 = vmatprep.subr.mxu0 0.0
        %2003 = vmatpush1.msra.mxu0 0.0
        %2004 = vmatprep.subr.mxu0 0.0
        %2005 = vmatpush1.msra.mxu0 0.0
        %2006 = vmatprep.subr.mxu0 0.0
        %2007 = vmatpush1.msra.mxu0 %v1620
        %2008 = vmatprep.subr.mxu0 0.0
        %2009 = vmatpush1.msra.mxu0 %v1619
        %2010 = vmatprep.subr.mxu0 0.0
        %2011 = vmatpush1.msra.mxu0 %v1618
        %2012 = vmatprep.subr.mxu0 0.0
        %2013 = vmatpush1.msra.mxu0 %v1617
        %2014 = vmatprep.subr.mxu0 0.0
        %2015 = vmatpush2.msra.mxu0 0.0
        %2016 = vmatprep.subr.mxu0 0.0
        %2017 = vmatpush2.msra.mxu0 0.0
        %2018 = vmatprep.subr.mxu0 0.0
        %2019 = vmatpush2.msra.mxu0 0.0
        %2020 = vmatprep.subr.mxu0 0.0
        %2021 = vmatpush2.msra.mxu0 0.0
        %2022 = vmatprep.subr.mxu0 0.0
        %2023 = vmatpush2.msra.mxu0 0.0
        %2024 = vmatprep.subr.mxu0 0.0
        %2025 = vmatpush2.msra.mxu0 0.0
        %2026 = vmatprep.subr.mxu0 0.0
        %2027 = vmatpush2.msra.mxu0 0.0
        %2028 = vmatprep.subr.mxu0 0.0
        %2029 = vmatpush2.msra.mxu0 0.0
        %2030 = vmatprep.subr.mxu0 0.0
        %2031 = vmatpush2.msra.mxu0 0.0
        %2032 = vmatprep.subr.mxu0 0.0
        %2033 = vmatpush2.msra.mxu0 0.0
        %2034 = vmatprep.subr.mxu0 0.0
        %2035 = vmatpush2.msra.mxu0 0.0
        %2036 = vmatprep.subr.mxu0 0.0
        %2037 = vmatpush2.msra.mxu0 0.0
        %2038 = vmatprep.subr.mxu0 0.0
        %2039 = vmatpush2.msra.mxu0 0.0
        %2040 = vmatprep.subr.mxu0 0.0
        %2041 = vmatpush2.msra.mxu0 0.0
        %2042 = vmatprep.subr.mxu0 0.0
        %2043 = vmatpush2.msra.mxu0 0.0
        %2044 = vmatprep.subr.mxu0 0.0
        %2045 = vmatpush2.msra.mxu0 0.0
        %2046 = vmatprep.mubr.f32.mxu0 0.0
        %2047 = vmatmul.mubr.f32.gmra.mxu0 %v1630
        %v2048 = vpop.f32.mrf.mxu0
        %v2049 = vadd.f32 0.0, %v2048
        %v2050 = vpop.f32.mrf.mxu0
        %2051 = vdwg.mxu0
        %2052 = vmatprep.subr.mxu0 0.0
        %2053 = vmatpush1.msra.mxu0 0.0
        %2054 = vmatprep.subr.mxu0 0.0
        %2055 = vmatpush1.msra.mxu0 0.0
        %2056 = vmatprep.subr.mxu0 0.0
        %2057 = vmatpush1.msra.mxu0 0.0
        %2058 = vmatprep.subr.mxu0 0.0
        %2059 = vmatpush1.msra.mxu0 0.0
        %2060 = vmatprep.subr.mxu0 0.0
        %2061 = vmatpush1.msra.mxu0 0.0
        %2062 = vmatprep.subr.mxu0 0.0
        %2063 = vmatpush1.msra.mxu0 0.0
        %2064 = vmatprep.subr.mxu0 0.0
        %2065 = vmatpush1.msra.mxu0 0.0
        %2066 = vmatprep.subr.mxu0 0.0
        %2067 = vmatpush1.msra.mxu0 0.0
        %2068 = vmatprep.subr.mxu0 0.0
        %2069 = vmatpush1.msra.mxu0 0.0
        %2070 = vmatprep.subr.mxu0 0.0
        %2071 = vmatpush1.msra.mxu0 0.0
        %2072 = vmatprep.subr.mxu0 0.0
        %2073 = vmatpush1.msra.mxu0 0.0
        %2074 = vmatprep.subr.mxu0 0.0
        %2075 = vmatpush1.msra.mxu0 0.0
        %2076 = vmatprep.subr.mxu0 0.0
        %2077 = vmatpush1.msra.mxu0 %v1624
        %2078 = vmatprep.subr.mxu0 0.0
        %2079 = vmatpush1.msra.mxu0 %v1623
        %2080 = vmatprep.subr.mxu0 0.0
        %2081 = vmatpush1.msra.mxu0 %v1622
        %2082 = vmatprep.subr.mxu0 0.0
        %2083 = vmatpush1.msra.mxu0 %v1621
        %2084 = vmatprep.subr.mxu0 0.0
        %2085 = vmatpush2.msra.mxu0 0.0
        %2086 = vmatprep.subr.mxu0 0.0
        %2087 = vmatpush2.msra.mxu0 0.0
        %2088 = vmatprep.subr.mxu0 0.0
        %2089 = vmatpush2.msra.mxu0 0.0
        %2090 = vmatprep.subr.mxu0 0.0
        %2091 = vmatpush2.msra.mxu0 0.0
        %2092 = vmatprep.subr.mxu0 0.0
        %2093 = vmatpush2.msra.mxu0 0.0
        %2094 = vmatprep.subr.mxu0 0.0
        %2095 = vmatpush2.msra.mxu0 0.0
        %2096 = vmatprep.subr.mxu0 0.0
        %2097 = vmatpush2.msra.mxu0 0.0
        %2098 = vmatprep.subr.mxu0 0.0
        %2099 = vmatpush2.msra.mxu0 0.0
        %2100 = vmatprep.subr.mxu0 0.0
        %2101 = vmatpush2.msra.mxu0 0.0
        %2102 = vmatprep.subr.mxu0 0.0
        %2103 = vmatpush2.msra.mxu0 0.0
        %2104 = vmatprep.subr.mxu0 0.0
        %2105 = vmatpush2.msra.mxu0 0.0
        %2106 = vmatprep.subr.mxu0 0.0
        %2107 = vmatpush2.msra.mxu0 0.0
        %2108 = vmatprep.subr.mxu0 0.0
        %2109 = vmatpush2.msra.mxu0 0.0
        %2110 = vmatprep.subr.mxu0 0.0
        %2111 = vmatpush2.msra.mxu0 0.0
        %2112 = vmatprep.subr.mxu0 0.0
        %2113 = vmatpush2.msra.mxu0 0.0
        %2114 = vmatprep.subr.mxu0 0.0
        %2115 = vmatpush2.msra.mxu0 0.0
        %2116 = vmatprep.mubr.f32.mxu0 0.0
        %2117 = vmatmul.mubr.f32.gmra.mxu0 %v1630
        %v2118 = vpop.f32.mrf.mxu0
        %v2119 = vadd.f32 0.0, %v2118
        %v2120 = vpop.f32.mrf.mxu0
        %2121 = vdwg.mxu0
        %2122 = vmatprep.subr.mxu0 0.0
        %2123 = vmatpush1.msra.mxu0 0.0
        %2124 = vmatprep.subr.mxu0 0.0
        %2125 = vmatpush1.msra.mxu0 0.0
        %2126 = vmatprep.subr.mxu0 0.0
        %2127 = vmatpush1.msra.mxu0 0.0
        %2128 = vmatprep.subr.mxu0 0.0
        %2129 = vmatpush1.msra.mxu0 0.0
        %2130 = vmatprep.subr.mxu0 0.0
        %2131 = vmatpush1.msra.mxu0 0.0
        %2132 = vmatprep.subr.mxu0 0.0
        %2133 = vmatpush1.msra.mxu0 0.0
        %2134 = vmatprep.subr.mxu0 0.0
        %2135 = vmatpush1.msra.mxu0 0.0
        %2136 = vmatprep.subr.mxu0 0.0
        %2137 = vmatpush1.msra.mxu0 0.0
        %2138 = vmatprep.subr.mxu0 0.0
        %2139 = vmatpush1.msra.mxu0 0.0
        %2140 = vmatprep.subr.mxu0 0.0
        %2141 = vmatpush1.msra.mxu0 0.0
        %2142 = vmatprep.subr.mxu0 0.0
        %2143 = vmatpush1.msra.mxu0 0.0
        %2144 = vmatprep.subr.mxu0 0.0
        %2145 = vmatpush1.msra.mxu0 0.0
        %2146 = vmatprep.subr.mxu0 0.0
        %2147 = vmatpush1.msra.mxu0 %v1628
        %2148 = vmatprep.subr.mxu0 0.0
        %2149 = vmatpush1.msra.mxu0 %v1627
        %2150 = vmatprep.subr.mxu0 0.0
        %2151 = vmatpush1.msra.mxu0 %v1626
        %2152 = vmatprep.subr.mxu0 0.0
        %2153 = vmatpush1.msra.mxu0 %v1625
        %2154 = vmatprep.subr.mxu0 0.0
        %2155 = vmatpush2.msra.mxu0 0.0
        %2156 = vmatprep.subr.mxu0 0.0
        %2157 = vmatpush2.msra.mxu0 0.0
        %2158 = vmatprep.subr.mxu0 0.0
        %2159 = vmatpush2.msra.mxu0 0.0
        %2160 = vmatprep.subr.mxu0 0.0
        %2161 = vmatpush2.msra.mxu0 0.0
        %2162 = vmatprep.subr.mxu0 0.0
        %2163 = vmatpush2.msra.mxu0 0.0
        %2164 = vmatprep.subr.mxu0 0.0
        %2165 = vmatpush2.msra.mxu0 0.0
        %2166 = vmatprep.subr.mxu0 0.0
        %2167 = vmatpush2.msra.mxu0 0.0
        %2168 = vmatprep.subr.mxu0 0.0
        %2169 = vmatpush2.msra.mxu0 0.0
        %2170 = vmatprep.subr.mxu0 0.0
        %2171 = vmatpush2.msra.mxu0 0.0
        %2172 = vmatprep.subr.mxu0 0.0
        %2173 = vmatpush2.msra.mxu0 0.0
        %2174 = vmatprep.subr.mxu0 0.0
        %2175 = vmatpush2.msra.mxu0 0.0
        %2176 = vmatprep.subr.mxu0 0.0
        %2177 = vmatpush2.msra.mxu0 0.0
        %2178 = vmatprep.subr.mxu0 0.0
        %2179 = vmatpush2.msra.mxu0 0.0
        %2180 = vmatprep.subr.mxu0 0.0
        %2181 = vmatpush2.msra.mxu0 0.0
        %2182 = vmatprep.subr.mxu0 0.0
        %2183 = vmatpush2.msra.mxu0 0.0
        %2184 = vmatprep.subr.mxu0 0.0
        %2185 = vmatpush2.msra.mxu0 0.0
        %2186 = vmatprep.mubr.f32.mxu0 0.0
        %2187 = vmatmul.mubr.f32.gmra.mxu0 %v1630
        %v2188 = vpop.f32.mrf.mxu0
        %v2189 = vadd.f32 0.0, %v2188
        %v2190 = vpop.f32.mrf.mxu0
        %2191 = vdwg.mxu0
        %vm2192 = vcmask 523264
        %v2194 = vsel %vm2192, %v509, 0
        %v2197 = vsel %vm2192, %v1104, 0
        %2199 = vmatprep.subr.mxu0 0.0
        %2200 = vmatpush1.xpose.msra.mxu0 0.0
        %2201 = vmatprep.subr.mxu0 0.0
        %2202 = vmatpush1.xpose.msra.mxu0 0.0
        %2203 = vmatprep.subr.mxu0 0.0
        %2204 = vmatpush1.xpose.msra.mxu0 0.0
        %2205 = vmatprep.subr.mxu0 0.0
        %2206 = vmatpush1.xpose.msra.mxu0 0.0
        %2207 = vmatprep.subr.mxu0 0.0
        %2208 = vmatpush1.xpose.msra.mxu0 0.0
        %2209 = vmatprep.subr.mxu0 0.0
        %2210 = vmatpush1.xpose.msra.mxu0 0.0
        %2211 = vmatprep.subr.mxu0 0.0
        %2212 = vmatpush1.xpose.msra.mxu0 0.0
        %2213 = vmatprep.subr.mxu0 0.0
        %2214 = vmatpush1.xpose.msra.mxu0 0.0
        %2215 = vmatprep.subr.mxu0 0.0
        %2216 = vmatpush1.xpose.msra.mxu0 0.0
        %2217 = vmatprep.subr.mxu0 0.0
        %2218 = vmatpush1.xpose.msra.mxu0 0.0
        %2219 = vmatprep.subr.mxu0 0.0
        %2220 = vmatpush1.xpose.msra.mxu0 0.0
        %2221 = vmatprep.subr.mxu0 0.0
        %2222 = vmatpush1.xpose.msra.mxu0 0.0
        %2223 = vmatprep.subr.mxu0 0.0
        %2224 = vmatpush1.xpose.msra.mxu0 0.0
        %2225 = vmatprep.subr.mxu0 0.0
        %2226 = vmatpush1.xpose.msra.mxu0 0.0
        %2227 = vmatprep.subr.mxu0 0.0
        %2228 = vmatpush1.xpose.msra.mxu0 0.0
        %2229 = vmatprep.subr.mxu0 0.0
        %2230 = vmatpush1.xpose.msra.mxu0 %v2197
        %2231 = vmatprep.subr.mxu0 0.0
        %2232 = vmatpush2.xpose.msra.mxu0 0.0
        %2233 = vmatprep.subr.mxu0 0.0
        %2234 = vmatpush2.xpose.msra.mxu0 0.0
        %2235 = vmatprep.subr.mxu0 0.0
        %2236 = vmatpush2.xpose.msra.mxu0 0.0
        %2237 = vmatprep.subr.mxu0 0.0
        %2238 = vmatpush2.xpose.msra.mxu0 0.0
        %2239 = vmatprep.subr.mxu0 0.0
        %2240 = vmatpush2.xpose.msra.mxu0 0.0
        %2241 = vmatprep.subr.mxu0 0.0
        %2242 = vmatpush2.xpose.msra.mxu0 0.0
        %2243 = vmatprep.subr.mxu0 0.0
        %2244 = vmatpush2.xpose.msra.mxu0 0.0
        %2245 = vmatprep.subr.mxu0 0.0
        %2246 = vmatpush2.xpose.msra.mxu0 0.0
        %2247 = vmatprep.subr.mxu0 0.0
        %2248 = vmatpush2.xpose.msra.mxu0 0.0
        %2249 = vmatprep.subr.mxu0 0.0
        %2250 = vmatpush2.xpose.msra.mxu0 0.0
        %2251 = vmatprep.subr.mxu0 0.0
        %2252 = vmatpush2.xpose.msra.mxu0 0.0
        %2253 = vmatprep.subr.mxu0 0.0
        %2254 = vmatpush2.xpose.msra.mxu0 0.0
        %2255 = vmatprep.subr.mxu0 0.0
        %2256 = vmatpush2.xpose.msra.mxu0 0.0
        %2257 = vmatprep.subr.mxu0 0.0
        %2258 = vmatpush2.xpose.msra.mxu0 0.0
        %2259 = vmatprep.subr.mxu0 0.0
        %2260 = vmatpush2.xpose.msra.mxu0 0.0
        %2261 = vmatprep.subr.mxu0 0.0
        %2262 = vmatpush2.xpose.msra.mxu0 0.0
        %2263 = vmatprep.mubr.f32.mxu0 0.0
        %2264 = vmatmul.mubr.f32.gmra.mxu0 %v2194
        %v2265 = vpop.f32.mrf.mxu0
        %v2266 = vadd.f32 0.0, %v2265
        %v2267 = vpop.f32.mrf.mxu0
        %2268 = vdwg.mxu0
        %v2270 = vsel %vm2192, %v579, 0
        %v2273 = vsel %vm2192, %v1174, 0
        %2275 = vmatprep.subr.mxu0 0.0
        %2276 = vmatpush1.xpose.msra.mxu0 0.0
        %2277 = vmatprep.subr.mxu0 0.0
        %2278 = vmatpush1.xpose.msra.mxu0 0.0
        %2279 = vmatprep.subr.mxu0 0.0
        %2280 = vmatpush1.xpose.msra.mxu0 0.0
        %2281 = vmatprep.subr.mxu0 0.0
        %2282 = vmatpush1.xpose.msra.mxu0 0.0
        %2283 = vmatprep.subr.mxu0 0.0
        %2284 = vmatpush1.xpose.msra.mxu0 0.0
        %2285 = vmatprep.subr.mxu0 0.0
        %2286 = vmatpush1.xpose.msra.mxu0 0.0
        %2287 = vmatprep.subr.mxu0 0.0
        %2288 = vmatpush1.xpose.msra.mxu0 0.0
        %2289 = vmatprep.subr.mxu0 0.0
        %2290 = vmatpush1.xpose.msra.mxu0 0.0
        %2291 = vmatprep.subr.mxu0 0.0
        %2292 = vmatpush1.xpose.msra.mxu0 0.0
        %2293 = vmatprep.subr.mxu0 0.0
        %2294 = vmatpush1.xpose.msra.mxu0 0.0
        %2295 = vmatprep.subr.mxu0 0.0
        %2296 = vmatpush1.xpose.msra.mxu0 0.0
        %2297 = vmatprep.subr.mxu0 0.0
        %2298 = vmatpush1.xpose.msra.mxu0 0.0
        %2299 = vmatprep.subr.mxu0 0.0
        %2300 = vmatpush1.xpose.msra.mxu0 0.0
        %2301 = vmatprep.subr.mxu0 0.0
        %2302 = vmatpush1.xpose.msra.mxu0 0.0
        %2303 = vmatprep.subr.mxu0 0.0
        %2304 = vmatpush1.xpose.msra.mxu0 0.0
        %2305 = vmatprep.subr.mxu0 0.0
        %2306 = vmatpush1.xpose.msra.mxu0 %v2273
        %2307 = vmatprep.subr.mxu0 0.0
        %2308 = vmatpush2.xpose.msra.mxu0 0.0
        %2309 = vmatprep.subr.mxu0 0.0
        %2310 = vmatpush2.xpose.msra.mxu0 0.0
        %2311 = vmatprep.subr.mxu0 0.0
        %2312 = vmatpush2.xpose.msra.mxu0 0.0
        %2313 = vmatprep.subr.mxu0 0.0
        %2314 = vmatpush2.xpose.msra.mxu0 0.0
        %2315 = vmatprep.subr.mxu0 0.0
        %2316 = vmatpush2.xpose.msra.mxu0 0.0
        %2317 = vmatprep.subr.mxu0 0.0
        %2318 = vmatpush2.xpose.msra.mxu0 0.0
        %2319 = vmatprep.subr.mxu0 0.0
        %2320 = vmatpush2.xpose.msra.mxu0 0.0
        %2321 = vmatprep.subr.mxu0 0.0
        %2322 = vmatpush2.xpose.msra.mxu0 0.0
        %2323 = vmatprep.subr.mxu0 0.0
        %2324 = vmatpush2.xpose.msra.mxu0 0.0
        %2325 = vmatprep.subr.mxu0 0.0
        %2326 = vmatpush2.xpose.msra.mxu0 0.0
        %2327 = vmatprep.subr.mxu0 0.0
        %2328 = vmatpush2.xpose.msra.mxu0 0.0
        %2329 = vmatprep.subr.mxu0 0.0
        %2330 = vmatpush2.xpose.msra.mxu0 0.0
        %2331 = vmatprep.subr.mxu0 0.0
        %2332 = vmatpush2.xpose.msra.mxu0 0.0
        %2333 = vmatprep.subr.mxu0 0.0
        %2334 = vmatpush2.xpose.msra.mxu0 0.0
        %2335 = vmatprep.subr.mxu0 0.0
        %2336 = vmatpush2.xpose.msra.mxu0 0.0
        %2337 = vmatprep.subr.mxu0 0.0
        %2338 = vmatpush2.xpose.msra.mxu0 0.0
        %2339 = vmatprep.mubr.f32.mxu0 0.0
        %2340 = vmatmul.mubr.f32.gmra.mxu0 %v2270
        %v2341 = vpop.f32.mrf.mxu0
        %v2342 = vadd.f32 0.0, %v2341
        %v2343 = vpop.f32.mrf.mxu0
        %2344 = vdwg.mxu0
        %v2346 = vsel %vm2192, %v649, 0
        %v2349 = vsel %vm2192, %v1244, 0
        %2351 = vmatprep.subr.mxu0 0.0
        %2352 = vmatpush1.xpose.msra.mxu0 0.0
        %2353 = vmatprep.subr.mxu0 0.0
        %2354 = vmatpush1.xpose.msra.mxu0 0.0
        %2355 = vmatprep.subr.mxu0 0.0
        %2356 = vmatpush1.xpose.msra.mxu0 0.0
        %2357 = vmatprep.subr.mxu0 0.0
        %2358 = vmatpush1.xpose.msra.mxu0 0.0
        %2359 = vmatprep.subr.mxu0 0.0
        %2360 = vmatpush1.xpose.msra.mxu0 0.0
        %2361 = vmatprep.subr.mxu0 0.0
        %2362 = vmatpush1.xpose.msra.mxu0 0.0
        %2363 = vmatprep.subr.mxu0 0.0
        %2364 = vmatpush1.xpose.msra.mxu0 0.0
        %2365 = vmatprep.subr.mxu0 0.0
        %2366 = vmatpush1.xpose.msra.mxu0 0.0
        %2367 = vmatprep.subr.mxu0 0.0
        %2368 = vmatpush1.xpose.msra.mxu0 0.0
        %2369 = vmatprep.subr.mxu0 0.0
        %2370 = vmatpush1.xpose.msra.mxu0 0.0
        %2371 = vmatprep.subr.mxu0 0.0
        %2372 = vmatpush1.xpose.msra.mxu0 0.0
        %2373 = vmatprep.subr.mxu0 0.0
        %2374 = vmatpush1.xpose.msra.mxu0 0.0
        %2375 = vmatprep.subr.mxu0 0.0
        %2376 = vmatpush1.xpose.msra.mxu0 0.0
        %2377 = vmatprep.subr.mxu0 0.0
        %2378 = vmatpush1.xpose.msra.mxu0 0.0
        %2379 = vmatprep.subr.mxu0 0.0
        %2380 = vmatpush1.xpose.msra.mxu0 0.0
        %2381 = vmatprep.subr.mxu0 0.0
        %2382 = vmatpush1.xpose.msra.mxu0 %v2349
        %2383 = vmatprep.subr.mxu0 0.0
        %2384 = vmatpush2.xpose.msra.mxu0 0.0
        %2385 = vmatprep.subr.mxu0 0.0
        %2386 = vmatpush2.xpose.msra.mxu0 0.0
        %2387 = vmatprep.subr.mxu0 0.0
        %2388 = vmatpush2.xpose.msra.mxu0 0.0
        %2389 = vmatprep.subr.mxu0 0.0
        %2390 = vmatpush2.xpose.msra.mxu0 0.0
        %2391 = vmatprep.subr.mxu0 0.0
        %2392 = vmatpush2.xpose.msra.mxu0 0.0
        %2393 = vmatprep.subr.mxu0 0.0
        %2394 = vmatpush2.xpose.msra.mxu0 0.0
        %2395 = vmatprep.subr.mxu0 0.0
        %2396 = vmatpush2.xpose.msra.mxu0 0.0
        %2397 = vmatprep.subr.mxu0 0.0
        %2398 = vmatpush2.xpose.msra.mxu0 0.0
        %2399 = vmatprep.subr.mxu0 0.0
        %2400 = vmatpush2.xpose.msra.mxu0 0.0
        %2401 = vmatprep.subr.mxu0 0.0
        %2402 = vmatpush2.xpose.msra.mxu0 0.0
        %2403 = vmatprep.subr.mxu0 0.0
        %2404 = vmatpush2.xpose.msra.mxu0 0.0
        %2405 = vmatprep.subr.mxu0 0.0
        %2406 = vmatpush2.xpose.msra.mxu0 0.0
        %2407 = vmatprep.subr.mxu0 0.0
        %2408 = vmatpush2.xpose.msra.mxu0 0.0
        %2409 = vmatprep.subr.mxu0 0.0
        %2410 = vmatpush2.xpose.msra.mxu0 0.0
        %2411 = vmatprep.subr.mxu0 0.0
        %2412 = vmatpush2.xpose.msra.mxu0 0.0
        %2413 = vmatprep.subr.mxu0 0.0
        %2414 = vmatpush2.xpose.msra.mxu0 0.0
        %2415 = vmatprep.mubr.f32.mxu0 0.0
        %2416 = vmatmul.mubr.f32.gmra.mxu0 %v2346
        %v2417 = vpop.f32.mrf.mxu0
        %v2418 = vadd.f32 0.0, %v2417
        %v2419 = vpop.f32.mrf.mxu0
        %2420 = vdwg.mxu0
        %v2422 = vsel %vm2192, %v719, 0
        %v2425 = vsel %vm2192, %v1314, 0
        %2427 = vmatprep.subr.mxu0 0.0
        %2428 = vmatpush1.xpose.msra.mxu0 0.0
        %2429 = vmatprep.subr.mxu0 0.0
        %2430 = vmatpush1.xpose.msra.mxu0 0.0
        %2431 = vmatprep.subr.mxu0 0.0
        %2432 = vmatpush1.xpose.msra.mxu0 0.0
        %2433 = vmatprep.subr.mxu0 0.0
        %2434 = vmatpush1.xpose.msra.mxu0 0.0
        %2435 = vmatprep.subr.mxu0 0.0
        %2436 = vmatpush1.xpose.msra.mxu0 0.0
        %2437 = vmatprep.subr.mxu0 0.0
        %2438 = vmatpush1.xpose.msra.mxu0 0.0
        %2439 = vmatprep.subr.mxu0 0.0
        %2440 = vmatpush1.xpose.msra.mxu0 0.0
        %2441 = vmatprep.subr.mxu0 0.0
        %2442 = vmatpush1.xpose.msra.mxu0 0.0
        %2443 = vmatprep.subr.mxu0 0.0
        %2444 = vmatpush1.xpose.msra.mxu0 0.0
        %2445 = vmatprep.subr.mxu0 0.0
        %2446 = vmatpush1.xpose.msra.mxu0 0.0
        %2447 = vmatprep.subr.mxu0 0.0
        %2448 = vmatpush1.xpose.msra.mxu0 0.0
        %2449 = vmatprep.subr.mxu0 0.0
        %2450 = vmatpush1.xpose.msra.mxu0 0.0
        %2451 = vmatprep.subr.mxu0 0.0
        %2452 = vmatpush1.xpose.msra.mxu0 0.0
        %2453 = vmatprep.subr.mxu0 0.0
        %2454 = vmatpush1.xpose.msra.mxu0 0.0
        %2455 = vmatprep.subr.mxu0 0.0
        %2456 = vmatpush1.xpose.msra.mxu0 0.0
        %2457 = vmatprep.subr.mxu0 0.0
        %2458 = vmatpush1.xpose.msra.mxu0 %v2425
        %2459 = vmatprep.subr.mxu0 0.0
        %2460 = vmatpush2.xpose.msra.mxu0 0.0
        %2461 = vmatprep.subr.mxu0 0.0
        %2462 = vmatpush2.xpose.msra.mxu0 0.0
        %2463 = vmatprep.subr.mxu0 0.0
        %2464 = vmatpush2.xpose.msra.mxu0 0.0
        %2465 = vmatprep.subr.mxu0 0.0
        %2466 = vmatpush2.xpose.msra.mxu0 0.0
        %2467 = vmatprep.subr.mxu0 0.0
        %2468 = vmatpush2.xpose.msra.mxu0 0.0
        %2469 = vmatprep.subr.mxu0 0.0
        %2470 = vmatpush2.xpose.msra.mxu0 0.0
        %2471 = vmatprep.subr.mxu0 0.0
        %2472 = vmatpush2.xpose.msra.mxu0 0.0
        %2473 = vmatprep.subr.mxu0 0.0
        %2474 = vmatpush2.xpose.msra.mxu0 0.0
        %2475 = vmatprep.subr.mxu0 0.0
        %2476 = vmatpush2.xpose.msra.mxu0 0.0
        %2477 = vmatprep.subr.mxu0 0.0
        %2478 = vmatpush2.xpose.msra.mxu0 0.0
        %2479 = vmatprep.subr.mxu0 0.0
        %2480 = vmatpush2.xpose.msra.mxu0 0.0
        %2481 = vmatprep.subr.mxu0 0.0
        %2482 = vmatpush2.xpose.msra.mxu0 0.0
        %2483 = vmatprep.subr.mxu0 0.0
        %2484 = vmatpush2.xpose.msra.mxu0 0.0
        %2485 = vmatprep.subr.mxu0 0.0
        %2486 = vmatpush2.xpose.msra.mxu0 0.0
        %2487 = vmatprep.subr.mxu0 0.0
        %2488 = vmatpush2.xpose.msra.mxu0 0.0
        %2489 = vmatprep.subr.mxu0 0.0
        %2490 = vmatpush2.xpose.msra.mxu0 0.0
        %2491 = vmatprep.mubr.f32.mxu0 0.0
        %2492 = vmatmul.mubr.f32.gmra.mxu0 %v2422
        %v2493 = vpop.f32.mrf.mxu0
        %v2494 = vadd.f32 0.0, %v2493
        %v2495 = vpop.f32.mrf.mxu0
        %2496 = vdwg.mxu0
        %v2498 = vsel %vm2192, %v789, 0
        %v2501 = vsel %vm2192, %v1384, 0
        %2503 = vmatprep.subr.mxu0 0.0
        %2504 = vmatpush1.xpose.msra.mxu0 0.0
        %2505 = vmatprep.subr.mxu0 0.0
        %2506 = vmatpush1.xpose.msra.mxu0 0.0
        %2507 = vmatprep.subr.mxu0 0.0
        %2508 = vmatpush1.xpose.msra.mxu0 0.0
        %2509 = vmatprep.subr.mxu0 0.0
        %2510 = vmatpush1.xpose.msra.mxu0 0.0
        %2511 = vmatprep.subr.mxu0 0.0
        %2512 = vmatpush1.xpose.msra.mxu0 0.0
        %2513 = vmatprep.subr.mxu0 0.0
        %2514 = vmatpush1.xpose.msra.mxu0 0.0
        %2515 = vmatprep.subr.mxu0 0.0
        %2516 = vmatpush1.xpose.msra.mxu0 0.0
        %2517 = vmatprep.subr.mxu0 0.0
        %2518 = vmatpush1.xpose.msra.mxu0 0.0
        %2519 = vmatprep.subr.mxu0 0.0
        %2520 = vmatpush1.xpose.msra.mxu0 0.0
        %2521 = vmatprep.subr.mxu0 0.0
        %2522 = vmatpush1.xpose.msra.mxu0 0.0
        %2523 = vmatprep.subr.mxu0 0.0
        %2524 = vmatpush1.xpose.msra.mxu0 0.0
        %2525 = vmatprep.subr.mxu0 0.0
        %2526 = vmatpush1.xpose.msra.mxu0 0.0
        %2527 = vmatprep.subr.mxu0 0.0
        %2528 = vmatpush1.xpose.msra.mxu0 0.0
        %2529 = vmatprep.subr.mxu0 0.0
        %2530 = vmatpush1.xpose.msra.mxu0 0.0
        %2531 = vmatprep.subr.mxu0 0.0
        %2532 = vmatpush1.xpose.msra.mxu0 0.0
        %2533 = vmatprep.subr.mxu0 0.0
        %2534 = vmatpush1.xpose.msra.mxu0 %v2501
        %2535 = vmatprep.subr.mxu0 0.0
        %2536 = vmatpush2.xpose.msra.mxu0 0.0
        %2537 = vmatprep.subr.mxu0 0.0
        %2538 = vmatpush2.xpose.msra.mxu0 0.0
        %2539 = vmatprep.subr.mxu0 0.0
        %2540 = vmatpush2.xpose.msra.mxu0 0.0
        %2541 = vmatprep.subr.mxu0 0.0
        %2542 = vmatpush2.xpose.msra.mxu0 0.0
        %2543 = vmatprep.subr.mxu0 0.0
        %2544 = vmatpush2.xpose.msra.mxu0 0.0
        %2545 = vmatprep.subr.mxu0 0.0
        %2546 = vmatpush2.xpose.msra.mxu0 0.0
        %2547 = vmatprep.subr.mxu0 0.0
        %2548 = vmatpush2.xpose.msra.mxu0 0.0
        %2549 = vmatprep.subr.mxu0 0.0
        %2550 = vmatpush2.xpose.msra.mxu0 0.0
        %2551 = vmatprep.subr.mxu0 0.0
        %2552 = vmatpush2.xpose.msra.mxu0 0.0
        %2553 = vmatprep.subr.mxu0 0.0
        %2554 = vmatpush2.xpose.msra.mxu0 0.0
        %2555 = vmatprep.subr.mxu0 0.0
        %2556 = vmatpush2.xpose.msra.mxu0 0.0
        %2557 = vmatprep.subr.mxu0 0.0
        %2558 = vmatpush2.xpose.msra.mxu0 0.0
        %2559 = vmatprep.subr.mxu0 0.0
        %2560 = vmatpush2.xpose.msra.mxu0 0.0
        %2561 = vmatprep.subr.mxu0 0.0
        %2562 = vmatpush2.xpose.msra.mxu0 0.0
        %2563 = vmatprep.subr.mxu0 0.0
        %2564 = vmatpush2.xpose.msra.mxu0 0.0
        %2565 = vmatprep.subr.mxu0 0.0
        %2566 = vmatpush2.xpose.msra.mxu0 0.0
        %2567 = vmatprep.mubr.f32.mxu0 0.0
        %2568 = vmatmul.mubr.f32.gmra.mxu0 %v2498
        %v2569 = vpop.f32.mrf.mxu0
        %v2570 = vadd.f32 0.0, %v2569
        %v2571 = vpop.f32.mrf.mxu0
        %2572 = vdwg.mxu0
        %v2574 = vsel %vm2192, %v859, 0
        %v2577 = vsel %vm2192, %v1454, 0
        %2579 = vmatprep.subr.mxu0 0.0
        %2580 = vmatpush1.xpose.msra.mxu0 0.0
        %2581 = vmatprep.subr.mxu0 0.0
        %2582 = vmatpush1.xpose.msra.mxu0 0.0
        %2583 = vmatprep.subr.mxu0 0.0
        %2584 = vmatpush1.xpose.msra.mxu0 0.0
        %2585 = vmatprep.subr.mxu0 0.0
        %2586 = vmatpush1.xpose.msra.mxu0 0.0
        %2587 = vmatprep.subr.mxu0 0.0
        %2588 = vmatpush1.xpose.msra.mxu0 0.0
        %2589 = vmatprep.subr.mxu0 0.0
        %2590 = vmatpush1.xpose.msra.mxu0 0.0
        %2591 = vmatprep.subr.mxu0 0.0
        %2592 = vmatpush1.xpose.msra.mxu0 0.0
        %2593 = vmatprep.subr.mxu0 0.0
        %2594 = vmatpush1.xpose.msra.mxu0 0.0
        %2595 = vmatprep.subr.mxu0 0.0
        %2596 = vmatpush1.xpose.msra.mxu0 0.0
        %2597 = vmatprep.subr.mxu0 0.0
        %2598 = vmatpush1.xpose.msra.mxu0 0.0
        %2599 = vmatprep.subr.mxu0 0.0
        %2600 = vmatpush1.xpose.msra.mxu0 0.0
        %2601 = vmatprep.subr.mxu0 0.0
        %2602 = vmatpush1.xpose.msra.mxu0 0.0
        %2603 = vmatprep.subr.mxu0 0.0
        %2604 = vmatpush1.xpose.msra.mxu0 0.0
        %2605 = vmatprep.subr.mxu0 0.0
        %2606 = vmatpush1.xpose.msra.mxu0 0.0
        %2607 = vmatprep.subr.mxu0 0.0
        %2608 = vmatpush1.xpose.msra.mxu0 0.0
        %2609 = vmatprep.subr.mxu0 0.0
        %2610 = vmatpush1.xpose.msra.mxu0 %v2577
        %2611 = vmatprep.subr.mxu0 0.0
        %2612 = vmatpush2.xpose.msra.mxu0 0.0
        %2613 = vmatprep.subr.mxu0 0.0
        %2614 = vmatpush2.xpose.msra.mxu0 0.0
        %2615 = vmatprep.subr.mxu0 0.0
        %2616 = vmatpush2.xpose.msra.mxu0 0.0
        %2617 = vmatprep.subr.mxu0 0.0
        %2618 = vmatpush2.xpose.msra.mxu0 0.0
        %2619 = vmatprep.subr.mxu0 0.0
        %2620 = vmatpush2.xpose.msra.mxu0 0.0
        %2621 = vmatprep.subr.mxu0 0.0
        %2622 = vmatpush2.xpose.msra.mxu0 0.0
        %2623 = vmatprep.subr.mxu0 0.0
        %2624 = vmatpush2.xpose.msra.mxu0 0.0
        %2625 = vmatprep.subr.mxu0 0.0
        %2626 = vmatpush2.xpose.msra.mxu0 0.0
        %2627 = vmatprep.subr.mxu0 0.0
        %2628 = vmatpush2.xpose.msra.mxu0 0.0
        %2629 = vmatprep.subr.mxu0 0.0
        %2630 = vmatpush2.xpose.msra.mxu0 0.0
        %2631 = vmatprep.subr.mxu0 0.0
        %2632 = vmatpush2.xpose.msra.mxu0 0.0
        %2633 = vmatprep.subr.mxu0 0.0
        %2634 = vmatpush2.xpose.msra.mxu0 0.0
        %2635 = vmatprep.subr.mxu0 0.0
        %2636 = vmatpush2.xpose.msra.mxu0 0.0
        %2637 = vmatprep.subr.mxu0 0.0
        %2638 = vmatpush2.xpose.msra.mxu0 0.0
        %2639 = vmatprep.subr.mxu0 0.0
        %2640 = vmatpush2.xpose.msra.mxu0 0.0
        %2641 = vmatprep.subr.mxu0 0.0
        %2642 = vmatpush2.xpose.msra.mxu0 0.0
        %2643 = vmatprep.mubr.f32.mxu0 0.0
        %2644 = vmatmul.mubr.f32.gmra.mxu0 %v2574
        %v2645 = vpop.f32.mrf.mxu0
        %v2646 = vadd.f32 0.0, %v2645
        %v2647 = vpop.f32.mrf.mxu0
        %2648 = vdwg.mxu0
        %v2650 = vsel %vm2192, %v929, 0
        %v2653 = vsel %vm2192, %v1524, 0
        %2655 = vmatprep.subr.mxu0 0.0
        %2656 = vmatpush1.xpose.msra.mxu0 0.0
        %2657 = vmatprep.subr.mxu0 0.0
        %2658 = vmatpush1.xpose.msra.mxu0 0.0
        %2659 = vmatprep.subr.mxu0 0.0
        %2660 = vmatpush1.xpose.msra.mxu0 0.0
        %2661 = vmatprep.subr.mxu0 0.0
        %2662 = vmatpush1.xpose.msra.mxu0 0.0
        %2663 = vmatprep.subr.mxu0 0.0
        %2664 = vmatpush1.xpose.msra.mxu0 0.0
        %2665 = vmatprep.subr.mxu0 0.0
        %2666 = vmatpush1.xpose.msra.mxu0 0.0
        %2667 = vmatprep.subr.mxu0 0.0
        %2668 = vmatpush1.xpose.msra.mxu0 0.0
        %2669 = vmatprep.subr.mxu0 0.0
        %2670 = vmatpush1.xpose.msra.mxu0 0.0
        %2671 = vmatprep.subr.mxu0 0.0
        %2672 = vmatpush1.xpose.msra.mxu0 0.0
        %2673 = vmatprep.subr.mxu0 0.0
        %2674 = vmatpush1.xpose.msra.mxu0 0.0
        %2675 = vmatprep.subr.mxu0 0.0
        %2676 = vmatpush1.xpose.msra.mxu0 0.0
        %2677 = vmatprep.subr.mxu0 0.0
        %2678 = vmatpush1.xpose.msra.mxu0 0.0
        %2679 = vmatprep.subr.mxu0 0.0
        %2680 = vmatpush1.xpose.msra.mxu0 0.0
        %2681 = vmatprep.subr.mxu0 0.0
        %2682 = vmatpush1.xpose.msra.mxu0 0.0
        %2683 = vmatprep.subr.mxu0 0.0
        %2684 = vmatpush1.xpose.msra.mxu0 0.0
        %2685 = vmatprep.subr.mxu0 0.0
        %2686 = vmatpush1.xpose.msra.mxu0 %v2653
        %2687 = vmatprep.subr.mxu0 0.0
        %2688 = vmatpush2.xpose.msra.mxu0 0.0
        %2689 = vmatprep.subr.mxu0 0.0
        %2690 = vmatpush2.xpose.msra.mxu0 0.0
        %2691 = vmatprep.subr.mxu0 0.0
        %2692 = vmatpush2.xpose.msra.mxu0 0.0
        %2693 = vmatprep.subr.mxu0 0.0
        %2694 = vmatpush2.xpose.msra.mxu0 0.0
        %2695 = vmatprep.subr.mxu0 0.0
        %2696 = vmatpush2.xpose.msra.mxu0 0.0
        %2697 = vmatprep.subr.mxu0 0.0
        %2698 = vmatpush2.xpose.msra.mxu0 0.0
        %2699 = vmatprep.subr.mxu0 0.0
        %2700 = vmatpush2.xpose.msra.mxu0 0.0
        %2701 = vmatprep.subr.mxu0 0.0
        %2702 = vmatpush2.xpose.msra.mxu0 0.0
        %2703 = vmatprep.subr.mxu0 0.0
        %2704 = vmatpush2.xpose.msra.mxu0 0.0
        %2705 = vmatprep.subr.mxu0 0.0
        %2706 = vmatpush2.xpose.msra.mxu0 0.0
        %2707 = vmatprep.subr.mxu0 0.0
        %2708 = vmatpush2.xpose.msra.mxu0 0.0
        %2709 = vmatprep.subr.mxu0 0.0
        %2710 = vmatpush2.xpose.msra.mxu0 0.0
        %2711 = vmatprep.subr.mxu0 0.0
        %2712 = vmatpush2.xpose.msra.mxu0 0.0
        %2713 = vmatprep.subr.mxu0 0.0
        %2714 = vmatpush2.xpose.msra.mxu0 0.0
        %2715 = vmatprep.subr.mxu0 0.0
        %2716 = vmatpush2.xpose.msra.mxu0 0.0
        %2717 = vmatprep.subr.mxu0 0.0
        %2718 = vmatpush2.xpose.msra.mxu0 0.0
        %2719 = vmatprep.mubr.f32.mxu0 0.0
        %2720 = vmatmul.mubr.f32.gmra.mxu0 %v2650
        %v2721 = vpop.f32.mrf.mxu0
        %v2722 = vadd.f32 0.0, %v2721
        %v2723 = vpop.f32.mrf.mxu0
        %2724 = vdwg.mxu0
        %v2726 = vsel %vm2192, %v999, 0
        %v2729 = vsel %vm2192, %v1594, 0
        %2731 = vmatprep.subr.mxu0 0.0
        %2732 = vmatpush1.xpose.msra.mxu0 0.0
        %2733 = vmatprep.subr.mxu0 0.0
        %2734 = vmatpush1.xpose.msra.mxu0 0.0
        %2735 = vmatprep.subr.mxu0 0.0
        %2736 = vmatpush1.xpose.msra.mxu0 0.0
        %2737 = vmatprep.subr.mxu0 0.0
        %2738 = vmatpush1.xpose.msra.mxu0 0.0
        %2739 = vmatprep.subr.mxu0 0.0
        %2740 = vmatpush1.xpose.msra.mxu0 0.0
        %2741 = vmatprep.subr.mxu0 0.0
        %2742 = vmatpush1.xpose.msra.mxu0 0.0
        %2743 = vmatprep.subr.mxu0 0.0
        %2744 = vmatpush1.xpose.msra.mxu0 0.0
        %2745 = vmatprep.subr.mxu0 0.0
        %2746 = vmatpush1.xpose.msra.mxu0 0.0
        %2747 = vmatprep.subr.mxu0 0.0
        %2748 = vmatpush1.xpose.msra.mxu0 0.0
        %2749 = vmatprep.subr.mxu0 0.0
        %2750 = vmatpush1.xpose.msra.mxu0 0.0
        %2751 = vmatprep.subr.mxu0 0.0
        %2752 = vmatpush1.xpose.msra.mxu0 0.0
        %2753 = vmatprep.subr.mxu0 0.0
        %2754 = vmatpush1.xpose.msra.mxu0 0.0
        %2755 = vmatprep.subr.mxu0 0.0
        %2756 = vmatpush1.xpose.msra.mxu0 0.0
        %2757 = vmatprep.subr.mxu0 0.0
        %2758 = vmatpush1.xpose.msra.mxu0 0.0
        %2759 = vmatprep.subr.mxu0 0.0
        %2760 = vmatpush1.xpose.msra.mxu0 0.0
        %2761 = vmatprep.subr.mxu0 0.0
        %2762 = vmatpush1.xpose.msra.mxu0 %v2729
        %2763 = vmatprep.subr.mxu0 0.0
        %2764 = vmatpush2.xpose.msra.mxu0 0.0
        %2765 = vmatprep.subr.mxu0 0.0
        %2766 = vmatpush2.xpose.msra.mxu0 0.0
        %2767 = vmatprep.subr.mxu0 0.0
        %2768 = vmatpush2.xpose.msra.mxu0 0.0
        %2769 = vmatprep.subr.mxu0 0.0
        %2770 = vmatpush2.xpose.msra.mxu0 0.0
        %2771 = vmatprep.subr.mxu0 0.0
        %2772 = vmatpush2.xpose.msra.mxu0 0.0
        %2773 = vmatprep.subr.mxu0 0.0
        %2774 = vmatpush2.xpose.msra.mxu0 0.0
        %2775 = vmatprep.subr.mxu0 0.0
        %2776 = vmatpush2.xpose.msra.mxu0 0.0
        %2777 = vmatprep.subr.mxu0 0.0
        %2778 = vmatpush2.xpose.msra.mxu0 0.0
        %2779 = vmatprep.subr.mxu0 0.0
        %2780 = vmatpush2.xpose.msra.mxu0 0.0
        %2781 = vmatprep.subr.mxu0 0.0
        %2782 = vmatpush2.xpose.msra.mxu0 0.0
        %2783 = vmatprep.subr.mxu0 0.0
        %2784 = vmatpush2.xpose.msra.mxu0 0.0
        %2785 = vmatprep.subr.mxu0 0.0
        %2786 = vmatpush2.xpose.msra.mxu0 0.0
        %2787 = vmatprep.subr.mxu0 0.0
        %2788 = vmatpush2.xpose.msra.mxu0 0.0
        %2789 = vmatprep.subr.mxu0 0.0
        %2790 = vmatpush2.xpose.msra.mxu0 0.0
        %2791 = vmatprep.subr.mxu0 0.0
        %2792 = vmatpush2.xpose.msra.mxu0 0.0
        %2793 = vmatprep.subr.mxu0 0.0
        %2794 = vmatpush2.xpose.msra.mxu0 0.0
        %2795 = vmatprep.mubr.f32.mxu0 0.0
        %2796 = vmatmul.mubr.f32.gmra.mxu0 %v2726
        %v2797 = vpop.f32.mrf.mxu0
        %v2798 = vadd.f32 0.0, %v2797
        %v2799 = vpop.f32.mrf.mxu0
        %2800 = vdwg.mxu0
        %v2801 = vmul.f32 %v2266, 0.125
        %v2802 = vmul.f32 %v2342, 0.125
        %v2803 = vmul.f32 %v2418, 0.125
        %v2804 = vmul.f32 %v2494, 0.125
        %v2805 = vmul.f32 %v2570, 0.125
        %v2806 = vmul.f32 %v2646, 0.125
        %v2807 = vmul.f32 %v2722, 0.125
        %v2808 = vmul.f32 %v2798, 0.125
        %vm2809 = vcmask 64512
        %v2810 = vsel %vm2809, %v2801, -inf
        %2811 = vmax.xlane.f32.xlu0 %v2810
        %v2812 = vpop.xlane.xlu0 %2811
        %v2813 = vsel %vm2809, %v2802, -inf
        %2814 = vmax.xlane.f32.xlu0 %v2813
        %v2815 = vpop.xlane.xlu0 %2814
        %v2816 = vsel %vm2809, %v2803, -inf
        %2817 = vmax.xlane.f32.xlu0 %v2816
        %v2818 = vpop.xlane.xlu0 %2817
        %v2819 = vsel %vm2809, %v2804, -inf
        %2820 = vmax.xlane.f32.xlu0 %v2819
        %v2821 = vpop.xlane.xlu0 %2820
        %v2822 = vsel %vm2809, %v2805, -inf
        %2823 = vmax.xlane.f32.xlu0 %v2822
        %v2824 = vpop.xlane.xlu0 %2823
        %v2825 = vsel %vm2809, %v2806, -inf
        %2826 = vmax.xlane.f32.xlu0 %v2825
        %v2827 = vpop.xlane.xlu0 %2826
        %v2828 = vsel %vm2809, %v2807, -inf
        %2829 = vmax.xlane.f32.xlu0 %v2828
        %v2830 = vpop.xlane.xlu0 %2829
        %v2831 = vsel %vm2809, %v2808, -inf
        %2832 = vmax.xlane.f32.xlu0 %v2831
        %v2833 = vpop.xlane.xlu0 %2832
        %v2834 = vsub.f32 %v2801, %v2812
        %v2835 = vsub.f32 %v2802, %v2815
        %v2836 = vsub.f32 %v2803, %v2818
        %v2837 = vsub.f32 %v2804, %v2821
        %v2838 = vsub.f32 %v2805, %v2824
        %v2839 = vsub.f32 %v2806, %v2827
        %v2840 = vsub.f32 %v2807, %v2830
        %v2841 = vsub.f32 %v2808, %v2833
        %v2842 = vmul.f32 %v2834, 1.442695
        %v2843 = vpow.pop %v2842
        %v2844 = vmul.f32 %v2835, 1.442695
        %v2845 = vpow.pop %v2844
        %v2846 = vmul.f32 %v2836, 1.442695
        %v2847 = vpow.pop %v2846
        %v2848 = vmul.f32 %v2837, 1.442695
        %v2849 = vpow.pop %v2848
        %v2850 = vmul.f32 %v2838, 1.442695
        %v2851 = vpow.pop %v2850
        %v2852 = vmul.f32 %v2839, 1.442695
        %v2853 = vpow.pop %v2852
        %v2854 = vmul.f32 %v2840, 1.442695
        %v2855 = vpow.pop %v2854
        %v2856 = vmul.f32 %v2841, 1.442695
        %v2857 = vpow.pop %v2856
        %v2858 = vsel %vm2809, %v2843, 0.0
        %2859 = vadd.xlane.f32.xlu0 %v2858
        %v2860 = vpop.xlane.xlu0 %2859
        %v2861 = vsel %vm2809, %v2845, 0.0
        %2862 = vadd.xlane.f32.xlu0 %v2861
        %v2863 = vpop.xlane.xlu0 %2862
        %v2864 = vsel %vm2809, %v2847, 0.0
        %2865 = vadd.xlane.f32.xlu0 %v2864
        %v2866 = vpop.xlane.xlu0 %2865
        %v2867 = vsel %vm2809, %v2849, 0.0
        %2868 = vadd.xlane.f32.xlu0 %v2867
        %v2869 = vpop.xlane.xlu0 %2868
        %v2870 = vsel %vm2809, %v2851, 0.0
        %2871 = vadd.xlane.f32.xlu0 %v2870
        %v2872 = vpop.xlane.xlu0 %2871
        %v2873 = vsel %vm2809, %v2853, 0.0
        %2874 = vadd.xlane.f32.xlu0 %v2873
        %v2875 = vpop.xlane.xlu0 %2874
        %v2876 = vsel %vm2809, %v2855, 0.0
        %2877 = vadd.xlane.f32.xlu0 %v2876
        %v2878 = vpop.xlane.xlu0 %2877
        %v2879 = vsel %vm2809, %v2857, 0.0
        %2880 = vadd.xlane.f32.xlu0 %v2879
        %v2881 = vpop.xlane.xlu0 %2880
        %v2882 = vrcp.pop %v2860
        %v2883 = vmul.f32 %v2843, %v2882
        %v2884 = vrcp.pop %v2863
        %v2885 = vmul.f32 %v2845, %v2884
        %v2886 = vrcp.pop %v2866
        %v2887 = vmul.f32 %v2847, %v2886
        %v2888 = vrcp.pop %v2869
        %v2889 = vmul.f32 %v2849, %v2888
        %v2890 = vrcp.pop %v2872
        %v2891 = vmul.f32 %v2851, %v2890
        %v2892 = vrcp.pop %v2875
        %v2893 = vmul.f32 %v2853, %v2892
        %v2894 = vrcp.pop %v2878
        %v2895 = vmul.f32 %v2855, %v2894
        %v2896 = vrcp.pop %v2881
        %v2897 = vmul.f32 %v2857, %v2896
        %2898 = vst.msk [vmem:[%s402] sm:$0xff] %vm2809, %v2883
        %2899 = vst.msk [vmem:[%s402 + $0x8] sm:$0xff] %vm2809, %v2885
        %2900 = vst.msk [vmem:[%s402 + $0x10] sm:$0xff] %vm2809, %v2887
        %2901 = vst.msk [vmem:[%s402 + $0x18] sm:$0xff] %vm2809, %v2889
        %2902 = vst.msk [vmem:[%s402 + $0x20] sm:$0xff] %vm2809, %v2891
        %2903 = vst.msk [vmem:[%s402 + $0x28] sm:$0xff] %vm2809, %v2893
        %2904 = vst.msk [vmem:[%s402 + $0x30] sm:$0xff] %vm2809, %v2895
        %2905 = vst.msk [vmem:[%s402 + $0x38] sm:$0xff] %vm2809, %v2897
        %v2907 = vsel %vm2809, %v2883, 0
        %2909 = vmatprep.subr.mxu0 0.0
        %2910 = vmatpush1.msra.mxu0 0.0
        %2911 = vmatprep.subr.mxu0 0.0
        %2912 = vmatpush1.msra.mxu0 0.0
        %2913 = vmatprep.subr.mxu0 0.0
        %2914 = vmatpush1.msra.mxu0 0.0
        %2915 = vmatprep.subr.mxu0 0.0
        %2916 = vmatpush1.msra.mxu0 0.0
        %2917 = vmatprep.subr.mxu0 0.0
        %2918 = vmatpush1.msra.mxu0 0.0
        %2919 = vmatprep.subr.mxu0 0.0
        %2920 = vmatpush1.msra.mxu0 0.0
        %2921 = vmatprep.subr.mxu0 0.0
        %2922 = vmatpush1.msra.mxu0 0.0
        %2923 = vmatprep.subr.mxu0 0.0
        %2924 = vmatpush1.msra.mxu0 0.0
        %2925 = vmatprep.subr.mxu0 0.0
        %2926 = vmatpush1.msra.mxu0 0.0
        %2927 = vmatprep.subr.mxu0 0.0
        %2928 = vmatpush1.msra.mxu0 0.0
        %2929 = vmatprep.subr.mxu0 0.0
        %2930 = vmatpush1.msra.mxu0 0.0
        %2931 = vmatprep.subr.mxu0 0.0
        %2932 = vmatpush1.msra.mxu0 0.0
        %2933 = vmatprep.subr.mxu0 0.0
        %2934 = vmatpush1.msra.mxu0 0.0
        %2935 = vmatprep.subr.mxu0 0.0
        %2936 = vmatpush1.msra.mxu0 0.0
        %2937 = vmatprep.subr.mxu0 0.0
        %2938 = vmatpush1.msra.mxu0 0.0
        %2939 = vmatprep.subr.mxu0 0.0
        %2940 = vmatpush1.msra.mxu0 %v1699
        %2941 = vmatprep.subr.mxu0 0.0
        %2942 = vmatpush2.msra.mxu0 0.0
        %2943 = vmatprep.subr.mxu0 0.0
        %2944 = vmatpush2.msra.mxu0 0.0
        %2945 = vmatprep.subr.mxu0 0.0
        %2946 = vmatpush2.msra.mxu0 0.0
        %2947 = vmatprep.subr.mxu0 0.0
        %2948 = vmatpush2.msra.mxu0 0.0
        %2949 = vmatprep.subr.mxu0 0.0
        %2950 = vmatpush2.msra.mxu0 0.0
        %2951 = vmatprep.subr.mxu0 0.0
        %2952 = vmatpush2.msra.mxu0 0.0
        %2953 = vmatprep.subr.mxu0 0.0
        %2954 = vmatpush2.msra.mxu0 0.0
        %2955 = vmatprep.subr.mxu0 0.0
        %2956 = vmatpush2.msra.mxu0 0.0
        %2957 = vmatprep.subr.mxu0 0.0
        %2958 = vmatpush2.msra.mxu0 0.0
        %2959 = vmatprep.subr.mxu0 0.0
        %2960 = vmatpush2.msra.mxu0 0.0
        %2961 = vmatprep.subr.mxu0 0.0
        %2962 = vmatpush2.msra.mxu0 0.0
        %2963 = vmatprep.subr.mxu0 0.0
        %2964 = vmatpush2.msra.mxu0 0.0
        %2965 = vmatprep.subr.mxu0 0.0
        %2966 = vmatpush2.msra.mxu0 0.0
        %2967 = vmatprep.subr.mxu0 0.0
        %2968 = vmatpush2.msra.mxu0 0.0
        %2969 = vmatprep.subr.mxu0 0.0
        %2970 = vmatpush2.msra.mxu0 0.0
        %2971 = vmatprep.subr.mxu0 0.0
        %2972 = vmatpush2.msra.mxu0 0.0
        %2973 = vmatprep.mubr.f32.mxu0 0.0
        %2974 = vmatmul.mubr.f32.gmra.mxu0 %v2907
        %v2975 = vpop.f32.mrf.mxu0
        %v2976 = vadd.f32 0.0, %v2975
        %v2977 = vpop.f32.mrf.mxu0
        %2978 = vdwg.mxu0
        %v2980 = vsel %vm2809, %v2885, 0
        %2982 = vmatprep.subr.mxu0 0.0
        %2983 = vmatpush1.msra.mxu0 0.0
        %2984 = vmatprep.subr.mxu0 0.0
        %2985 = vmatpush1.msra.mxu0 0.0
        %2986 = vmatprep.subr.mxu0 0.0
        %2987 = vmatpush1.msra.mxu0 0.0
        %2988 = vmatprep.subr.mxu0 0.0
        %2989 = vmatpush1.msra.mxu0 0.0
        %2990 = vmatprep.subr.mxu0 0.0
        %2991 = vmatpush1.msra.mxu0 0.0
        %2992 = vmatprep.subr.mxu0 0.0
        %2993 = vmatpush1.msra.mxu0 0.0
        %2994 = vmatprep.subr.mxu0 0.0
        %2995 = vmatpush1.msra.mxu0 0.0
        %2996 = vmatprep.subr.mxu0 0.0
        %2997 = vmatpush1.msra.mxu0 0.0
        %2998 = vmatprep.subr.mxu0 0.0
        %2999 = vmatpush1.msra.mxu0 0.0
        %3000 = vmatprep.subr.mxu0 0.0
        %3001 = vmatpush1.msra.mxu0 0.0
        %3002 = vmatprep.subr.mxu0 0.0
        %3003 = vmatpush1.msra.mxu0 0.0
        %3004 = vmatprep.subr.mxu0 0.0
        %3005 = vmatpush1.msra.mxu0 0.0
        %3006 = vmatprep.subr.mxu0 0.0
        %3007 = vmatpush1.msra.mxu0 0.0
        %3008 = vmatprep.subr.mxu0 0.0
        %3009 = vmatpush1.msra.mxu0 0.0
        %3010 = vmatprep.subr.mxu0 0.0
        %3011 = vmatpush1.msra.mxu0 0.0
        %3012 = vmatprep.subr.mxu0 0.0
        %3013 = vmatpush1.msra.mxu0 %v1769
        %3014 = vmatprep.subr.mxu0 0.0
        %3015 = vmatpush2.msra.mxu0 0.0
        %3016 = vmatprep.subr.mxu0 0.0
        %3017 = vmatpush2.msra.mxu0 0.0
        %3018 = vmatprep.subr.mxu0 0.0
        %3019 = vmatpush2.msra.mxu0 0.0
        %3020 = vmatprep.subr.mxu0 0.0
        %3021 = vmatpush2.msra.mxu0 0.0
        %3022 = vmatprep.subr.mxu0 0.0
        %3023 = vmatpush2.msra.mxu0 0.0
        %3024 = vmatprep.subr.mxu0 0.0
        %3025 = vmatpush2.msra.mxu0 0.0
        %3026 = vmatprep.subr.mxu0 0.0
        %3027 = vmatpush2.msra.mxu0 0.0
        %3028 = vmatprep.subr.mxu0 0.0
        %3029 = vmatpush2.msra.mxu0 0.0
        %3030 = vmatprep.subr.mxu0 0.0
        %3031 = vmatpush2.msra.mxu0 0.0
        %3032 = vmatprep.subr.mxu0 0.0
        %3033 = vmatpush2.msra.mxu0 0.0
        %3034 = vmatprep.subr.mxu0 0.0
        %3035 = vmatpush2.msra.mxu0 0.0
        %3036 = vmatprep.subr.mxu0 0.0
        %3037 = vmatpush2.msra.mxu0 0.0
        %3038 = vmatprep.subr.mxu0 0.0
        %3039 = vmatpush2.msra.mxu0 0.0
        %3040 = vmatprep.subr.mxu0 0.0
        %3041 = vmatpush2.msra.mxu0 0.0
        %3042 = vmatprep.subr.mxu0 0.0
        %3043 = vmatpush2.msra.mxu0 0.0
        %3044 = vmatprep.subr.mxu0 0.0
        %3045 = vmatpush2.msra.mxu0 0.0
        %3046 = vmatprep.mubr.f32.mxu0 0.0
        %3047 = vmatmul.mubr.f32.gmra.mxu0 %v2980
        %v3048 = vpop.f32.mrf.mxu0
        %v3049 = vadd.f32 0.0, %v3048
        %v3050 = vpop.f32.mrf.mxu0
        %3051 = vdwg.mxu0
        %v3053 = vsel %vm2809, %v2887, 0
        %3055 = vmatprep.subr.mxu0 0.0
        %3056 = vmatpush1.msra.mxu0 0.0
        %3057 = vmatprep.subr.mxu0 0.0
        %3058 = vmatpush1.msra.mxu0 0.0
        %3059 = vmatprep.subr.mxu0 0.0
        %3060 = vmatpush1.msra.mxu0 0.0
        %3061 = vmatprep.subr.mxu0 0.0
        %3062 = vmatpush1.msra.mxu0 0.0
        %3063 = vmatprep.subr.mxu0 0.0
        %3064 = vmatpush1.msra.mxu0 0.0
        %3065 = vmatprep.subr.mxu0 0.0
        %3066 = vmatpush1.msra.mxu0 0.0
        %3067 = vmatprep.subr.mxu0 0.0
        %3068 = vmatpush1.msra.mxu0 0.0
        %3069 = vmatprep.subr.mxu0 0.0
        %3070 = vmatpush1.msra.mxu0 0.0
        %3071 = vmatprep.subr.mxu0 0.0
        %3072 = vmatpush1.msra.mxu0 0.0
        %3073 = vmatprep.subr.mxu0 0.0
        %3074 = vmatpush1.msra.mxu0 0.0
        %3075 = vmatprep.subr.mxu0 0.0
        %3076 = vmatpush1.msra.mxu0 0.0
        %3077 = vmatprep.subr.mxu0 0.0
        %3078 = vmatpush1.msra.mxu0 0.0
        %3079 = vmatprep.subr.mxu0 0.0
        %3080 = vmatpush1.msra.mxu0 0.0
        %3081 = vmatprep.subr.mxu0 0.0
        %3082 = vmatpush1.msra.mxu0 0.0
        %3083 = vmatprep.subr.mxu0 0.0
        %3084 = vmatpush1.msra.mxu0 0.0
        %3085 = vmatprep.subr.mxu0 0.0
        %3086 = vmatpush1.msra.mxu0 %v1839
        %3087 = vmatprep.subr.mxu0 0.0
        %3088 = vmatpush2.msra.mxu0 0.0
        %3089 = vmatprep.subr.mxu0 0.0
        %3090 = vmatpush2.msra.mxu0 0.0
        %3091 = vmatprep.subr.mxu0 0.0
        %3092 = vmatpush2.msra.mxu0 0.0
        %3093 = vmatprep.subr.mxu0 0.0
        %3094 = vmatpush2.msra.mxu0 0.0
        %3095 = vmatprep.subr.mxu0 0.0
        %3096 = vmatpush2.msra.mxu0 0.0
        %3097 = vmatprep.subr.mxu0 0.0
        %3098 = vmatpush2.msra.mxu0 0.0
        %3099 = vmatprep.subr.mxu0 0.0
        %3100 = vmatpush2.msra.mxu0 0.0
        %3101 = vmatprep.subr.mxu0 0.0
        %3102 = vmatpush2.msra.mxu0 0.0
        %3103 = vmatprep.subr.mxu0 0.0
        %3104 = vmatpush2.msra.mxu0 0.0
        %3105 = vmatprep.subr.mxu0 0.0
        %3106 = vmatpush2.msra.mxu0 0.0
        %3107 = vmatprep.subr.mxu0 0.0
        %3108 = vmatpush2.msra.mxu0 0.0
        %3109 = vmatprep.subr.mxu0 0.0
        %3110 = vmatpush2.msra.mxu0 0.0
        %3111 = vmatprep.subr.mxu0 0.0
        %3112 = vmatpush2.msra.mxu0 0.0
        %3113 = vmatprep.subr.mxu0 0.0
        %3114 = vmatpush2.msra.mxu0 0.0
        %3115 = vmatprep.subr.mxu0 0.0
        %3116 = vmatpush2.msra.mxu0 0.0
        %3117 = vmatprep.subr.mxu0 0.0
        %3118 = vmatpush2.msra.mxu0 0.0
        %3119 = vmatprep.mubr.f32.mxu0 0.0
        %3120 = vmatmul.mubr.f32.gmra.mxu0 %v3053
        %v3121 = vpop.f32.mrf.mxu0
        %v3122 = vadd.f32 0.0, %v3121
        %v3123 = vpop.f32.mrf.mxu0
        %3124 = vdwg.mxu0
        %v3126 = vsel %vm2809, %v2889, 0
        %3128 = vmatprep.subr.mxu0 0.0
        %3129 = vmatpush1.msra.mxu0 0.0
        %3130 = vmatprep.subr.mxu0 0.0
        %3131 = vmatpush1.msra.mxu0 0.0
        %3132 = vmatprep.subr.mxu0 0.0
        %3133 = vmatpush1.msra.mxu0 0.0
        %3134 = vmatprep.subr.mxu0 0.0
        %3135 = vmatpush1.msra.mxu0 0.0
        %3136 = vmatprep.subr.mxu0 0.0
        %3137 = vmatpush1.msra.mxu0 0.0
        %3138 = vmatprep.subr.mxu0 0.0
        %3139 = vmatpush1.msra.mxu0 0.0
        %3140 = vmatprep.subr.mxu0 0.0
        %3141 = vmatpush1.msra.mxu0 0.0
        %3142 = vmatprep.subr.mxu0 0.0
        %3143 = vmatpush1.msra.mxu0 0.0
        %3144 = vmatprep.subr.mxu0 0.0
        %3145 = vmatpush1.msra.mxu0 0.0
        %3146 = vmatprep.subr.mxu0 0.0
        %3147 = vmatpush1.msra.mxu0 0.0
        %3148 = vmatprep.subr.mxu0 0.0
        %3149 = vmatpush1.msra.mxu0 0.0
        %3150 = vmatprep.subr.mxu0 0.0
        %3151 = vmatpush1.msra.mxu0 0.0
        %3152 = vmatprep.subr.mxu0 0.0
        %3153 = vmatpush1.msra.mxu0 0.0
        %3154 = vmatprep.subr.mxu0 0.0
        %3155 = vmatpush1.msra.mxu0 0.0
        %3156 = vmatprep.subr.mxu0 0.0
        %3157 = vmatpush1.msra.mxu0 0.0
        %3158 = vmatprep.subr.mxu0 0.0
        %3159 = vmatpush1.msra.mxu0 %v1909
        %3160 = vmatprep.subr.mxu0 0.0
        %3161 = vmatpush2.msra.mxu0 0.0
        %3162 = vmatprep.subr.mxu0 0.0
        %3163 = vmatpush2.msra.mxu0 0.0
        %3164 = vmatprep.subr.mxu0 0.0
        %3165 = vmatpush2.msra.mxu0 0.0
        %3166 = vmatprep.subr.mxu0 0.0
        %3167 = vmatpush2.msra.mxu0 0.0
        %3168 = vmatprep.subr.mxu0 0.0
        %3169 = vmatpush2.msra.mxu0 0.0
        %3170 = vmatprep.subr.mxu0 0.0
        %3171 = vmatpush2.msra.mxu0 0.0
        %3172 = vmatprep.subr.mxu0 0.0
        %3173 = vmatpush2.msra.mxu0 0.0
        %3174 = vmatprep.subr.mxu0 0.0
        %3175 = vmatpush2.msra.mxu0 0.0
        %3176 = vmatprep.subr.mxu0 0.0
        %3177 = vmatpush2.msra.mxu0 0.0
        %3178 = vmatprep.subr.mxu0 0.0
        %3179 = vmatpush2.msra.mxu0 0.0
        %3180 = vmatprep.subr.mxu0 0.0
        %3181 = vmatpush2.msra.mxu0 0.0
        %3182 = vmatprep.subr.mxu0 0.0
        %3183 = vmatpush2.msra.mxu0 0.0
        %3184 = vmatprep.subr.mxu0 0.0
        %3185 = vmatpush2.msra.mxu0 0.0
        %3186 = vmatprep.subr.mxu0 0.0
        %3187 = vmatpush2.msra.mxu0 0.0
        %3188 = vmatprep.subr.mxu0 0.0
        %3189 = vmatpush2.msra.mxu0 0.0
        %3190 = vmatprep.subr.mxu0 0.0
        %3191 = vmatpush2.msra.mxu0 0.0
        %3192 = vmatprep.mubr.f32.mxu0 0.0
        %3193 = vmatmul.mubr.f32.gmra.mxu0 %v3126
        %v3194 = vpop.f32.mrf.mxu0
        %v3195 = vadd.f32 0.0, %v3194
        %v3196 = vpop.f32.mrf.mxu0
        %3197 = vdwg.mxu0
        %v3199 = vsel %vm2809, %v2891, 0
        %3201 = vmatprep.subr.mxu0 0.0
        %3202 = vmatpush1.msra.mxu0 0.0
        %3203 = vmatprep.subr.mxu0 0.0
        %3204 = vmatpush1.msra.mxu0 0.0
        %3205 = vmatprep.subr.mxu0 0.0
        %3206 = vmatpush1.msra.mxu0 0.0
        %3207 = vmatprep.subr.mxu0 0.0
        %3208 = vmatpush1.msra.mxu0 0.0
        %3209 = vmatprep.subr.mxu0 0.0
        %3210 = vmatpush1.msra.mxu0 0.0
        %3211 = vmatprep.subr.mxu0 0.0
        %3212 = vmatpush1.msra.mxu0 0.0
        %3213 = vmatprep.subr.mxu0 0.0
        %3214 = vmatpush1.msra.mxu0 0.0
        %3215 = vmatprep.subr.mxu0 0.0
        %3216 = vmatpush1.msra.mxu0 0.0
        %3217 = vmatprep.subr.mxu0 0.0
        %3218 = vmatpush1.msra.mxu0 0.0
        %3219 = vmatprep.subr.mxu0 0.0
        %3220 = vmatpush1.msra.mxu0 0.0
        %3221 = vmatprep.subr.mxu0 0.0
        %3222 = vmatpush1.msra.mxu0 0.0
        %3223 = vmatprep.subr.mxu0 0.0
        %3224 = vmatpush1.msra.mxu0 0.0
        %3225 = vmatprep.subr.mxu0 0.0
        %3226 = vmatpush1.msra.mxu0 0.0
        %3227 = vmatprep.subr.mxu0 0.0
        %3228 = vmatpush1.msra.mxu0 0.0
        %3229 = vmatprep.subr.mxu0 0.0
        %3230 = vmatpush1.msra.mxu0 0.0
        %3231 = vmatprep.subr.mxu0 0.0
        %3232 = vmatpush1.msra.mxu0 %v1979
        %3233 = vmatprep.subr.mxu0 0.0
        %3234 = vmatpush2.msra.mxu0 0.0
        %3235 = vmatprep.subr.mxu0 0.0
        %3236 = vmatpush2.msra.mxu0 0.0
        %3237 = vmatprep.subr.mxu0 0.0
        %3238 = vmatpush2.msra.mxu0 0.0
        %3239 = vmatprep.subr.mxu0 0.0
        %3240 = vmatpush2.msra.mxu0 0.0
        %3241 = vmatprep.subr.mxu0 0.0
        %3242 = vmatpush2.msra.mxu0 0.0
        %3243 = vmatprep.subr.mxu0 0.0
        %3244 = vmatpush2.msra.mxu0 0.0
        %3245 = vmatprep.subr.mxu0 0.0
        %3246 = vmatpush2.msra.mxu0 0.0
        %3247 = vmatprep.subr.mxu0 0.0
        %3248 = vmatpush2.msra.mxu0 0.0
        %3249 = vmatprep.subr.mxu0 0.0
        %3250 = vmatpush2.msra.mxu0 0.0
        %3251 = vmatprep.subr.mxu0 0.0
        %3252 = vmatpush2.msra.mxu0 0.0
        %3253 = vmatprep.subr.mxu0 0.0
        %3254 = vmatpush2.msra.mxu0 0.0
        %3255 = vmatprep.subr.mxu0 0.0
        %3256 = vmatpush2.msra.mxu0 0.0
        %3257 = vmatprep.subr.mxu0 0.0
        %3258 = vmatpush2.msra.mxu0 0.0
        %3259 = vmatprep.subr.mxu0 0.0
        %3260 = vmatpush2.msra.mxu0 0.0
        %3261 = vmatprep.subr.mxu0 0.0
        %3262 = vmatpush2.msra.mxu0 0.0
        %3263 = vmatprep.subr.mxu0 0.0
        %3264 = vmatpush2.msra.mxu0 0.0
        %3265 = vmatprep.mubr.f32.mxu0 0.0
        %3266 = vmatmul.mubr.f32.gmra.mxu0 %v3199
        %v3267 = vpop.f32.mrf.mxu0
        %v3268 = vadd.f32 0.0, %v3267
        %v3269 = vpop.f32.mrf.mxu0
        %3270 = vdwg.mxu0
        %v3272 = vsel %vm2809, %v2893, 0
        %3274 = vmatprep.subr.mxu0 0.0
        %3275 = vmatpush1.msra.mxu0 0.0
        %3276 = vmatprep.subr.mxu0 0.0
        %3277 = vmatpush1.msra.mxu0 0.0
        %3278 = vmatprep.subr.mxu0 0.0
        %3279 = vmatpush1.msra.mxu0 0.0
        %3280 = vmatprep.subr.mxu0 0.0
        %3281 = vmatpush1.msra.mxu0 0.0
        %3282 = vmatprep.subr.mxu0 0.0
        %3283 = vmatpush1.msra.mxu0 0.0
        %3284 = vmatprep.subr.mxu0 0.0
        %3285 = vmatpush1.msra.mxu0 0.0
        %3286 = vmatprep.subr.mxu0 0.0
        %3287 = vmatpush1.msra.mxu0 0.0
        %3288 = vmatprep.subr.mxu0 0.0
        %3289 = vmatpush1.msra.mxu0 0.0
        %3290 = vmatprep.subr.mxu0 0.0
        %3291 = vmatpush1.msra.mxu0 0.0
        %3292 = vmatprep.subr.mxu0 0.0
        %3293 = vmatpush1.msra.mxu0 0.0
        %3294 = vmatprep.subr.mxu0 0.0
        %3295 = vmatpush1.msra.mxu0 0.0
        %3296 = vmatprep.subr.mxu0 0.0
        %3297 = vmatpush1.msra.mxu0 0.0
        %3298 = vmatprep.subr.mxu0 0.0
        %3299 = vmatpush1.msra.mxu0 0.0
        %3300 = vmatprep.subr.mxu0 0.0
        %3301 = vmatpush1.msra.mxu0 0.0
        %3302 = vmatprep.subr.mxu0 0.0
        %3303 = vmatpush1.msra.mxu0 0.0
        %3304 = vmatprep.subr.mxu0 0.0
        %3305 = vmatpush1.msra.mxu0 %v2049
        %3306 = vmatprep.subr.mxu0 0.0
        %3307 = vmatpush2.msra.mxu0 0.0
        %3308 = vmatprep.subr.mxu0 0.0
        %3309 = vmatpush2.msra.mxu0 0.0
        %3310 = vmatprep.subr.mxu0 0.0
        %3311 = vmatpush2.msra.mxu0 0.0
        %3312 = vmatprep.subr.mxu0 0.0
        %3313 = vmatpush2.msra.mxu0 0.0
        %3314 = vmatprep.subr.mxu0 0.0
        %3315 = vmatpush2.msra.mxu0 0.0
        %3316 = vmatprep.subr.mxu0 0.0
        %3317 = vmatpush2.msra.mxu0 0.0
        %3318 = vmatprep.subr.mxu0 0.0
        %3319 = vmatpush2.msra.mxu0 0.0
        %3320 = vmatprep.subr.mxu0 0.0
        %3321 = vmatpush2.msra.mxu0 0.0
        %3322 = vmatprep.subr.mxu0 0.0
        %3323 = vmatpush2.msra.mxu0 0.0
        %3324 = vmatprep.subr.mxu0 0.0
        %3325 = vmatpush2.msra.mxu0 0.0
        %3326 = vmatprep.subr.mxu0 0.0
        %3327 = vmatpush2.msra.mxu0 0.0
        %3328 = vmatprep.subr.mxu0 0.0
        %3329 = vmatpush2.msra.mxu0 0.0
        %3330 = vmatprep.subr.mxu0 0.0
        %3331 = vmatpush2.msra.mxu0 0.0
        %3332 = vmatprep.subr.mxu0 0.0
        %3333 = vmatpush2.msra.mxu0 0.0
        %3334 = vmatprep.subr.mxu0 0.0
        %3335 = vmatpush2.msra.mxu0 0.0
        %3336 = vmatprep.subr.mxu0 0.0
        %3337 = vmatpush2.msra.mxu0 0.0
        %3338 = vmatprep.mubr.f32.mxu0 0.0
        %3339 = vmatmul.mubr.f32.gmra.mxu0 %v3272
        %v3340 = vpop.f32.mrf.mxu0
        %v3341 = vadd.f32 0.0, %v3340
        %v3342 = vpop.f32.mrf.mxu0
        %3343 = vdwg.mxu0
        %v3345 = vsel %vm2809, %v2895, 0
        %3347 = vmatprep.subr.mxu0 0.0
        %3348 = vmatpush1.msra.mxu0 0.0
        %3349 = vmatprep.subr.mxu0 0.0
        %3350 = vmatpush1.msra.mxu0 0.0
        %3351 = vmatprep.subr.mxu0 0.0
        %3352 = vmatpush1.msra.mxu0 0.0
        %3353 = vmatprep.subr.mxu0 0.0
        %3354 = vmatpush1.msra.mxu0 0.0
        %3355 = vmatprep.subr.mxu0 0.0
        %3356 = vmatpush1.msra.mxu0 0.0
        %3357 = vmatprep.subr.mxu0 0.0
        %3358 = vmatpush1.msra.mxu0 0.0
        %3359 = vmatprep.subr.mxu0 0.0
        %3360 = vmatpush1.msra.mxu0 0.0
        %3361 = vmatprep.subr.mxu0 0.0
        %3362 = vmatpush1.msra.mxu0 0.0
        %3363 = vmatprep.subr.mxu0 0.0
        %3364 = vmatpush1.msra.mxu0 0.0
        %3365 = vmatprep.subr.mxu0 0.0
        %3366 = vmatpush1.msra.mxu0 0.0
        %3367 = vmatprep.subr.mxu0 0.0
        %3368 = vmatpush1.msra.mxu0 0.0
        %3369 = vmatprep.subr.mxu0 0.0
        %3370 = vmatpush1.msra.mxu0 0.0
        %3371 = vmatprep.subr.mxu0 0.0
        %3372 = vmatpush1.msra.mxu0 0.0
        %3373 = vmatprep.subr.mxu0 0.0
        %3374 = vmatpush1.msra.mxu0 0.0
        %3375 = vmatprep.subr.mxu0 0.0
        %3376 = vmatpush1.msra.mxu0 0.0
        %3377 = vmatprep.subr.mxu0 0.0
        %3378 = vmatpush1.msra.mxu0 %v2119
        %3379 = vmatprep.subr.mxu0 0.0
        %3380 = vmatpush2.msra.mxu0 0.0
        %3381 = vmatprep.subr.mxu0 0.0
        %3382 = vmatpush2.msra.mxu0 0.0
        %3383 = vmatprep.subr.mxu0 0.0
        %3384 = vmatpush2.msra.mxu0 0.0
        %3385 = vmatprep.subr.mxu0 0.0
        %3386 = vmatpush2.msra.mxu0 0.0
        %3387 = vmatprep.subr.mxu0 0.0
        %3388 = vmatpush2.msra.mxu0 0.0
        %3389 = vmatprep.subr.mxu0 0.0
        %3390 = vmatpush2.msra.mxu0 0.0
        %3391 = vmatprep.subr.mxu0 0.0
        %3392 = vmatpush2.msra.mxu0 0.0
        %3393 = vmatprep.subr.mxu0 0.0
        %3394 = vmatpush2.msra.mxu0 0.0
        %3395 = vmatprep.subr.mxu0 0.0
        %3396 = vmatpush2.msra.mxu0 0.0
        %3397 = vmatprep.subr.mxu0 0.0
        %3398 = vmatpush2.msra.mxu0 0.0
        %3399 = vmatprep.subr.mxu0 0.0
        %3400 = vmatpush2.msra.mxu0 0.0
        %3401 = vmatprep.subr.mxu0 0.0
        %3402 = vmatpush2.msra.mxu0 0.0
        %3403 = vmatprep.subr.mxu0 0.0
        %3404 = vmatpush2.msra.mxu0 0.0
        %3405 = vmatprep.subr.mxu0 0.0
        %3406 = vmatpush2.msra.mxu0 0.0
        %3407 = vmatprep.subr.mxu0 0.0
        %3408 = vmatpush2.msra.mxu0 0.0
        %3409 = vmatprep.subr.mxu0 0.0
        %3410 = vmatpush2.msra.mxu0 0.0
        %3411 = vmatprep.mubr.f32.mxu0 0.0
        %3412 = vmatmul.mubr.f32.gmra.mxu0 %v3345
        %v3413 = vpop.f32.mrf.mxu0
        %v3414 = vadd.f32 0.0, %v3413
        %v3415 = vpop.f32.mrf.mxu0
        %3416 = vdwg.mxu0
        %v3418 = vsel %vm2809, %v2897, 0
        %3420 = vmatprep.subr.mxu0 0.0
        %3421 = vmatpush1.msra.mxu0 0.0
        %3422 = vmatprep.subr.mxu0 0.0
        %3423 = vmatpush1.msra.mxu0 0.0
        %3424 = vmatprep.subr.mxu0 0.0
        %3425 = vmatpush1.msra.mxu0 0.0
        %3426 = vmatprep.subr.mxu0 0.0
        %3427 = vmatpush1.msra.mxu0 0.0
        %3428 = vmatprep.subr.mxu0 0.0
        %3429 = vmatpush1.msra.mxu0 0.0
        %3430 = vmatprep.subr.mxu0 0.0
        %3431 = vmatpush1.msra.mxu0 0.0
        %3432 = vmatprep.subr.mxu0 0.0
        %3433 = vmatpush1.msra.mxu0 0.0
        %3434 = vmatprep.subr.mxu0 0.0
        %3435 = vmatpush1.msra.mxu0 0.0
        %3436 = vmatprep.subr.mxu0 0.0
        %3437 = vmatpush1.msra.mxu0 0.0
        %3438 = vmatprep.subr.mxu0 0.0
        %3439 = vmatpush1.msra.mxu0 0.0
        %3440 = vmatprep.subr.mxu0 0.0
        %3441 = vmatpush1.msra.mxu0 0.0
        %3442 = vmatprep.subr.mxu0 0.0
        %3443 = vmatpush1.msra.mxu0 0.0
        %3444 = vmatprep.subr.mxu0 0.0
        %3445 = vmatpush1.msra.mxu0 0.0
        %3446 = vmatprep.subr.mxu0 0.0
        %3447 = vmatpush1.msra.mxu0 0.0
        %3448 = vmatprep.subr.mxu0 0.0
        %3449 = vmatpush1.msra.mxu0 0.0
        %3450 = vmatprep.subr.mxu0 0.0
        %3451 = vmatpush1.msra.mxu0 %v2189
        %3452 = vmatprep.subr.mxu0 0.0
        %3453 = vmatpush2.msra.mxu0 0.0
        %3454 = vmatprep.subr.mxu0 0.0
        %3455 = vmatpush2.msra.mxu0 0.0
        %3456 = vmatprep.subr.mxu0 0.0
        %3457 = vmatpush2.msra.mxu0 0.0
        %3458 = vmatprep.subr.mxu0 0.0
        %3459 = vmatpush2.msra.mxu0 0.0
        %3460 = vmatprep.subr.mxu0 0.0
        %3461 = vmatpush2.msra.mxu0 0.0
        %3462 = vmatprep.subr.mxu0 0.0
        %3463 = vmatpush2.msra.mxu0 0.0
        %3464 = vmatprep.subr.mxu0 0.0
        %3465 = vmatpush2.msra.mxu0 0.0
        %3466 = vmatprep.subr.mxu0 0.0
        %3467 = vmatpush2.msra.mxu0 0.0
        %3468 = vmatprep.subr.mxu0 0.0
        %3469 = vmatpush2.msra.mxu0 0.0
        %3470 = vmatprep.subr.mxu0 0.0
        %3471 = vmatpush2.msra.mxu0 0.0
        %3472 = vmatprep.subr.mxu0 0.0
        %3473 = vmatpush2.msra.mxu0 0.0
        %3474 = vmatprep.subr.mxu0 0.0
        %3475 = vmatpush2.msra.mxu0 0.0
        %3476 = vmatprep.subr.mxu0 0.0
        %3477 = vmatpush2.msra.mxu0 0.0
        %3478 = vmatprep.subr.mxu0 0.0
        %3479 = vmatpush2.msra.mxu0 0.0
        %3480 = vmatprep.subr.mxu0 0.0
        %3481 = vmatpush2.msra.mxu0 0.0
        %3482 = vmatprep.subr.mxu0 0.0
        %3483 = vmatpush2.msra.mxu0 0.0
        %3484 = vmatprep.mubr.f32.mxu0 0.0
        %3485 = vmatmul.mubr.f32.gmra.mxu0 %v3418
        %v3486 = vpop.f32.mrf.mxu0
        %v3487 = vadd.f32 0.0, %v3486
        %v3488 = vpop.f32.mrf.mxu0
        %3489 = vdwg.mxu0
        %v3490 = vld [vmem:[%s6] sm:$0xff]
        %v3491 = vld [vmem:[%s6 + $0x8] sm:$0xff]
        %v3492 = vld [vmem:[%s6 + $0x10] sm:$0xff]
        %v3493 = vld [vmem:[%s6 + $0x18] sm:$0xff]
        %v3494 = vld [vmem:[%s6 + $0x20] sm:$0xff]
        %v3495 = vld [vmem:[%s6 + $0x28] sm:$0xff]
        %v3496 = vld [vmem:[%s6 + $0x30] sm:$0xff]
        %v3497 = vld [vmem:[%s6 + $0x38] sm:$0xff]
        %v3498 = vld [vmem:[%s6 + $0x40] sm:$0xff]
        %v3499 = vld [vmem:[%s6 + $0x48] sm:$0xff]
        %v3500 = vld [vmem:[%s6 + $0x50] sm:$0xff]
        %v3501 = vld [vmem:[%s6 + $0x58] sm:$0xff]
        %v3502 = vld [vmem:[%s6 + $0x60] sm:$0xff]
        %v3503 = vld [vmem:[%s6 + $0x68] sm:$0xff]
        %v3504 = vld [vmem:[%s6 + $0x70] sm:$0xff]
        %v3505 = vld [vmem:[%s6 + $0x78] sm:$0xff]
        %v3506 = vld [vmem:[%s6 + $0x80] sm:$0xff]
        %v3507 = vld [vmem:[%s6 + $0x88] sm:$0xff]
        %v3508 = vld [vmem:[%s6 + $0x90] sm:$0xff]
        %v3509 = vld [vmem:[%s6 + $0x98] sm:$0xff]
        %v3510 = vld [vmem:[%s6 + $0xa0] sm:$0xff]
        %v3511 = vld [vmem:[%s6 + $0xa8] sm:$0xff]
        %v3512 = vld [vmem:[%s6 + $0xb0] sm:$0xff]
        %v3513 = vld [vmem:[%s6 + $0xb8] sm:$0xff]
        %v3514 = vld [vmem:[%s6 + $0xc0] sm:$0xff]
        %v3515 = vld [vmem:[%s6 + $0xc8] sm:$0xff]
        %v3516 = vld [vmem:[%s6 + $0xd0] sm:$0xff]
        %v3517 = vld [vmem:[%s6 + $0xd8] sm:$0xff]
        %v3518 = vld [vmem:[%s6 + $0xe0] sm:$0xff]
        %v3519 = vld [vmem:[%s6 + $0xe8] sm:$0xff]
        %v3520 = vld [vmem:[%s6 + $0xf0] sm:$0xff]
        %v3521 = vld [vmem:[%s6 + $0xf8] sm:$0xff]
        %v3522 = vld [vmem:[%s6 + $0x100] sm:$0xff]
        %v3523 = vld [vmem:[%s6 + $0x108] sm:$0xff]
        %v3524 = vld [vmem:[%s6 + $0x110] sm:$0xff]
        %v3525 = vld [vmem:[%s6 + $0x118] sm:$0xff]
        %v3526 = vld [vmem:[%s6 + $0x120] sm:$0xff]
        %v3527 = vld [vmem:[%s6 + $0x128] sm:$0xff]
        %v3528 = vld [vmem:[%s6 + $0x130] sm:$0xff]
        %v3529 = vld [vmem:[%s6 + $0x138] sm:$0xff]
        %v3530 = vld [vmem:[%s6 + $0x140] sm:$0xff]
        %v3531 = vld [vmem:[%s6 + $0x148] sm:$0xff]
        %v3532 = vld [vmem:[%s6 + $0x150] sm:$0xff]
        %v3533 = vld [vmem:[%s6 + $0x158] sm:$0xff]
        %v3534 = vld [vmem:[%s6 + $0x160] sm:$0xff]
        %v3535 = vld [vmem:[%s6 + $0x168] sm:$0xff]
        %v3536 = vld [vmem:[%s6 + $0x170] sm:$0xff]
        %v3537 = vld [vmem:[%s6 + $0x178] sm:$0xff]
        %v3538 = vld [vmem:[%s6 + $0x180] sm:$0xff]
        %v3539 = vld [vmem:[%s6 + $0x188] sm:$0xff]
        %v3540 = vld [vmem:[%s6 + $0x190] sm:$0xff]
        %v3541 = vld [vmem:[%s6 + $0x198] sm:$0xff]
        %v3542 = vld [vmem:[%s6 + $0x1a0] sm:$0xff]
        %v3543 = vld [vmem:[%s6 + $0x1a8] sm:$0xff]
        %v3544 = vld [vmem:[%s6 + $0x1b0] sm:$0xff]
        %v3545 = vld [vmem:[%s6 + $0x1b8] sm:$0xff]
        %v3546 = vld [vmem:[%s6 + $0x1c0] sm:$0xff]
        %v3547 = vld [vmem:[%s6 + $0x1c8] sm:$0xff]
        %v3548 = vld [vmem:[%s6 + $0x1d0] sm:$0xff]
        %v3549 = vld [vmem:[%s6 + $0x1d8] sm:$0xff]
        %v3550 = vld [vmem:[%s6 + $0x1e0] sm:$0xff]
        %v3551 = vld [vmem:[%s6 + $0x1e8] sm:$0xff]
        %v3552 = vld [vmem:[%s6 + $0x1f0] sm:$0xff]
        %v3553 = vld [vmem:[%s6 + $0x1f8] sm:$0xff]
        %v3555 = vsel %vm2192, %v2976, 0
        %3557 = vmatprep.subr.mxu0 0.0
        %3558 = vmatpush1.msra.mxu0 0.0
        %3559 = vmatprep.subr.mxu0 0.0
        %3560 = vmatpush1.msra.mxu0 0.0
        %3561 = vmatprep.subr.mxu0 0.0
        %3562 = vmatpush1.msra.mxu0 0.0
        %3563 = vmatprep.subr.mxu0 0.0
        %3564 = vmatpush1.msra.mxu0 0.0
        %3565 = vmatprep.subr.mxu0 0.0
        %3566 = vmatpush1.msra.mxu0 0.0
        %3567 = vmatprep.subr.mxu0 0.0
        %3568 = vmatpush1.msra.mxu0 0.0
        %3569 = vmatprep.subr.mxu0 0.0
        %3570 = vmatpush1.msra.mxu0 0.0
        %3571 = vmatprep.subr.mxu0 0.0
        %3572 = vmatpush1.msra.mxu0 0.0
        %3573 = vmatprep.subr.mxu0 0.0
        %3574 = vmatpush1.msra.mxu0 %v3497
        %3575 = vmatprep.subr.mxu0 0.0
        %3576 = vmatpush1.msra.mxu0 %v3496
        %3577 = vmatprep.subr.mxu0 0.0
        %3578 = vmatpush1.msra.mxu0 %v3495
        %3579 = vmatprep.subr.mxu0 0.0
        %3580 = vmatpush1.msra.mxu0 %v3494
        %3581 = vmatprep.subr.mxu0 0.0
        %3582 = vmatpush1.msra.mxu0 %v3493
        %3583 = vmatprep.subr.mxu0 0.0
        %3584 = vmatpush1.msra.mxu0 %v3492
        %3585 = vmatprep.subr.mxu0 0.0
        %3586 = vmatpush1.msra.mxu0 %v3491
        %3587 = vmatprep.subr.mxu0 0.0
        %3588 = vmatpush1.msra.mxu0 %v3490
        %3589 = vmatprep.subr.mxu0 0.0
        %3590 = vmatpush2.msra.mxu0 0.0
        %3591 = vmatprep.subr.mxu0 0.0
        %3592 = vmatpush2.msra.mxu0 0.0
        %3593 = vmatprep.subr.mxu0 0.0
        %3594 = vmatpush2.msra.mxu0 0.0
        %3595 = vmatprep.subr.mxu0 0.0
        %3596 = vmatpush2.msra.mxu0 0.0
        %3597 = vmatprep.subr.mxu0 0.0
        %3598 = vmatpush2.msra.mxu0 0.0
        %3599 = vmatprep.subr.mxu0 0.0
        %3600 = vmatpush2.msra.mxu0 0.0
        %3601 = vmatprep.subr.mxu0 0.0
        %3602 = vmatpush2.msra.mxu0 0.0
        %3603 = vmatprep.subr.mxu0 0.0
        %3604 = vmatpush2.msra.mxu0 0.0
        %3605 = vmatprep.subr.mxu0 0.0
        %3606 = vmatpush2.msra.mxu0 0.0
        %3607 = vmatprep.subr.mxu0 0.0
        %3608 = vmatpush2.msra.mxu0 0.0
        %3609 = vmatprep.subr.mxu0 0.0
        %3610 = vmatpush2.msra.mxu0 0.0
        %3611 = vmatprep.subr.mxu0 0.0
        %3612 = vmatpush2.msra.mxu0 0.0
        %3613 = vmatprep.subr.mxu0 0.0
        %3614 = vmatpush2.msra.mxu0 0.0
        %3615 = vmatprep.subr.mxu0 0.0
        %3616 = vmatpush2.msra.mxu0 0.0
        %3617 = vmatprep.subr.mxu0 0.0
        %3618 = vmatpush2.msra.mxu0 0.0
        %3619 = vmatprep.subr.mxu0 0.0
        %3620 = vmatpush2.msra.mxu0 0.0
        %3621 = vmatprep.mubr.f32.mxu0 0.0
        %3622 = vmatmul.mubr.f32.gmra.mxu0 %v3555
        %v3623 = vpop.f32.mrf.mxu0
        %v3624 = vadd.f32 0.0, %v3623
        %v3625 = vpop.f32.mrf.mxu0
        %3626 = vdwg.mxu0
        %v3628 = vsel %vm2192, %v3049, 0
        %3630 = vmatprep.subr.mxu0 0.0
        %3631 = vmatpush1.msra.mxu0 0.0
        %3632 = vmatprep.subr.mxu0 0.0
        %3633 = vmatpush1.msra.mxu0 0.0
        %3634 = vmatprep.subr.mxu0 0.0
        %3635 = vmatpush1.msra.mxu0 0.0
        %3636 = vmatprep.subr.mxu0 0.0
        %3637 = vmatpush1.msra.mxu0 0.0
        %3638 = vmatprep.subr.mxu0 0.0
        %3639 = vmatpush1.msra.mxu0 0.0
        %3640 = vmatprep.subr.mxu0 0.0
        %3641 = vmatpush1.msra.mxu0 0.0
        %3642 = vmatprep.subr.mxu0 0.0
        %3643 = vmatpush1.msra.mxu0 0.0
        %3644 = vmatprep.subr.mxu0 0.0
        %3645 = vmatpush1.msra.mxu0 0.0
        %3646 = vmatprep.subr.mxu0 0.0
        %3647 = vmatpush1.msra.mxu0 %v3505
        %3648 = vmatprep.subr.mxu0 0.0
        %3649 = vmatpush1.msra.mxu0 %v3504
        %3650 = vmatprep.subr.mxu0 0.0
        %3651 = vmatpush1.msra.mxu0 %v3503
        %3652 = vmatprep.subr.mxu0 0.0
        %3653 = vmatpush1.msra.mxu0 %v3502
        %3654 = vmatprep.subr.mxu0 0.0
        %3655 = vmatpush1.msra.mxu0 %v3501
        %3656 = vmatprep.subr.mxu0 0.0
        %3657 = vmatpush1.msra.mxu0 %v3500
        %3658 = vmatprep.subr.mxu0 0.0
        %3659 = vmatpush1.msra.mxu0 %v3499
        %3660 = vmatprep.subr.mxu0 0.0
        %3661 = vmatpush1.msra.mxu0 %v3498
        %3662 = vmatprep.subr.mxu0 0.0
        %3663 = vmatpush2.msra.mxu0 0.0
        %3664 = vmatprep.subr.mxu0 0.0
        %3665 = vmatpush2.msra.mxu0 0.0
        %3666 = vmatprep.subr.mxu0 0.0
        %3667 = vmatpush2.msra.mxu0 0.0
        %3668 = vmatprep.subr.mxu0 0.0
        %3669 = vmatpush2.msra.mxu0 0.0
        %3670 = vmatprep.subr.mxu0 0.0
        %3671 = vmatpush2.msra.mxu0 0.0
        %3672 = vmatprep.subr.mxu0 0.0
        %3673 = vmatpush2.msra.mxu0 0.0
        %3674 = vmatprep.subr.mxu0 0.0
        %3675 = vmatpush2.msra.mxu0 0.0
        %3676 = vmatprep.subr.mxu0 0.0
        %3677 = vmatpush2.msra.mxu0 0.0
        %3678 = vmatprep.subr.mxu0 0.0
        %3679 = vmatpush2.msra.mxu0 0.0
        %3680 = vmatprep.subr.mxu0 0.0
        %3681 = vmatpush2.msra.mxu0 0.0
        %3682 = vmatprep.subr.mxu0 0.0
        %3683 = vmatpush2.msra.mxu0 0.0
        %3684 = vmatprep.subr.mxu0 0.0
        %3685 = vmatpush2.msra.mxu0 0.0
        %3686 = vmatprep.subr.mxu0 0.0
        %3687 = vmatpush2.msra.mxu0 0.0
        %3688 = vmatprep.subr.mxu0 0.0
        %3689 = vmatpush2.msra.mxu0 0.0
        %3690 = vmatprep.subr.mxu0 0.0
        %3691 = vmatpush2.msra.mxu0 0.0
        %3692 = vmatprep.subr.mxu0 0.0
        %3693 = vmatpush2.msra.mxu0 0.0
        %3694 = vmatprep.mubr.f32.mxu0 0.0
        %3695 = vmatmul.mubr.f32.gmra.mxu0 %v3628
        %v3696 = vpop.f32.mrf.mxu0
        %v3697 = vadd.f32 0.0, %v3696
        %v3698 = vpop.f32.mrf.mxu0
        %3699 = vdwg.mxu0
        %v3701 = vsel %vm2192, %v3122, 0
        %3703 = vmatprep.subr.mxu0 0.0
        %3704 = vmatpush1.msra.mxu0 0.0
        %3705 = vmatprep.subr.mxu0 0.0
        %3706 = vmatpush1.msra.mxu0 0.0
        %3707 = vmatprep.subr.mxu0 0.0
        %3708 = vmatpush1.msra.mxu0 0.0
        %3709 = vmatprep.subr.mxu0 0.0
        %3710 = vmatpush1.msra.mxu0 0.0
        %3711 = vmatprep.subr.mxu0 0.0
        %3712 = vmatpush1.msra.mxu0 0.0
        %3713 = vmatprep.subr.mxu0 0.0
        %3714 = vmatpush1.msra.mxu0 0.0
        %3715 = vmatprep.subr.mxu0 0.0
        %3716 = vmatpush1.msra.mxu0 0.0
        %3717 = vmatprep.subr.mxu0 0.0
        %3718 = vmatpush1.msra.mxu0 0.0
        %3719 = vmatprep.subr.mxu0 0.0
        %3720 = vmatpush1.msra.mxu0 %v3513
        %3721 = vmatprep.subr.mxu0 0.0
        %3722 = vmatpush1.msra.mxu0 %v3512
        %3723 = vmatprep.subr.mxu0 0.0
        %3724 = vmatpush1.msra.mxu0 %v3511
        %3725 = vmatprep.subr.mxu0 0.0
        %3726 = vmatpush1.msra.mxu0 %v3510
        %3727 = vmatprep.subr.mxu0 0.0
        %3728 = vmatpush1.msra.mxu0 %v3509
        %3729 = vmatprep.subr.mxu0 0.0
        %3730 = vmatpush1.msra.mxu0 %v3508
        %3731 = vmatprep.subr.mxu0 0.0
        %3732 = vmatpush1.msra.mxu0 %v3507
        %3733 = vmatprep.subr.mxu0 0.0
        %3734 = vmatpush1.msra.mxu0 %v3506
        %3735 = vmatprep.subr.mxu0 0.0
        %3736 = vmatpush2.msra.mxu0 0.0
        %3737 = vmatprep.subr.mxu0 0.0
        %3738 = vmatpush2.msra.mxu0 0.0
        %3739 = vmatprep.subr.mxu0 0.0
        %3740 = vmatpush2.msra.mxu0 0.0
        %3741 = vmatprep.subr.mxu0 0.0
        %3742 = vmatpush2.msra.mxu0 0.0
        %3743 = vmatprep.subr.mxu0 0.0
        %3744 = vmatpush2.msra.mxu0 0.0
        %3745 = vmatprep.subr.mxu0 0.0
        %3746 = vmatpush2.msra.mxu0 0.0
        %3747 = vmatprep.subr.mxu0 0.0
        %3748 = vmatpush2.msra.mxu0 0.0
        %3749 = vmatprep.subr.mxu0 0.0
        %3750 = vmatpush2.msra.mxu0 0.0
        %3751 = vmatprep.subr.mxu0 0.0
        %3752 = vmatpush2.msra.mxu0 0.0
        %3753 = vmatprep.subr.mxu0 0.0
        %3754 = vmatpush2.msra.mxu0 0.0
        %3755 = vmatprep.subr.mxu0 0.0
        %3756 = vmatpush2.msra.mxu0 0.0
        %3757 = vmatprep.subr.mxu0 0.0
        %3758 = vmatpush2.msra.mxu0 0.0
        %3759 = vmatprep.subr.mxu0 0.0
        %3760 = vmatpush2.msra.mxu0 0.0
        %3761 = vmatprep.subr.mxu0 0.0
        %3762 = vmatpush2.msra.mxu0 0.0
        %3763 = vmatprep.subr.mxu0 0.0
        %3764 = vmatpush2.msra.mxu0 0.0
        %3765 = vmatprep.subr.mxu0 0.0
        %3766 = vmatpush2.msra.mxu0 0.0
        %3767 = vmatprep.mubr.f32.mxu0 0.0
        %3768 = vmatmul.mubr.f32.gmra.mxu0 %v3701
        %v3769 = vpop.f32.mrf.mxu0
        %v3770 = vadd.f32 0.0, %v3769
        %v3771 = vpop.f32.mrf.mxu0
        %3772 = vdwg.mxu0
        %v3774 = vsel %vm2192, %v3195, 0
        %3776 = vmatprep.subr.mxu0 0.0
        %3777 = vmatpush1.msra.mxu0 0.0
        %3778 = vmatprep.subr.mxu0 0.0
        %3779 = vmatpush1.msra.mxu0 0.0
        %3780 = vmatprep.subr.mxu0 0.0
        %3781 = vmatpush1.msra.mxu0 0.0
        %3782 = vmatprep.subr.mxu0 0.0
        %3783 = vmatpush1.msra.mxu0 0.0
        %3784 = vmatprep.subr.mxu0 0.0
        %3785 = vmatpush1.msra.mxu0 0.0
        %3786 = vmatprep.subr.mxu0 0.0
        %3787 = vmatpush1.msra.mxu0 0.0
        %3788 = vmatprep.subr.mxu0 0.0
        %3789 = vmatpush1.msra.mxu0 0.0
        %3790 = vmatprep.subr.mxu0 0.0
        %3791 = vmatpush1.msra.mxu0 0.0
        %3792 = vmatprep.subr.mxu0 0.0
        %3793 = vmatpush1.msra.mxu0 %v3521
        %3794 = vmatprep.subr.mxu0 0.0
        %3795 = vmatpush1.msra.mxu0 %v3520
        %3796 = vmatprep.subr.mxu0 0.0
        %3797 = vmatpush1.msra.mxu0 %v3519
        %3798 = vmatprep.subr.mxu0 0.0
        %3799 = vmatpush1.msra.mxu0 %v3518
        %3800 = vmatprep.subr.mxu0 0.0
        %3801 = vmatpush1.msra.mxu0 %v3517
        %3802 = vmatprep.subr.mxu0 0.0
        %3803 = vmatpush1.msra.mxu0 %v3516
        %3804 = vmatprep.subr.mxu0 0.0
        %3805 = vmatpush1.msra.mxu0 %v3515
        %3806 = vmatprep.subr.mxu0 0.0
        %3807 = vmatpush1.msra.mxu0 %v3514
        %3808 = vmatprep.subr.mxu0 0.0
        %3809 = vmatpush2.msra.mxu0 0.0
        %3810 = vmatprep.subr.mxu0 0.0
        %3811 = vmatpush2.msra.mxu0 0.0
        %3812 = vmatprep.subr.mxu0 0.0
        %3813 = vmatpush2.msra.mxu0 0.0
        %3814 = vmatprep.subr.mxu0 0.0
        %3815 = vmatpush2.msra.mxu0 0.0
        %3816 = vmatprep.subr.mxu0 0.0
        %3817 = vmatpush2.msra.mxu0 0.0
        %3818 = vmatprep.subr.mxu0 0.0
        %3819 = vmatpush2.msra.mxu0 0.0
        %3820 = vmatprep.subr.mxu0 0.0
        %3821 = vmatpush2.msra.mxu0 0.0
        %3822 = vmatprep.subr.mxu0 0.0
        %3823 = vmatpush2.msra.mxu0 0.0
        %3824 = vmatprep.subr.mxu0 0.0
        %3825 = vmatpush2.msra.mxu0 0.0
        %3826 = vmatprep.subr.mxu0 0.0
        %3827 = vmatpush2.msra.mxu0 0.0
        %3828 = vmatprep.subr.mxu0 0.0
        %3829 = vmatpush2.msra.mxu0 0.0
        %3830 = vmatprep.subr.mxu0 0.0
        %3831 = vmatpush2.msra.mxu0 0.0
        %3832 = vmatprep.subr.mxu0 0.0
        %3833 = vmatpush2.msra.mxu0 0.0
        %3834 = vmatprep.subr.mxu0 0.0
        %3835 = vmatpush2.msra.mxu0 0.0
        %3836 = vmatprep.subr.mxu0 0.0
        %3837 = vmatpush2.msra.mxu0 0.0
        %3838 = vmatprep.subr.mxu0 0.0
        %3839 = vmatpush2.msra.mxu0 0.0
        %3840 = vmatprep.mubr.f32.mxu0 0.0
        %3841 = vmatmul.mubr.f32.gmra.mxu0 %v3774
        %v3842 = vpop.f32.mrf.mxu0
        %v3843 = vadd.f32 0.0, %v3842
        %v3844 = vpop.f32.mrf.mxu0
        %3845 = vdwg.mxu0
        %v3847 = vsel %vm2192, %v3268, 0
        %3849 = vmatprep.subr.mxu0 0.0
        %3850 = vmatpush1.msra.mxu0 0.0
        %3851 = vmatprep.subr.mxu0 0.0
        %3852 = vmatpush1.msra.mxu0 0.0
        %3853 = vmatprep.subr.mxu0 0.0
        %3854 = vmatpush1.msra.mxu0 0.0
        %3855 = vmatprep.subr.mxu0 0.0
        %3856 = vmatpush1.msra.mxu0 0.0
        %3857 = vmatprep.subr.mxu0 0.0
        %3858 = vmatpush1.msra.mxu0 0.0
        %3859 = vmatprep.subr.mxu0 0.0
        %3860 = vmatpush1.msra.mxu0 0.0
        %3861 = vmatprep.subr.mxu0 0.0
        %3862 = vmatpush1.msra.mxu0 0.0
        %3863 = vmatprep.subr.mxu0 0.0
        %3864 = vmatpush1.msra.mxu0 0.0
        %3865 = vmatprep.subr.mxu0 0.0
        %3866 = vmatpush1.msra.mxu0 %v3529
        %3867 = vmatprep.subr.mxu0 0.0
        %3868 = vmatpush1.msra.mxu0 %v3528
        %3869 = vmatprep.subr.mxu0 0.0
        %3870 = vmatpush1.msra.mxu0 %v3527
        %3871 = vmatprep.subr.mxu0 0.0
        %3872 = vmatpush1.msra.mxu0 %v3526
        %3873 = vmatprep.subr.mxu0 0.0
        %3874 = vmatpush1.msra.mxu0 %v3525
        %3875 = vmatprep.subr.mxu0 0.0
        %3876 = vmatpush1.msra.mxu0 %v3524
        %3877 = vmatprep.subr.mxu0 0.0
        %3878 = vmatpush1.msra.mxu0 %v3523
        %3879 = vmatprep.subr.mxu0 0.0
        %3880 = vmatpush1.msra.mxu0 %v3522
        %3881 = vmatprep.subr.mxu0 0.0
        %3882 = vmatpush2.msra.mxu0 0.0
        %3883 = vmatprep.subr.mxu0 0.0
        %3884 = vmatpush2.msra.mxu0 0.0
        %3885 = vmatprep.subr.mxu0 0.0
        %3886 = vmatpush2.msra.mxu0 0.0
        %3887 = vmatprep.subr.mxu0 0.0
        %3888 = vmatpush2.msra.mxu0 0.0
        %3889 = vmatprep.subr.mxu0 0.0
        %3890 = vmatpush2.msra.mxu0 0.0
        %3891 = vmatprep.subr.mxu0 0.0
        %3892 = vmatpush2.msra.mxu0 0.0
        %3893 = vmatprep.subr.mxu0 0.0
        %3894 = vmatpush2.msra.mxu0 0.0
        %3895 = vmatprep.subr.mxu0 0.0
        %3896 = vmatpush2.msra.mxu0 0.0
        %3897 = vmatprep.subr.mxu0 0.0
        %3898 = vmatpush2.msra.mxu0 0.0
        %3899 = vmatprep.subr.mxu0 0.0
        %3900 = vmatpush2.msra.mxu0 0.0
        %3901 = vmatprep.subr.mxu0 0.0
        %3902 = vmatpush2.msra.mxu0 0.0
        %3903 = vmatprep.subr.mxu0 0.0
        %3904 = vmatpush2.msra.mxu0 0.0
        %3905 = vmatprep.subr.mxu0 0.0
        %3906 = vmatpush2.msra.mxu0 0.0
        %3907 = vmatprep.subr.mxu0 0.0
        %3908 = vmatpush2.msra.mxu0 0.0
        %3909 = vmatprep.subr.mxu0 0.0
        %3910 = vmatpush2.msra.mxu0 0.0
        %3911 = vmatprep.subr.mxu0 0.0
        %3912 = vmatpush2.msra.mxu0 0.0
        %3913 = vmatprep.mubr.f32.mxu0 0.0
        %3914 = vmatmul.mubr.f32.gmra.mxu0 %v3847
        %v3915 = vpop.f32.mrf.mxu0
        %v3916 = vadd.f32 0.0, %v3915
        %v3917 = vpop.f32.mrf.mxu0
        %3918 = vdwg.mxu0
        %v3920 = vsel %vm2192, %v3341, 0
        %3922 = vmatprep.subr.mxu0 0.0
        %3923 = vmatpush1.msra.mxu0 0.0
        %3924 = vmatprep.subr.mxu0 0.0
        %3925 = vmatpush1.msra.mxu0 0.0
        %3926 = vmatprep.subr.mxu0 0.0
        %3927 = vmatpush1.msra.mxu0 0.0
        %3928 = vmatprep.subr.mxu0 0.0
        %3929 = vmatpush1.msra.mxu0 0.0
        %3930 = vmatprep.subr.mxu0 0.0
        %3931 = vmatpush1.msra.mxu0 0.0
        %3932 = vmatprep.subr.mxu0 0.0
        %3933 = vmatpush1.msra.mxu0 0.0
        %3934 = vmatprep.subr.mxu0 0.0
        %3935 = vmatpush1.msra.mxu0 0.0
        %3936 = vmatprep.subr.mxu0 0.0
        %3937 = vmatpush1.msra.mxu0 0.0
        %3938 = vmatprep.subr.mxu0 0.0
        %3939 = vmatpush1.msra.mxu0 %v3537
        %3940 = vmatprep.subr.mxu0 0.0
        %3941 = vmatpush1.msra.mxu0 %v3536
        %3942 = vmatprep.subr.mxu0 0.0
        %3943 = vmatpush1.msra.mxu0 %v3535
        %3944 = vmatprep.subr.mxu0 0.0
        %3945 = vmatpush1.msra.mxu0 %v3534
        %3946 = vmatprep.subr.mxu0 0.0
        %3947 = vmatpush1.msra.mxu0 %v3533
        %3948 = vmatprep.subr.mxu0 0.0
        %3949 = vmatpush1.msra.mxu0 %v3532
        %3950 = vmatprep.subr.mxu0 0.0
        %3951 = vmatpush1.msra.mxu0 %v3531
        %3952 = vmatprep.subr.mxu0 0.0
        %3953 = vmatpush1.msra.mxu0 %v3530
        %3954 = vmatprep.subr.mxu0 0.0
        %3955 = vmatpush2.msra.mxu0 0.0
        %3956 = vmatprep.subr.mxu0 0.0
        %3957 = vmatpush2.msra.mxu0 0.0
        %3958 = vmatprep.subr.mxu0 0.0
        %3959 = vmatpush2.msra.mxu0 0.0
        %3960 = vmatprep.subr.mxu0 0.0
        %3961 = vmatpush2.msra.mxu0 0.0
        %3962 = vmatprep.subr.mxu0 0.0
        %3963 = vmatpush2.msra.mxu0 0.0
        %3964 = vmatprep.subr.mxu0 0.0
        %3965 = vmatpush2.msra.mxu0 0.0
        %3966 = vmatprep.subr.mxu0 0.0
        %3967 = vmatpush2.msra.mxu0 0.0
        %3968 = vmatprep.subr.mxu0 0.0
        %3969 = vmatpush2.msra.mxu0 0.0
        %3970 = vmatprep.subr.mxu0 0.0
        %3971 = vmatpush2.msra.mxu0 0.0
        %3972 = vmatprep.subr.mxu0 0.0
        %3973 = vmatpush2.msra.mxu0 0.0
        %3974 = vmatprep.subr.mxu0 0.0
        %3975 = vmatpush2.msra.mxu0 0.0
        %3976 = vmatprep.subr.mxu0 0.0
        %3977 = vmatpush2.msra.mxu0 0.0
        %3978 = vmatprep.subr.mxu0 0.0
        %3979 = vmatpush2.msra.mxu0 0.0
        %3980 = vmatprep.subr.mxu0 0.0
        %3981 = vmatpush2.msra.mxu0 0.0
        %3982 = vmatprep.subr.mxu0 0.0
        %3983 = vmatpush2.msra.mxu0 0.0
        %3984 = vmatprep.subr.mxu0 0.0
        %3985 = vmatpush2.msra.mxu0 0.0
        %3986 = vmatprep.mubr.f32.mxu0 0.0
        %3987 = vmatmul.mubr.f32.gmra.mxu0 %v3920
        %v3988 = vpop.f32.mrf.mxu0
        %v3989 = vadd.f32 0.0, %v3988
        %v3990 = vpop.f32.mrf.mxu0
        %3991 = vdwg.mxu0
        %v3993 = vsel %vm2192, %v3414, 0
        %3995 = vmatprep.subr.mxu0 0.0
        %3996 = vmatpush1.msra.mxu0 0.0
        %3997 = vmatprep.subr.mxu0 0.0
        %3998 = vmatpush1.msra.mxu0 0.0
        %3999 = vmatprep.subr.mxu0 0.0
        %4000 = vmatpush1.msra.mxu0 0.0
        %4001 = vmatprep.subr.mxu0 0.0
        %4002 = vmatpush1.msra.mxu0 0.0
        %4003 = vmatprep.subr.mxu0 0.0
        %4004 = vmatpush1.msra.mxu0 0.0
        %4005 = vmatprep.subr.mxu0 0.0
        %4006 = vmatpush1.msra.mxu0 0.0
        %4007 = vmatprep.subr.mxu0 0.0
        %4008 = vmatpush1.msra.mxu0 0.0
        %4009 = vmatprep.subr.mxu0 0.0
        %4010 = vmatpush1.msra.mxu0 0.0
        %4011 = vmatprep.subr.mxu0 0.0
        %4012 = vmatpush1.msra.mxu0 %v3545
        %4013 = vmatprep.subr.mxu0 0.0
        %4014 = vmatpush1.msra.mxu0 %v3544
        %4015 = vmatprep.subr.mxu0 0.0
        %4016 = vmatpush1.msra.mxu0 %v3543
        %4017 = vmatprep.subr.mxu0 0.0
        %4018 = vmatpush1.msra.mxu0 %v3542
        %4019 = vmatprep.subr.mxu0 0.0
        %4020 = vmatpush1.msra.mxu0 %v3541
        %4021 = vmatprep.subr.mxu0 0.0
        %4022 = vmatpush1.msra.mxu0 %v3540
        %4023 = vmatprep.subr.mxu0 0.0
        %4024 = vmatpush1.msra.mxu0 %v3539
        %4025 = vmatprep.subr.mxu0 0.0
        %4026 = vmatpush1.msra.mxu0 %v3538
        %4027 = vmatprep.subr.mxu0 0.0
        %4028 = vmatpush2.msra.mxu0 0.0
        %4029 = vmatprep.subr.mxu0 0.0
        %4030 = vmatpush2.msra.mxu0 0.0
        %4031 = vmatprep.subr.mxu0 0.0
        %4032 = vmatpush2.msra.mxu0 0.0
        %4033 = vmatprep.subr.mxu0 0.0
        %4034 = vmatpush2.msra.mxu0 0.0
        %4035 = vmatprep.subr.mxu0 0.0
        %4036 = vmatpush2.msra.mxu0 0.0
        %4037 = vmatprep.subr.mxu0 0.0
        %4038 = vmatpush2.msra.mxu0 0.0
        %4039 = vmatprep.subr.mxu0 0.0
        %4040 = vmatpush2.msra.mxu0 0.0
        %4041 = vmatprep.subr.mxu0 0.0
        %4042 = vmatpush2.msra.mxu0 0.0
        %4043 = vmatprep.subr.mxu0 0.0
        %4044 = vmatpush2.msra.mxu0 0.0
        %4045 = vmatprep.subr.mxu0 0.0
        %4046 = vmatpush2.msra.mxu0 0.0
        %4047 = vmatprep.subr.mxu0 0.0
        %4048 = vmatpush2.msra.mxu0 0.0
        %4049 = vmatprep.subr.mxu0 0.0
        %4050 = vmatpush2.msra.mxu0 0.0
        %4051 = vmatprep.subr.mxu0 0.0
        %4052 = vmatpush2.msra.mxu0 0.0
        %4053 = vmatprep.subr.mxu0 0.0
        %4054 = vmatpush2.msra.mxu0 0.0
        %4055 = vmatprep.subr.mxu0 0.0
        %4056 = vmatpush2.msra.mxu0 0.0
        %4057 = vmatprep.subr.mxu0 0.0
        %4058 = vmatpush2.msra.mxu0 0.0
        %4059 = vmatprep.mubr.f32.mxu0 0.0
        %4060 = vmatmul.mubr.f32.gmra.mxu0 %v3993
        %v4061 = vpop.f32.mrf.mxu0
        %v4062 = vadd.f32 0.0, %v4061
        %v4063 = vpop.f32.mrf.mxu0
        %4064 = vdwg.mxu0
        %v4066 = vsel %vm2192, %v3487, 0
        %4068 = vmatprep.subr.mxu0 0.0
        %4069 = vmatpush1.msra.mxu0 0.0
        %4070 = vmatprep.subr.mxu0 0.0
        %4071 = vmatpush1.msra.mxu0 0.0
        %4072 = vmatprep.subr.mxu0 0.0
        %4073 = vmatpush1.msra.mxu0 0.0
        %4074 = vmatprep.subr.mxu0 0.0
        %4075 = vmatpush1.msra.mxu0 0.0
        %4076 = vmatprep.subr.mxu0 0.0
        %4077 = vmatpush1.msra.mxu0 0.0
        %4078 = vmatprep.subr.mxu0 0.0
        %4079 = vmatpush1.msra.mxu0 0.0
        %4080 = vmatprep.subr.mxu0 0.0
        %4081 = vmatpush1.msra.mxu0 0.0
        %4082 = vmatprep.subr.mxu0 0.0
        %4083 = vmatpush1.msra.mxu0 0.0
        %4084 = vmatprep.subr.mxu0 0.0
        %4085 = vmatpush1.msra.mxu0 %v3553
        %4086 = vmatprep.subr.mxu0 0.0
        %4087 = vmatpush1.msra.mxu0 %v3552
        %4088 = vmatprep.subr.mxu0 0.0
        %4089 = vmatpush1.msra.mxu0 %v3551
        %4090 = vmatprep.subr.mxu0 0.0
        %4091 = vmatpush1.msra.mxu0 %v3550
        %4092 = vmatprep.subr.mxu0 0.0
        %4093 = vmatpush1.msra.mxu0 %v3549
        %4094 = vmatprep.subr.mxu0 0.0
        %4095 = vmatpush1.msra.mxu0 %v3548
        %4096 = vmatprep.subr.mxu0 0.0
        %4097 = vmatpush1.msra.mxu0 %v3547
        %4098 = vmatprep.subr.mxu0 0.0
        %4099 = vmatpush1.msra.mxu0 %v3546
        %4100 = vmatprep.subr.mxu0 0.0
        %4101 = vmatpush2.msra.mxu0 0.0
        %4102 = vmatprep.subr.mxu0 0.0
        %4103 = vmatpush2.msra.mxu0 0.0
        %4104 = vmatprep.subr.mxu0 0.0
        %4105 = vmatpush2.msra.mxu0 0.0
        %4106 = vmatprep.subr.mxu0 0.0
        %4107 = vmatpush2.msra.mxu0 0.0
        %4108 = vmatprep.subr.mxu0 0.0
        %4109 = vmatpush2.msra.mxu0 0.0
        %4110 = vmatprep.subr.mxu0 0.0
        %4111 = vmatpush2.msra.mxu0 0.0
        %4112 = vmatprep.subr.mxu0 0.0
        %4113 = vmatpush2.msra.mxu0 0.0
        %4114 = vmatprep.subr.mxu0 0.0
        %4115 = vmatpush2.msra.mxu0 0.0
        %4116 = vmatprep.subr.mxu0 0.0
        %4117 = vmatpush2.msra.mxu0 0.0
        %4118 = vmatprep.subr.mxu0 0.0
        %4119 = vmatpush2.msra.mxu0 0.0
        %4120 = vmatprep.subr.mxu0 0.0
        %4121 = vmatpush2.msra.mxu0 0.0
        %4122 = vmatprep.subr.mxu0 0.0
        %4123 = vmatpush2.msra.mxu0 0.0
        %4124 = vmatprep.subr.mxu0 0.0
        %4125 = vmatpush2.msra.mxu0 0.0
        %4126 = vmatprep.subr.mxu0 0.0
        %4127 = vmatpush2.msra.mxu0 0.0
        %4128 = vmatprep.subr.mxu0 0.0
        %4129 = vmatpush2.msra.mxu0 0.0
        %4130 = vmatprep.subr.mxu0 0.0
        %4131 = vmatpush2.msra.mxu0 0.0
        %4132 = vmatprep.mubr.f32.mxu0 0.0
        %4133 = vmatmul.mubr.f32.gmra.mxu0 %v4066
        %v4134 = vpop.f32.mrf.mxu0
        %v4135 = vadd.f32 0.0, %v4134
        %v4136 = vpop.f32.mrf.mxu0
        %4137 = vdwg.mxu0
        %v4138 = vsel %vm438, %v3624, 0.0
        %v4139 = vsel %vm438, %v3697, 0.0
        %v4140 = vadd.f32 %v4138, %v4139
        %v4141 = vsel %vm438, %v3770, 0.0
        %v4142 = vadd.f32 %v4140, %v4141
        %v4143 = vsel %vm438, %v3843, 0.0
        %v4144 = vadd.f32 %v4142, %v4143
        %v4145 = vsel %vm438, %v3916, 0.0
        %v4146 = vadd.f32 %v4144, %v4145
        %v4147 = vsel %vm438, %v3989, 0.0
        %v4148 = vadd.f32 %v4146, %v4147
        %v4149 = vsel %vm438, %v4062, 0.0
        %v4150 = vadd.f32 %v4148, %v4149
        %v4151 = vsel %vm438, %v4135, 0.0
        %v4152 = vadd.f32 %v4150, %v4151
        %v4153 = vadd.f32 %v4152, %v403
        %v4154 = vsel %vm438, %v4153, 0.0
        %4155 = vadd.xlane.f32.xlu0 %v4154
        %v4156 = vpop.xlane.xlu0 %4155
        %v4157 = vrcp.pop 32.0
        %v4158 = vmul.f32 %v4156, %v4157
        %v4159 = vsub.f32 %v4153, %v4158
        %v4160 = vmul.f32 %v4159, %v4159
        %v4161 = vsel %vm438, %v4160, 0.0
        %4162 = vadd.xlane.f32.xlu0 %v4161
        %v4163 = vpop.xlane.xlu0 %4162
        %v4164 = vmul.f32 %v4163, %v4157
        %v4165 = vadd.f32 %v4164, 1e-05
        %v4166 = vrsqrt.pop %v4165
        %v4167 = vmul.f32 %v4159, %v4166
        %4168 = vst.msk [vmem:[%s395] sm:$0xff] %vm438, %v4167
        %s4169 = sand.u32 %s202, 1
        %s4170 = scalar_lea.sflag [#allocation4], %s4169
        %s4171 = sand.u32 %s202, 1
        %s4172 = smul.addr %s4171, 8
        %s4173 = scalar_lea.vmem [#allocation8], %s4172
        %s4174 = sand.u32 %s228, 1
        %s4175 = scalar_lea.sflag [#allocation10], %s4174
        %s4176 = sand.u32 %s228, 1
        %s4177 = smul.addr %s4176, 64
        %s4178 = scalar_lea.vmem [#allocation9], %s4177
        // Predicated region
        $region61: #{tpu_custom_call.1} parent=47 // pred_check
          %p4179 = pneg %p212
        $region62: #{tpu_custom_call.1} parent=47 // pred_check_branch
          %4181 = sbr.rel (%p4179) target = $region64
        $region63: #{tpu_custom_call.1} parent=47 // pred_region
          %s4183 = ssub.s32 128, 128
          %4184 = vsyncadd %s4170, %s4183
          %s4185 = smul.addr %s32, 128
          %s4186 = scalar_lea.hbm %s7, %s4185
          %s4188 = sshll.u32 %s4173, 4
          %s4189 = int_to_ptr.vmem [resolvable:$true] %s4188
          %4191 = dma.vmem_to_hbm [thread:$0]  %s4189, 128, %s4186, %s4170
        $region64: #{tpu_custom_call.1} parent=47 // pred_fallthru
          _
        // Predicated region
        $region65: #{tpu_custom_call.1} parent=47 // pred_check
          %p4192 = pneg %p238
        $region66: #{tpu_custom_call.1} parent=47 // pred_check_branch
          %4194 = sbr.rel (%p4192) target = $region68
        $region67: #{tpu_custom_call.1} parent=47 // pred_region
          %s4196 = ssub.s32 1024, 1024
          %4197 = vsyncadd %s4175, %s4196
          %s4198 = smul.addr %s32, 8
          %s4199 = smul.addr %s4198, 128
          %s4200 = scalar_lea.hbm %s8, %s4199
          %s4201 = sshll.u32 %s4178, 4
          %s4202 = int_to_ptr.vmem [resolvable:$true] %s4201
          %4207 = dma.vmem_to_hbm [thread:$0]  %s4202, 1024, %s4200, %s4175, 128, 128, 8
        $region68: #{tpu_custom_call.1} parent=47 // pred_fallthru
          _
      $region48: #{tpu_custom_call.1} parent=5 // pred_fallthru
        _
      %p4208 = scmp.le.s32.totalorder 2, %s27
      // Predicated region
      $region69: #{tpu_custom_call.1} parent=5 // pred_check
        %p4209 = pneg %p4208
      $region70: #{tpu_custom_call.1} parent=5 // pred_check_branch
        %4211 = sbr.rel (%p4209) target = $region72
      $region71: #{tpu_custom_call.1} parent=5 // pred_region
        %s4212 = ssub.s32 %s27, 2
        // Predicated region
        $region73: #{tpu_custom_call.1} parent=71 // pred_check
          %p4213 = pneg %p218
        $region74: #{tpu_custom_call.1} parent=71 // pred_check_branch
          %4215 = sbr.rel (%p4213) target = $region76
        $region75: #{tpu_custom_call.1} parent=71 // pred_region
          %s4216 = sand.u32 %s203, 1
          %s4217 = scalar_lea.sflag [#allocation4], %s4216
          %s4218 = sand.u32 %s203, 1
          %s4219 = smul.addr %s4218, 8
          %s4220 = scalar_lea.vmem [#allocation8], %s4219
          %4221 = dma.done %s4217, 128
        $region76: #{tpu_custom_call.1} parent=71 // pred_fallthru
          _
        // Predicated region
        $region77: #{tpu_custom_call.1} parent=71 // pred_check
          %p4222 = pneg %p244
        $region78: #{tpu_custom_call.1} parent=71 // pred_check_branch
          %4224 = sbr.rel (%p4222) target = $region80
        $region79: #{tpu_custom_call.1} parent=71 // pred_region
          %s4225 = sand.u32 %s229, 1
          %s4226 = scalar_lea.sflag [#allocation10], %s4225
          %s4227 = sand.u32 %s229, 1
          %s4228 = smul.addr %s4227, 64
          %s4229 = scalar_lea.vmem [#allocation9], %s4228
          %4230 = dma.done %s4226, 1024
        $region80: #{tpu_custom_call.1} parent=71 // pred_fallthru
          _
      $region72: #{tpu_custom_call.1} parent=5 // pred_fallthru
        _
    $region6: #{tpu_custom_call.1} parent=1 // loop_footer
      %s31 = sadd.s32 1, %s27
    $region7: #{tpu_custom_call.1} parent=1 // loop_footer_branch
      %26 = sbr.rel target = $region3
    $region8: #{tpu_custom_call.1} parent=1 // loop_exit
      _
    %4231 = vsyncpa [#allocation3], 1
    %s4232 = scalar_lea.sflag [#allocation3], 1
    %4233 = vsyncpa %s4232, 1
    %4234 = vsyncpa [#allocation6], 1
    %s4235 = scalar_lea.sflag [#allocation6], 1
    %4236 = vsyncpa %s4235, 1
    %4237 = vsyncpa [#allocation4], 1
    %s4238 = scalar_lea.sflag [#allocation4], 1
    %4239 = vsyncpa %s4238, 1
    %4240 = vsyncpa [#allocation10], 1
    %s4241 = scalar_lea.sflag [#allocation10], 1
    %4242 = vsyncpa %s4241, 1

</llo_original>
